<compile_context>
chip_gen: v5e
topology: v5e:2x2
jax: 0.10.0
libtpu: 0.0.40
codegen_flags: <defaults>
</compile_context>

<pallas_src>
import jax
import jax.numpy as jnp
from jax import lax
from jax.experimental import pallas as pl
from jax.experimental.pallas import tpu as pltpu

# --- hyperparameters (GPT2Config(vocab, n_positions=seq, n_embd=embed, n_layer=4, n_head=4)) ---
VOCAB = 128
SEQ_LEN = 8
EMBED = 32
N_LAYER = 4
N_HEAD = 4
HEAD_DIM = EMBED // N_HEAD
MLP_DIM = 4 * EMBED
BATCH = 2
T = SEQ_LEN - 1          # the model only sees batch[:, :-1]
BT = BATCH * T
LN_EPS = 1e-5
NEG_INF = -1e30


# ---------------- in-kernel helpers ----------------
def _normalize(x):
    # LayerNorm without affine (gamma/beta folded into the following linear).
    mu = jnp.mean(x, axis=-1, keepdims=True)
    var = jnp.mean((x - mu) ** 2, axis=-1, keepdims=True)
    return (x - mu) * lax.rsqrt(var + LN_EPS)


def _gelu_new(x):
    # GPT-2 "gelu_new" (tanh approximation)
    return 0.5 * x * (1.0 + jnp.tanh(
        jnp.sqrt(2.0 / jnp.pi) * (x + 0.044715 * x * x * x)))


# ---------------- fused full-forward kernel ----------------
def gpt2_fused_kernel(tok_ref, wte_ref, pos_emb_ref, mask_ref, sel_ref,
                      w_qkv_ref, b_qkv_ref, w_ao_ref, b_ao_ref,
                      w_fc_ref, b_fc_ref, w_mp_ref, b_mp_ref,
                      lm_w_ref, lm_b_ref, o_ref):
    f32 = jnp.float32

    # ---- token embedding via one-hot matmul (gather-free), + precomputed wpe ----
    tok = tok_ref[...]                                               # (BT, 1) i32
    vocab_iota = lax.broadcasted_iota(jnp.int32, (BT, VOCAB), 1)
    tok_onehot = (vocab_iota == tok).astype(f32)                     # (BT, V)
    x = jnp.dot(tok_onehot, wte_ref[...],
                preferred_element_type=f32) + pos_emb_ref[...]       # (BT, E)

    mask_bias = mask_ref[...]                                        # (BT, BT) 0 / -1e30

    # ---- transformer blocks (static unroll; stacked weights indexed by layer) ----
    for l in range(N_LAYER):
        # causal multi-head self-attention
        # (ln_1 affine and 1/sqrt(head_dim) pre-folded into w_qkv / b_qkv)
        h = _normalize(x)
        qkv = jnp.dot(h, w_qkv_ref[l],
                      preferred_element_type=f32) + b_qkv_ref[l]     # (BT, 3E)
        ctx_heads = []
        for hd in range(N_HEAD):
            q_h = qkv[:, hd * HEAD_DIM:(hd + 1) * HEAD_DIM]
            k_h = qkv[:, EMBED + hd * HEAD_DIM:EMBED + (hd + 1) * HEAD_DIM]
            v_h = qkv[:, 2 * EMBED + hd * HEAD_DIM:2 * EMBED + (hd + 1) * HEAD_DIM]
            # q @ k.T via transposed-rhs contraction (no explicit transpose)
            s = lax.dot_general(q_h, k_h, (((1,), (1,)), ((), ())),
                                preferred_element_type=f32) + mask_bias
            s = s - jnp.max(s, axis=-1, keepdims=True)
            p = jnp.exp(s)
            p = p * pl.reciprocal(jnp.sum(p, axis=-1, keepdims=True), approx=True)
            ctx_heads.append(jnp.dot(p, v_h, preferred_element_type=f32))
        ctx = jnp.concatenate(ctx_heads, axis=-1)                    # (BT, E)
        x = x + jnp.dot(ctx, w_ao_ref[l],
                        preferred_element_type=f32) + b_ao_ref[l]

        # MLP (ln_2 affine pre-folded into w_fc / b_fc)
        h2 = _normalize(x)
        f = jnp.dot(h2, w_fc_ref[l],
                    preferred_element_type=f32) + b_fc_ref[l]        # (BT, 4E)
        f = _gelu_new(f)
        x = x + jnp.dot(f, w_mp_ref[l],
                        preferred_element_type=f32) + b_mp_ref[l]

    # ---- pick last-token row per batch item (selection matmul), ln_f, tied head ----
    h_last = jnp.dot(sel_ref[...], x, preferred_element_type=f32)    # (B, E)
    h_last = _normalize(h_last)
    # ln_f gamma folded into lm_w, ln_f beta contribution folded into lm_b
    o_ref[...] = (jnp.dot(h_last, lm_w_ref[...],
                          preferred_element_type=f32)
                  + lm_b_ref[...]).astype(o_ref.dtype)               # (B, V), lane-dense


# ---------------- parameters (deterministic, GPT-2 style init) ----------------
def init_params(key):
    keys = jax.random.split(key, 2 + N_LAYER)
    std = 0.02
    wte = std * jax.random.normal(keys[0], (VOCAB, EMBED), jnp.float32)
    wpe = 0.01 * jax.random.normal(keys[1], (SEQ_LEN, EMBED), jnp.float32)
    blocks = []
    for l in range(N_LAYER):
        ks = jax.random.split(keys[2 + l], 4)
        blocks.append((
            jnp.ones((1, EMBED), jnp.float32),                               # ln_1 gamma
            jnp.zeros((1, EMBED), jnp.float32),                              # ln_1 beta
            std * jax.random.normal(ks[0], (EMBED, 3 * EMBED), jnp.float32), # c_attn W
            jnp.zeros((1, 3 * EMBED), jnp.float32),                          # c_attn b
            std * jax.random.normal(ks[1], (EMBED, EMBED), jnp.float32),     # attn c_proj W
            jnp.zeros((1, EMBED), jnp.float32),                              # attn c_proj b
            jnp.ones((1, EMBED), jnp.float32),                               # ln_2 gamma
            jnp.zeros((1, EMBED), jnp.float32),                              # ln_2 beta
            std * jax.random.normal(ks[2], (EMBED, MLP_DIM), jnp.float32),   # mlp c_fc W
            jnp.zeros((1, MLP_DIM), jnp.float32),                            # mlp c_fc b
            std * jax.random.normal(ks[3], (MLP_DIM, EMBED), jnp.float32),   # mlp c_proj W
            jnp.zeros((1, EMBED), jnp.float32),                              # mlp c_proj b
        ))
    lnf_g = jnp.ones((1, EMBED), jnp.float32)
    lnf_b = jnp.zeros((1, EMBED), jnp.float32)
    return wte, wpe, blocks, lnf_g, lnf_b


def pack_params(params):
    """Exact algebraic rewrites done once at pack time:
       * stack per-layer params along a leading layer axis,
       * fold ln_1 gamma/beta into c_attn, ln_2 into c_fc, ln_f into the LM head,
       * fold 1/sqrt(head_dim) into the Q columns of c_attn,
       * precompute tiled positional embeddings, block-diagonal causal mask bias,
         and the last-token selector matrix."""
    wte, wpe, blocks, lnf_g, lnf_b = params
    scale = 1.0 / (HEAD_DIM ** 0.5)
    qkv_scale = jnp.concatenate(
        [jnp.full((EMBED,), scale, jnp.float32),
         jnp.ones((2 * EMBED,), jnp.float32)])[None, :]              # (1, 3E)

    # positions are always 0..T-1 for every batch row -> precompute flat (BT, E)
    pos_emb = jnp.tile(wpe[:T], (BATCH, 1)).astype(jnp.float32)

    # block-diagonal causal additive mask over the flattened batch*seq rows
    rows = jnp.arange(BT)
    b_r, p_r = rows // T, rows % T
    visible = (b_r[:, None] == b_r[None, :]) & (p_r[None, :] <= p_r[:, None])
    mask_bias = jnp.where(visible, 0.0, NEG_INF).astype(jnp.float32)  # (BT, BT)

    # last-token-per-batch-item selector (B, BT)
    sel = jnp.zeros((BATCH, BT), jnp.float32)
    sel = sel.at[jnp.arange(BATCH), jnp.arange(BATCH) * T + (T - 1)].set(1.0)

    w_qkv_l, b_qkv_l, w_ao_l, b_ao_l = [], [], [], []
    w_fc_l, b_fc_l, w_mp_l, b_mp_l = [], [], [], []
    for (ln1_g, ln1_b, w_qkv, b_qkv, w_ao, b_ao,
         ln2_g, ln2_b, w_fc, b_fc, w_mp, b_mp) in blocks:
        # fold ln_1 affine then the attention scale into c_attn
        Wq = (w_qkv * ln1_g.reshape(EMBED, 1)) * qkv_scale
        bq = (ln1_b @ w_qkv + b_qkv) * qkv_scale
        # fold ln_2 affine into c_fc
        Wf = w_fc * ln2_g.reshape(EMBED, 1)
        bf = ln2_b @ w_fc + b_fc
        w_qkv_l.append(Wq); b_qkv_l.append(bq)
        w_ao_l.append(w_ao); b_ao_l.append(b_ao)
        w_fc_l.append(Wf);  b_fc_l.append(bf)
        w_mp_l.append(w_mp); b_mp_l.append(b_mp)

    # tied LM head with ln_f affine folded in:
    #   logits = normalize(h) @ (diag(g_f) @ wte.T) + b_f @ wte.T
    lm_w = (wte * lnf_g).T.astype(jnp.float32)                       # (E, V)
    lm_b = (lnf_b @ wte.T).astype(jnp.float32)                       # (1, V)

    return (wte, pos_emb, mask_bias, sel,
            jnp.stack(w_qkv_l), jnp.stack(b_qkv_l),
            jnp.stack(w_ao_l), jnp.stack(b_ao_l),
            jnp.stack(w_fc_l), jnp.stack(b_fc_l),
            jnp.stack(w_mp_l), jnp.stack(b_mp_l),
            lm_w, lm_b)


# ---------------- forward: GPT2LM.forward(batch) ----------------
@jax.jit
def gpt2_lm_forward(batch_tokens, packed):
    tokens = batch_tokens[:, :-1].astype(jnp.int32).reshape(BT, 1)   # (B*T, 1)
    vmem = pl.BlockSpec(memory_space=pltpu.MemorySpace.VMEM)
    logits_last = pl.pallas_call(
        gpt2_fused_kernel,
        in_specs=[vmem] * (1 + len(packed)),
        out_specs=vmem,
        out_shape=jax.ShapeDtypeStruct((BATCH, VOCAB), jnp.float32),
    )(tokens, *packed)
    return logits_last, batch_tokens[:, -1]                          # == (x[:, -1, :], batch[:, -1])


if __name__ == "__main__":
    key = jax.random.PRNGKey(0)
    pkey, dkey = jax.random.split(key)
    params = init_params(pkey)
    packed = pack_params(params)
    batch = jax.random.randint(dkey, (BATCH, SEQ_LEN), 0, VOCAB, dtype=jnp.int32)

    logits_last, targets = gpt2_lm_forward(batch, packed)
    jax.block_until_ready(logits_last)
    jax.block_until_ready(targets)
    assert logits_last.shape == (BATCH, VOCAB)
    assert targets.shape == (BATCH,)
    print("KERNEL_OK")
</pallas_src>

<mosaic_0001>
module attributes {stable_mosaic.version = 11 : i64} {
  func.func @gpt2_fused_kernel(%arg0: memref<14x1xi32, #tpu.memory_space<vmem>>, %arg1: memref<128x32xf32, #tpu.memory_space<vmem>>, %arg2: memref<14x32xf32, #tpu.memory_space<vmem>>, %arg3: memref<14x14xf32, #tpu.memory_space<vmem>>, %arg4: memref<2x14xf32, #tpu.memory_space<vmem>>, %arg5: memref<4x32x96xf32, #tpu.memory_space<vmem>>, %arg6: memref<4x1x96xf32, #tpu.memory_space<vmem>>, %arg7: memref<4x32x32xf32, #tpu.memory_space<vmem>>, %arg8: memref<4x1x32xf32, #tpu.memory_space<vmem>>, %arg9: memref<4x32x128xf32, #tpu.memory_space<vmem>>, %arg10: memref<4x1x128xf32, #tpu.memory_space<vmem>>, %arg11: memref<4x128x32xf32, #tpu.memory_space<vmem>>, %arg12: memref<4x1x32xf32, #tpu.memory_space<vmem>>, %arg13: memref<32x128xf32, #tpu.memory_space<vmem>>, %arg14: memref<1x128xf32, #tpu.memory_space<vmem>>, %arg15: memref<2x128xf32, #tpu.memory_space<vmem>>) attributes {dimension_semantics = [], scalar_prefetch = 0 : i64, scratch_operands = 0 : i64, tpu.core_type = #tpu.core_type<tc>} {
    %c0 = arith.constant 0 : index
    %c0_0 = arith.constant 0 : index
    %0 = vector.load %arg0[%c0, %c0_0] : memref<14x1xi32, #tpu.memory_space<vmem>>, vector<14x1xi32>
    %1 = tpu.iota {dimensions = array<i32: 1>} : vector<14x128xi32>
    %2 = vector.broadcast %0 : vector<14x1xi32> to vector<14x128xi32>
    %3 = arith.cmpi eq, %1, %2 : vector<14x128xi32>
    %4 = arith.extui %3 : vector<14x128xi1> to vector<14x128xi32>
    %5 = arith.sitofp %4 : vector<14x128xi32> to vector<14x128xf32>
    %c0_1 = arith.constant 0 : index
    %c0_2 = arith.constant 0 : index
    %6 = vector.load %arg1[%c0_1, %c0_2] : memref<128x32xf32, #tpu.memory_space<vmem>>, vector<128x32xf32>
    %cst = arith.constant dense<0.000000e+00> : vector<14x32xf32>
    %7 = tpu.matmul %5, %6, %cst {dimension_numbers = #tpu.dot_dimension_numbers<[1], [0], [0], [1], [0, 0, 1, 1], [], []>} : vector<14x128xf32>, vector<128x32xf32>, vector<14x32xf32> -> vector<14x32xf32>
    %c0_3 = arith.constant 0 : index
    %c0_4 = arith.constant 0 : index
    %8 = vector.load %arg2[%c0_3, %c0_4] : memref<14x32xf32, #tpu.memory_space<vmem>>, vector<14x32xf32>
    %9 = arith.addf %7, %8 : vector<14x32xf32>
    %c0_5 = arith.constant 0 : index
    %c0_6 = arith.constant 0 : index
    %10 = vector.load %arg3[%c0_5, %c0_6] : memref<14x14xf32, #tpu.memory_space<vmem>>, vector<14x14xf32>
    %cst_7 = arith.constant dense<0.000000e+00> : vector<14xf32>
    %11 = vector.multi_reduction <add>, %9, %cst_7 [1] : vector<14x32xf32> to vector<14xf32>
    %12 = vector.shape_cast %11 : vector<14xf32> to vector<14x1xf32>
    %cst_8 = arith.constant 3.200000e+01 : f32
    %13 = vector.broadcast %cst_8 : f32 to vector<14x1xf32>
    %14 = arith.divf %12, %13 : vector<14x1xf32>
    %15 = vector.broadcast %14 : vector<14x1xf32> to vector<14x32xf32>
    %16 = arith.subf %9, %15 : vector<14x32xf32>
    %17 = arith.mulf %16, %16 : vector<14x32xf32>
    %cst_9 = arith.constant dense<0.000000e+00> : vector<14xf32>
    %18 = vector.multi_reduction <add>, %17, %cst_9 [1] : vector<14x32xf32> to vector<14xf32>
    %19 = vector.shape_cast %18 : vector<14xf32> to vector<14x1xf32>
    %cst_10 = arith.constant 3.200000e+01 : f32
    %20 = vector.broadcast %cst_10 : f32 to vector<14x1xf32>
    %21 = arith.divf %19, %20 : vector<14x1xf32>
    %22 = vector.broadcast %14 : vector<14x1xf32> to vector<14x32xf32>
    %23 = arith.subf %9, %22 : vector<14x32xf32>
    %cst_11 = arith.constant 9.99999974E-6 : f32
    %24 = vector.broadcast %cst_11 : f32 to vector<14x1xf32>
    %25 = arith.addf %21, %24 : vector<14x1xf32>
    %26 = math.rsqrt %25 : vector<14x1xf32>
    %27 = vector.broadcast %26 : vector<14x1xf32> to vector<14x32xf32>
    %28 = arith.mulf %23, %27 : vector<14x32xf32>
    %c0_12 = arith.constant 0 : index
    %c0_13 = arith.constant 0 : index
    %c0_14 = arith.constant 0 : index
    %29 = vector.load %arg5[%c0_12, %c0_13, %c0_14] : memref<4x32x96xf32, #tpu.memory_space<vmem>>, vector<1x32x96xf32>
    %30 = vector.shape_cast %29 : vector<1x32x96xf32> to vector<32x96xf32>
    %cst_15 = arith.constant dense<0.000000e+00> : vector<14x96xf32>
    %31 = tpu.matmul %28, %30, %cst_15 {dimension_numbers = #tpu.dot_dimension_numbers<[1], [0], [0], [1], [0, 0, 1, 1], [], []>} : vector<14x32xf32>, vector<32x96xf32>, vector<14x96xf32> -> vector<14x96xf32>
    %c0_16 = arith.constant 0 : index
    %c0_17 = arith.constant 0 : index
    %c0_18 = arith.constant 0 : index
    %32 = vector.load %arg6[%c0_16, %c0_17, %c0_18] : memref<4x1x96xf32, #tpu.memory_space<vmem>>, vector<1x1x96xf32>
    %33 = vector.shape_cast %32 : vector<1x1x96xf32> to vector<1x96xf32>
    %34 = vector.broadcast %33 : vector<1x96xf32> to vector<14x96xf32>
    %35 = arith.addf %31, %34 : vector<14x96xf32>
    %36 = vector.extract_strided_slice %35 {offsets = [0, 0], sizes = [14, 8], strides = [1, 1]} : vector<14x96xf32> to vector<14x8xf32>
    %37 = vector.extract_strided_slice %35 {offsets = [0, 32], sizes = [14, 8], strides = [1, 1]} : vector<14x96xf32> to vector<14x8xf32>
    %38 = vector.extract_strided_slice %35 {offsets = [0, 64], sizes = [14, 8], strides = [1, 1]} : vector<14x96xf32> to vector<14x8xf32>
    %cst_19 = arith.constant dense<0.000000e+00> : vector<14x14xf32>
    %39 = tpu.matmul %36, %37, %cst_19 {dimension_numbers = #tpu.dot_dimension_numbers<[1], [1], [0], [0], [0, 0, 1, 0], [], []>} : vector<14x8xf32>, vector<14x8xf32>, vector<14x14xf32> -> vector<14x14xf32>
    %40 = arith.addf %39, %10 : vector<14x14xf32>
    %cst_20 = arith.constant dense<0xFF800000> : vector<14xf32>
    %41 = vector.multi_reduction <maximumf>, %40, %cst_20 [1] : vector<14x14xf32> to vector<14xf32>
    %42 = vector.shape_cast %41 : vector<14xf32> to vector<14x1xf32>
    %43 = vector.broadcast %42 : vector<14x1xf32> to vector<14x14xf32>
    %44 = arith.subf %40, %43 : vector<14x14xf32>
    %45 = math.exp %44 : vector<14x14xf32>
    %cst_21 = arith.constant dense<0.000000e+00> : vector<14xf32>
    %46 = vector.multi_reduction <add>, %45, %cst_21 [1] : vector<14x14xf32> to vector<14xf32>
    %47 = vector.shape_cast %46 : vector<14xf32> to vector<14x1xf32>
    %48 = tpu.reciprocal %47 {approx = true} : vector<14x1xf32> -> vector<14x1xf32>
    %49 = vector.broadcast %48 : vector<14x1xf32> to vector<14x14xf32>
    %50 = arith.mulf %45, %49 : vector<14x14xf32>
    %cst_22 = arith.constant dense<0.000000e+00> : vector<14x8xf32>
    %51 = tpu.matmul %50, %38, %cst_22 {dimension_numbers = #tpu.dot_dimension_numbers<[1], [0], [0], [1], [0, 0, 1, 1], [], []>} : vector<14x14xf32>, vector<14x8xf32>, vector<14x8xf32> -> vector<14x8xf32>
    %52 = vector.extract_strided_slice %35 {offsets = [0, 8], sizes = [14, 8], strides = [1, 1]} : vector<14x96xf32> to vector<14x8xf32>
    %53 = vector.extract_strided_slice %35 {offsets = [0, 40], sizes = [14, 8], strides = [1, 1]} : vector<14x96xf32> to vector<14x8xf32>
    %54 = vector.extract_strided_slice %35 {offsets = [0, 72], sizes = [14, 8], strides = [1, 1]} : vector<14x96xf32> to vector<14x8xf32>
    %cst_23 = arith.constant dense<0.000000e+00> : vector<14x14xf32>
    %55 = tpu.matmul %52, %53, %cst_23 {dimension_numbers = #tpu.dot_dimension_numbers<[1], [1], [0], [0], [0, 0, 1, 0], [], []>} : vector<14x8xf32>, vector<14x8xf32>, vector<14x14xf32> -> vector<14x14xf32>
    %56 = arith.addf %55, %10 : vector<14x14xf32>
    %cst_24 = arith.constant dense<0xFF800000> : vector<14xf32>
    %57 = vector.multi_reduction <maximumf>, %56, %cst_24 [1] : vector<14x14xf32> to vector<14xf32>
    %58 = vector.shape_cast %57 : vector<14xf32> to vector<14x1xf32>
    %59 = vector.broadcast %58 : vector<14x1xf32> to vector<14x14xf32>
    %60 = arith.subf %56, %59 : vector<14x14xf32>
    %61 = math.exp %60 : vector<14x14xf32>
    %cst_25 = arith.constant dense<0.000000e+00> : vector<14xf32>
    %62 = vector.multi_reduction <add>, %61, %cst_25 [1] : vector<14x14xf32> to vector<14xf32>
    %63 = vector.shape_cast %62 : vector<14xf32> to vector<14x1xf32>
    %64 = tpu.reciprocal %63 {approx = true} : vector<14x1xf32> -> vector<14x1xf32>
    %65 = vector.broadcast %64 : vector<14x1xf32> to vector<14x14xf32>
    %66 = arith.mulf %61, %65 : vector<14x14xf32>
    %cst_26 = arith.constant dense<0.000000e+00> : vector<14x8xf32>
    %67 = tpu.matmul %66, %54, %cst_26 {dimension_numbers = #tpu.dot_dimension_numbers<[1], [0], [0], [1], [0, 0, 1, 1], [], []>} : vector<14x14xf32>, vector<14x8xf32>, vector<14x8xf32> -> vector<14x8xf32>
    %68 = vector.extract_strided_slice %35 {offsets = [0, 16], sizes = [14, 8], strides = [1, 1]} : vector<14x96xf32> to vector<14x8xf32>
    %69 = vector.extract_strided_slice %35 {offsets = [0, 48], sizes = [14, 8], strides = [1, 1]} : vector<14x96xf32> to vector<14x8xf32>
    %70 = vector.extract_strided_slice %35 {offsets = [0, 80], sizes = [14, 8], strides = [1, 1]} : vector<14x96xf32> to vector<14x8xf32>
    %cst_27 = arith.constant dense<0.000000e+00> : vector<14x14xf32>
    %71 = tpu.matmul %68, %69, %cst_27 {dimension_numbers = #tpu.dot_dimension_numbers<[1], [1], [0], [0], [0, 0, 1, 0], [], []>} : vector<14x8xf32>, vector<14x8xf32>, vector<14x14xf32> -> vector<14x14xf32>
    %72 = arith.addf %71, %10 : vector<14x14xf32>
    %cst_28 = arith.constant dense<0xFF800000> : vector<14xf32>
    %73 = vector.multi_reduction <maximumf>, %72, %cst_28 [1] : vector<14x14xf32> to vector<14xf32>
    %74 = vector.shape_cast %73 : vector<14xf32> to vector<14x1xf32>
    %75 = vector.broadcast %74 : vector<14x1xf32> to vector<14x14xf32>
    %76 = arith.subf %72, %75 : vector<14x14xf32>
    %77 = math.exp %76 : vector<14x14xf32>
    %cst_29 = arith.constant dense<0.000000e+00> : vector<14xf32>
    %78 = vector.multi_reduction <add>, %77, %cst_29 [1] : vector<14x14xf32> to vector<14xf32>
    %79 = vector.shape_cast %78 : vector<14xf32> to vector<14x1xf32>
    %80 = tpu.reciprocal %79 {approx = true} : vector<14x1xf32> -> vector<14x1xf32>
    %81 = vector.broadcast %80 : vector<14x1xf32> to vector<14x14xf32>
    %82 = arith.mulf %77, %81 : vector<14x14xf32>
    %cst_30 = arith.constant dense<0.000000e+00> : vector<14x8xf32>
    %83 = tpu.matmul %82, %70, %cst_30 {dimension_numbers = #tpu.dot_dimension_numbers<[1], [0], [0], [1], [0, 0, 1, 1], [], []>} : vector<14x14xf32>, vector<14x8xf32>, vector<14x8xf32> -> vector<14x8xf32>
    %84 = vector.extract_strided_slice %35 {offsets = [0, 24], sizes = [14, 8], strides = [1, 1]} : vector<14x96xf32> to vector<14x8xf32>
    %85 = vector.extract_strided_slice %35 {offsets = [0, 56], sizes = [14, 8], strides = [1, 1]} : vector<14x96xf32> to vector<14x8xf32>
    %86 = vector.extract_strided_slice %35 {offsets = [0, 88], sizes = [14, 8], strides = [1, 1]} : vector<14x96xf32> to vector<14x8xf32>
    %cst_31 = arith.constant dense<0.000000e+00> : vector<14x14xf32>
    %87 = tpu.matmul %84, %85, %cst_31 {dimension_numbers = #tpu.dot_dimension_numbers<[1], [1], [0], [0], [0, 0, 1, 0], [], []>} : vector<14x8xf32>, vector<14x8xf32>, vector<14x14xf32> -> vector<14x14xf32>
    %88 = arith.addf %87, %10 : vector<14x14xf32>
    %cst_32 = arith.constant dense<0xFF800000> : vector<14xf32>
    %89 = vector.multi_reduction <maximumf>, %88, %cst_32 [1] : vector<14x14xf32> to vector<14xf32>
    %90 = vector.shape_cast %89 : vector<14xf32> to vector<14x1xf32>
    %91 = vector.broadcast %90 : vector<14x1xf32> to vector<14x14xf32>
    %92 = arith.subf %88, %91 : vector<14x14xf32>
    %93 = math.exp %92 : vector<14x14xf32>
    %cst_33 = arith.constant dense<0.000000e+00> : vector<14xf32>
    %94 = vector.multi_reduction <add>, %93, %cst_33 [1] : vector<14x14xf32> to vector<14xf32>
    %95 = vector.shape_cast %94 : vector<14xf32> to vector<14x1xf32>
    %96 = tpu.reciprocal %95 {approx = true} : vector<14x1xf32> -> vector<14x1xf32>
    %97 = vector.broadcast %96 : vector<14x1xf32> to vector<14x14xf32>
    %98 = arith.mulf %93, %97 : vector<14x14xf32>
    %cst_34 = arith.constant dense<0.000000e+00> : vector<14x8xf32>
    %99 = tpu.matmul %98, %86, %cst_34 {dimension_numbers = #tpu.dot_dimension_numbers<[1], [0], [0], [1], [0, 0, 1, 1], [], []>} : vector<14x14xf32>, vector<14x8xf32>, vector<14x8xf32> -> vector<14x8xf32>
    %100 = tpu.concatenate %51, %67, %83, %99 in 1 : vector<14x8xf32>, vector<14x8xf32>, vector<14x8xf32>, vector<14x8xf32> -> vector<14x32xf32>
    %c0_35 = arith.constant 0 : index
    %c0_36 = arith.constant 0 : index
    %c0_37 = arith.constant 0 : index
    %101 = vector.load %arg7[%c0_35, %c0_36, %c0_37] : memref<4x32x32xf32, #tpu.memory_space<vmem>>, vector<1x32x32xf32>
    %102 = vector.shape_cast %101 : vector<1x32x32xf32> to vector<32x32xf32>
    %cst_38 = arith.constant dense<0.000000e+00> : vector<14x32xf32>
    %103 = tpu.matmul %100, %102, %cst_38 {dimension_numbers = #tpu.dot_dimension_numbers<[1], [0], [0], [1], [0, 0, 1, 1], [], []>} : vector<14x32xf32>, vector<32x32xf32>, vector<14x32xf32> -> vector<14x32xf32>
    %104 = arith.addf %9, %103 : vector<14x32xf32>
    %c0_39 = arith.constant 0 : index
    %c0_40 = arith.constant 0 : index
    %c0_41 = arith.constant 0 : index
    %105 = vector.load %arg8[%c0_39, %c0_40, %c0_41] : memref<4x1x32xf32, #tpu.memory_space<vmem>>, vector<1x1x32xf32>
    %106 = vector.shape_cast %105 : vector<1x1x32xf32> to vector<1x32xf32>
    %107 = vector.broadcast %106 : vector<1x32xf32> to vector<14x32xf32>
    %108 = arith.addf %104, %107 : vector<14x32xf32>
    %cst_42 = arith.constant dense<0.000000e+00> : vector<14xf32>
    %109 = vector.multi_reduction <add>, %108, %cst_42 [1] : vector<14x32xf32> to vector<14xf32>
    %110 = vector.shape_cast %109 : vector<14xf32> to vector<14x1xf32>
    %cst_43 = arith.constant 3.200000e+01 : f32
    %111 = vector.broadcast %cst_43 : f32 to vector<14x1xf32>
    %112 = arith.divf %110, %111 : vector<14x1xf32>
    %113 = vector.broadcast %112 : vector<14x1xf32> to vector<14x32xf32>
    %114 = arith.subf %108, %113 : vector<14x32xf32>
    %115 = arith.mulf %114, %114 : vector<14x32xf32>
    %cst_44 = arith.constant dense<0.000000e+00> : vector<14xf32>
    %116 = vector.multi_reduction <add>, %115, %cst_44 [1] : vector<14x32xf32> to vector<14xf32>
    %117 = vector.shape_cast %116 : vector<14xf32> to vector<14x1xf32>
    %cst_45 = arith.constant 3.200000e+01 : f32
    %118 = vector.broadcast %cst_45 : f32 to vector<14x1xf32>
    %119 = arith.divf %117, %118 : vector<14x1xf32>
    %120 = vector.broadcast %112 : vector<14x1xf32> to vector<14x32xf32>
    %121 = arith.subf %108, %120 : vector<14x32xf32>
    %cst_46 = arith.constant 9.99999974E-6 : f32
    %122 = vector.broadcast %cst_46 : f32 to vector<14x1xf32>
    %123 = arith.addf %119, %122 : vector<14x1xf32>
    %124 = math.rsqrt %123 : vector<14x1xf32>
    %125 = vector.broadcast %124 : vector<14x1xf32> to vector<14x32xf32>
    %126 = arith.mulf %121, %125 : vector<14x32xf32>
    %c0_47 = arith.constant 0 : index
    %c0_48 = arith.constant 0 : index
    %c0_49 = arith.constant 0 : index
    %127 = vector.load %arg9[%c0_47, %c0_48, %c0_49] : memref<4x32x128xf32, #tpu.memory_space<vmem>>, vector<1x32x128xf32>
    %128 = vector.shape_cast %127 : vector<1x32x128xf32> to vector<32x128xf32>
    %cst_50 = arith.constant dense<0.000000e+00> : vector<14x128xf32>
    %129 = tpu.matmul %126, %128, %cst_50 {dimension_numbers = #tpu.dot_dimension_numbers<[1], [0], [0], [1], [0, 0, 1, 1], [], []>} : vector<14x32xf32>, vector<32x128xf32>, vector<14x128xf32> -> vector<14x128xf32>
    %c0_51 = arith.constant 0 : index
    %c0_52 = arith.constant 0 : index
    %c0_53 = arith.constant 0 : index
    %130 = vector.load %arg10[%c0_51, %c0_52, %c0_53] : memref<4x1x128xf32, #tpu.memory_space<vmem>>, vector<1x1x128xf32>
    %131 = vector.shape_cast %130 : vector<1x1x128xf32> to vector<1x128xf32>
    %132 = vector.broadcast %131 : vector<1x128xf32> to vector<14x128xf32>
    %133 = arith.addf %129, %132 : vector<14x128xf32>
    %cst_54 = arith.constant 5.000000e-01 : f32
    %134 = vector.broadcast %cst_54 : f32 to vector<14x128xf32>
    %135 = arith.mulf %134, %133 : vector<14x128xf32>
    %cst_55 = arith.constant 0.636619746 : f32
    %136 = math.sqrt %cst_55 : f32
    %cst_56 = arith.constant 4.471500e-02 : f32
    %137 = vector.broadcast %cst_56 : f32 to vector<14x128xf32>
    %138 = arith.mulf %137, %133 : vector<14x128xf32>
    %139 = arith.mulf %138, %133 : vector<14x128xf32>
    %140 = arith.mulf %139, %133 : vector<14x128xf32>
    %141 = arith.addf %133, %140 : vector<14x128xf32>
    %142 = vector.broadcast %136 : f32 to vector<14x128xf32>
    %143 = arith.mulf %142, %141 : vector<14x128xf32>
    %144 = math.tanh %143 : vector<14x128xf32>
    %cst_57 = arith.constant 1.000000e+00 : f32
    %145 = vector.broadcast %cst_57 : f32 to vector<14x128xf32>
    %146 = arith.addf %145, %144 : vector<14x128xf32>
    %147 = arith.mulf %135, %146 : vector<14x128xf32>
    %c0_58 = arith.constant 0 : index
    %c0_59 = arith.constant 0 : index
    %c0_60 = arith.constant 0 : index
    %148 = vector.load %arg11[%c0_58, %c0_59, %c0_60] : memref<4x128x32xf32, #tpu.memory_space<vmem>>, vector<1x128x32xf32>
    %149 = vector.shape_cast %148 : vector<1x128x32xf32> to vector<128x32xf32>
    %cst_61 = arith.constant dense<0.000000e+00> : vector<14x32xf32>
    %150 = tpu.matmul %147, %149, %cst_61 {dimension_numbers = #tpu.dot_dimension_numbers<[1], [0], [0], [1], [0, 0, 1, 1], [], []>} : vector<14x128xf32>, vector<128x32xf32>, vector<14x32xf32> -> vector<14x32xf32>
    %151 = arith.addf %108, %150 : vector<14x32xf32>
    %c0_62 = arith.constant 0 : index
    %c0_63 = arith.constant 0 : index
    %c0_64 = arith.constant 0 : index
    %152 = vector.load %arg12[%c0_62, %c0_63, %c0_64] : memref<4x1x32xf32, #tpu.memory_space<vmem>>, vector<1x1x32xf32>
    %153 = vector.shape_cast %152 : vector<1x1x32xf32> to vector<1x32xf32>
    %154 = vector.broadcast %153 : vector<1x32xf32> to vector<14x32xf32>
    %155 = arith.addf %151, %154 : vector<14x32xf32>
    %cst_65 = arith.constant dense<0.000000e+00> : vector<14xf32>
    %156 = vector.multi_reduction <add>, %155, %cst_65 [1] : vector<14x32xf32> to vector<14xf32>
    %157 = vector.shape_cast %156 : vector<14xf32> to vector<14x1xf32>
    %cst_66 = arith.constant 3.200000e+01 : f32
    %158 = vector.broadcast %cst_66 : f32 to vector<14x1xf32>
    %159 = arith.divf %157, %158 : vector<14x1xf32>
    %160 = vector.broadcast %159 : vector<14x1xf32> to vector<14x32xf32>
    %161 = arith.subf %155, %160 : vector<14x32xf32>
    %162 = arith.mulf %161, %161 : vector<14x32xf32>
    %cst_67 = arith.constant dense<0.000000e+00> : vector<14xf32>
    %163 = vector.multi_reduction <add>, %162, %cst_67 [1] : vector<14x32xf32> to vector<14xf32>
    %164 = vector.shape_cast %163 : vector<14xf32> to vector<14x1xf32>
    %cst_68 = arith.constant 3.200000e+01 : f32
    %165 = vector.broadcast %cst_68 : f32 to vector<14x1xf32>
    %166 = arith.divf %164, %165 : vector<14x1xf32>
    %167 = vector.broadcast %159 : vector<14x1xf32> to vector<14x32xf32>
    %168 = arith.subf %155, %167 : vector<14x32xf32>
    %cst_69 = arith.constant 9.99999974E-6 : f32
    %169 = vector.broadcast %cst_69 : f32 to vector<14x1xf32>
    %170 = arith.addf %166, %169 : vector<14x1xf32>
    %171 = math.rsqrt %170 : vector<14x1xf32>
    %172 = vector.broadcast %171 : vector<14x1xf32> to vector<14x32xf32>
    %173 = arith.mulf %168, %172 : vector<14x32xf32>
    %c1 = arith.constant 1 : index
    %c0_70 = arith.constant 0 : index
    %c0_71 = arith.constant 0 : index
    %174 = vector.load %arg5[%c1, %c0_70, %c0_71] : memref<4x32x96xf32, #tpu.memory_space<vmem>>, vector<1x32x96xf32>
    %175 = vector.shape_cast %174 : vector<1x32x96xf32> to vector<32x96xf32>
    %cst_72 = arith.constant dense<0.000000e+00> : vector<14x96xf32>
    %176 = tpu.matmul %173, %175, %cst_72 {dimension_numbers = #tpu.dot_dimension_numbers<[1], [0], [0], [1], [0, 0, 1, 1], [], []>} : vector<14x32xf32>, vector<32x96xf32>, vector<14x96xf32> -> vector<14x96xf32>
    %c1_73 = arith.constant 1 : index
    %c0_74 = arith.constant 0 : index
    %c0_75 = arith.constant 0 : index
    %177 = vector.load %arg6[%c1_73, %c0_74, %c0_75] : memref<4x1x96xf32, #tpu.memory_space<vmem>>, vector<1x1x96xf32>
    %178 = vector.shape_cast %177 : vector<1x1x96xf32> to vector<1x96xf32>
    %179 = vector.broadcast %178 : vector<1x96xf32> to vector<14x96xf32>
    %180 = arith.addf %176, %179 : vector<14x96xf32>
    %181 = vector.extract_strided_slice %180 {offsets = [0, 0], sizes = [14, 8], strides = [1, 1]} : vector<14x96xf32> to vector<14x8xf32>
    %182 = vector.extract_strided_slice %180 {offsets = [0, 32], sizes = [14, 8], strides = [1, 1]} : vector<14x96xf32> to vector<14x8xf32>
    %183 = vector.extract_strided_slice %180 {offsets = [0, 64], sizes = [14, 8], strides = [1, 1]} : vector<14x96xf32> to vector<14x8xf32>
    %cst_76 = arith.constant dense<0.000000e+00> : vector<14x14xf32>
    %184 = tpu.matmul %181, %182, %cst_76 {dimension_numbers = #tpu.dot_dimension_numbers<[1], [1], [0], [0], [0, 0, 1, 0], [], []>} : vector<14x8xf32>, vector<14x8xf32>, vector<14x14xf32> -> vector<14x14xf32>
    %185 = arith.addf %184, %10 : vector<14x14xf32>
    %cst_77 = arith.constant dense<0xFF800000> : vector<14xf32>
    %186 = vector.multi_reduction <maximumf>, %185, %cst_77 [1] : vector<14x14xf32> to vector<14xf32>
    %187 = vector.shape_cast %186 : vector<14xf32> to vector<14x1xf32>
    %188 = vector.broadcast %187 : vector<14x1xf32> to vector<14x14xf32>
    %189 = arith.subf %185, %188 : vector<14x14xf32>
    %190 = math.exp %189 : vector<14x14xf32>
    %cst_78 = arith.constant dense<0.000000e+00> : vector<14xf32>
    %191 = vector.multi_reduction <add>, %190, %cst_78 [1] : vector<14x14xf32> to vector<14xf32>
    %192 = vector.shape_cast %191 : vector<14xf32> to vector<14x1xf32>
    %193 = tpu.reciprocal %192 {approx = true} : vector<14x1xf32> -> vector<14x1xf32>
    %194 = vector.broadcast %193 : vector<14x1xf32> to vector<14x14xf32>
    %195 = arith.mulf %190, %194 : vector<14x14xf32>
    %cst_79 = arith.constant dense<0.000000e+00> : vector<14x8xf32>
    %196 = tpu.matmul %195, %183, %cst_79 {dimension_numbers = #tpu.dot_dimension_numbers<[1], [0], [0], [1], [0, 0, 1, 1], [], []>} : vector<14x14xf32>, vector<14x8xf32>, vector<14x8xf32> -> vector<14x8xf32>
    %197 = vector.extract_strided_slice %180 {offsets = [0, 8], sizes = [14, 8], strides = [1, 1]} : vector<14x96xf32> to vector<14x8xf32>
    %198 = vector.extract_strided_slice %180 {offsets = [0, 40], sizes = [14, 8], strides = [1, 1]} : vector<14x96xf32> to vector<14x8xf32>
    %199 = vector.extract_strided_slice %180 {offsets = [0, 72], sizes = [14, 8], strides = [1, 1]} : vector<14x96xf32> to vector<14x8xf32>
    %cst_80 = arith.constant dense<0.000000e+00> : vector<14x14xf32>
    %200 = tpu.matmul %197, %198, %cst_80 {dimension_numbers = #tpu.dot_dimension_numbers<[1], [1], [0], [0], [0, 0, 1, 0], [], []>} : vector<14x8xf32>, vector<14x8xf32>, vector<14x14xf32> -> vector<14x14xf32>
    %201 = arith.addf %200, %10 : vector<14x14xf32>
    %cst_81 = arith.constant dense<0xFF800000> : vector<14xf32>
    %202 = vector.multi_reduction <maximumf>, %201, %cst_81 [1] : vector<14x14xf32> to vector<14xf32>
    %203 = vector.shape_cast %202 : vector<14xf32> to vector<14x1xf32>
    %204 = vector.broadcast %203 : vector<14x1xf32> to vector<14x14xf32>
    %205 = arith.subf %201, %204 : vector<14x14xf32>
    %206 = math.exp %205 : vector<14x14xf32>
    %cst_82 = arith.constant dense<0.000000e+00> : vector<14xf32>
    %207 = vector.multi_reduction <add>, %206, %cst_82 [1] : vector<14x14xf32> to vector<14xf32>
    %208 = vector.shape_cast %207 : vector<14xf32> to vector<14x1xf32>
    %209 = tpu.reciprocal %208 {approx = true} : vector<14x1xf32> -> vector<14x1xf32>
    %210 = vector.broadcast %209 : vector<14x1xf32> to vector<14x14xf32>
    %211 = arith.mulf %206, %210 : vector<14x14xf32>
    %cst_83 = arith.constant dense<0.000000e+00> : vector<14x8xf32>
    %212 = tpu.matmul %211, %199, %cst_83 {dimension_numbers = #tpu.dot_dimension_numbers<[1], [0], [0], [1], [0, 0, 1, 1], [], []>} : vector<14x14xf32>, vector<14x8xf32>, vector<14x8xf32> -> vector<14x8xf32>
    %213 = vector.extract_strided_slice %180 {offsets = [0, 16], sizes = [14, 8], strides = [1, 1]} : vector<14x96xf32> to vector<14x8xf32>
    %214 = vector.extract_strided_slice %180 {offsets = [0, 48], sizes = [14, 8], strides = [1, 1]} : vector<14x96xf32> to vector<14x8xf32>
    %215 = vector.extract_strided_slice %180 {offsets = [0, 80], sizes = [14, 8], strides = [1, 1]} : vector<14x96xf32> to vector<14x8xf32>
    %cst_84 = arith.constant dense<0.000000e+00> : vector<14x14xf32>
    %216 = tpu.matmul %213, %214, %cst_84 {dimension_numbers = #tpu.dot_dimension_numbers<[1], [1], [0], [0], [0, 0, 1, 0], [], []>} : vector<14x8xf32>, vector<14x8xf32>, vector<14x14xf32> -> vector<14x14xf32>
    %217 = arith.addf %216, %10 : vector<14x14xf32>
    %cst_85 = arith.constant dense<0xFF800000> : vector<14xf32>
    %218 = vector.multi_reduction <maximumf>, %217, %cst_85 [1] : vector<14x14xf32> to vector<14xf32>
    %219 = vector.shape_cast %218 : vector<14xf32> to vector<14x1xf32>
    %220 = vector.broadcast %219 : vector<14x1xf32> to vector<14x14xf32>
    %221 = arith.subf %217, %220 : vector<14x14xf32>
    %222 = math.exp %221 : vector<14x14xf32>
    %cst_86 = arith.constant dense<0.000000e+00> : vector<14xf32>
    %223 = vector.multi_reduction <add>, %222, %cst_86 [1] : vector<14x14xf32> to vector<14xf32>
    %224 = vector.shape_cast %223 : vector<14xf32> to vector<14x1xf32>
    %225 = tpu.reciprocal %224 {approx = true} : vector<14x1xf32> -> vector<14x1xf32>
    %226 = vector.broadcast %225 : vector<14x1xf32> to vector<14x14xf32>
    %227 = arith.mulf %222, %226 : vector<14x14xf32>
    %cst_87 = arith.constant dense<0.000000e+00> : vector<14x8xf32>
    %228 = tpu.matmul %227, %215, %cst_87 {dimension_numbers = #tpu.dot_dimension_numbers<[1], [0], [0], [1], [0, 0, 1, 1], [], []>} : vector<14x14xf32>, vector<14x8xf32>, vector<14x8xf32> -> vector<14x8xf32>
    %229 = vector.extract_strided_slice %180 {offsets = [0, 24], sizes = [14, 8], strides = [1, 1]} : vector<14x96xf32> to vector<14x8xf32>
    %230 = vector.extract_strided_slice %180 {offsets = [0, 56], sizes = [14, 8], strides = [1, 1]} : vector<14x96xf32> to vector<14x8xf32>
    %231 = vector.extract_strided_slice %180 {offsets = [0, 88], sizes = [14, 8], strides = [1, 1]} : vector<14x96xf32> to vector<14x8xf32>
    %cst_88 = arith.constant dense<0.000000e+00> : vector<14x14xf32>
    %232 = tpu.matmul %229, %230, %cst_88 {dimension_numbers = #tpu.dot_dimension_numbers<[1], [1], [0], [0], [0, 0, 1, 0], [], []>} : vector<14x8xf32>, vector<14x8xf32>, vector<14x14xf32> -> vector<14x14xf32>
    %233 = arith.addf %232, %10 : vector<14x14xf32>
    %cst_89 = arith.constant dense<0xFF800000> : vector<14xf32>
    %234 = vector.multi_reduction <maximumf>, %233, %cst_89 [1] : vector<14x14xf32> to vector<14xf32>
    %235 = vector.shape_cast %234 : vector<14xf32> to vector<14x1xf32>
    %236 = vector.broadcast %235 : vector<14x1xf32> to vector<14x14xf32>
    %237 = arith.subf %233, %236 : vector<14x14xf32>
    %238 = math.exp %237 : vector<14x14xf32>
    %cst_90 = arith.constant dense<0.000000e+00> : vector<14xf32>
    %239 = vector.multi_reduction <add>, %238, %cst_90 [1] : vector<14x14xf32> to vector<14xf32>
    %240 = vector.shape_cast %239 : vector<14xf32> to vector<14x1xf32>
    %241 = tpu.reciprocal %240 {approx = true} : vector<14x1xf32> -> vector<14x1xf32>
    %242 = vector.broadcast %241 : vector<14x1xf32> to vector<14x14xf32>
    %243 = arith.mulf %238, %242 : vector<14x14xf32>
    %cst_91 = arith.constant dense<0.000000e+00> : vector<14x8xf32>
    %244 = tpu.matmul %243, %231, %cst_91 {dimension_numbers = #tpu.dot_dimension_numbers<[1], [0], [0], [1], [0, 0, 1, 1], [], []>} : vector<14x14xf32>, vector<14x8xf32>, vector<14x8xf32> -> vector<14x8xf32>
    %245 = tpu.concatenate %196, %212, %228, %244 in 1 : vector<14x8xf32>, vector<14x8xf32>, vector<14x8xf32>, vector<14x8xf32> -> vector<14x32xf32>
    %c1_92 = arith.constant 1 : index
    %c0_93 = arith.constant 0 : index
    %c0_94 = arith.constant 0 : index
    %246 = vector.load %arg7[%c1_92, %c0_93, %c0_94] : memref<4x32x32xf32, #tpu.memory_space<vmem>>, vector<1x32x32xf32>
    %247 = vector.shape_cast %246 : vector<1x32x32xf32> to vector<32x32xf32>
    %cst_95 = arith.constant dense<0.000000e+00> : vector<14x32xf32>
    %248 = tpu.matmul %245, %247, %cst_95 {dimension_numbers = #tpu.dot_dimension_numbers<[1], [0], [0], [1], [0, 0, 1, 1], [], []>} : vector<14x32xf32>, vector<32x32xf32>, vector<14x32xf32> -> vector<14x32xf32>
    %249 = arith.addf %155, %248 : vector<14x32xf32>
    %c1_96 = arith.constant 1 : index
    %c0_97 = arith.constant 0 : index
    %c0_98 = arith.constant 0 : index
    %250 = vector.load %arg8[%c1_96, %c0_97, %c0_98] : memref<4x1x32xf32, #tpu.memory_space<vmem>>, vector<1x1x32xf32>
    %251 = vector.shape_cast %250 : vector<1x1x32xf32> to vector<1x32xf32>
    %252 = vector.broadcast %251 : vector<1x32xf32> to vector<14x32xf32>
    %253 = arith.addf %249, %252 : vector<14x32xf32>
    %cst_99 = arith.constant dense<0.000000e+00> : vector<14xf32>
    %254 = vector.multi_reduction <add>, %253, %cst_99 [1] : vector<14x32xf32> to vector<14xf32>
    %255 = vector.shape_cast %254 : vector<14xf32> to vector<14x1xf32>
    %cst_100 = arith.constant 3.200000e+01 : f32
    %256 = vector.broadcast %cst_100 : f32 to vector<14x1xf32>
    %257 = arith.divf %255, %256 : vector<14x1xf32>
    %258 = vector.broadcast %257 : vector<14x1xf32> to vector<14x32xf32>
    %259 = arith.subf %253, %258 : vector<14x32xf32>
    %260 = arith.mulf %259, %259 : vector<14x32xf32>
    %cst_101 = arith.constant dense<0.000000e+00> : vector<14xf32>
    %261 = vector.multi_reduction <add>, %260, %cst_101 [1] : vector<14x32xf32> to vector<14xf32>
    %262 = vector.shape_cast %261 : vector<14xf32> to vector<14x1xf32>
    %cst_102 = arith.constant 3.200000e+01 : f32
    %263 = vector.broadcast %cst_102 : f32 to vector<14x1xf32>
    %264 = arith.divf %262, %263 : vector<14x1xf32>
    %265 = vector.broadcast %257 : vector<14x1xf32> to vector<14x32xf32>
    %266 = arith.subf %253, %265 : vector<14x32xf32>
    %cst_103 = arith.constant 9.99999974E-6 : f32
    %267 = vector.broadcast %cst_103 : f32 to vector<14x1xf32>
    %268 = arith.addf %264, %267 : vector<14x1xf32>
    %269 = math.rsqrt %268 : vector<14x1xf32>
    %270 = vector.broadcast %269 : vector<14x1xf32> to vector<14x32xf32>
    %271 = arith.mulf %266, %270 : vector<14x32xf32>
    %c1_104 = arith.constant 1 : index
    %c0_105 = arith.constant 0 : index
    %c0_106 = arith.constant 0 : index
    %272 = vector.load %arg9[%c1_104, %c0_105, %c0_106] : memref<4x32x128xf32, #tpu.memory_space<vmem>>, vector<1x32x128xf32>
    %273 = vector.shape_cast %272 : vector<1x32x128xf32> to vector<32x128xf32>
    %cst_107 = arith.constant dense<0.000000e+00> : vector<14x128xf32>
    %274 = tpu.matmul %271, %273, %cst_107 {dimension_numbers = #tpu.dot_dimension_numbers<[1], [0], [0], [1], [0, 0, 1, 1], [], []>} : vector<14x32xf32>, vector<32x128xf32>, vector<14x128xf32> -> vector<14x128xf32>
    %c1_108 = arith.constant 1 : index
    %c0_109 = arith.constant 0 : index
    %c0_110 = arith.constant 0 : index
    %275 = vector.load %arg10[%c1_108, %c0_109, %c0_110] : memref<4x1x128xf32, #tpu.memory_space<vmem>>, vector<1x1x128xf32>
    %276 = vector.shape_cast %275 : vector<1x1x128xf32> to vector<1x128xf32>
    %277 = vector.broadcast %276 : vector<1x128xf32> to vector<14x128xf32>
    %278 = arith.addf %274, %277 : vector<14x128xf32>
    %cst_111 = arith.constant 5.000000e-01 : f32
    %279 = vector.broadcast %cst_111 : f32 to vector<14x128xf32>
    %280 = arith.mulf %279, %278 : vector<14x128xf32>
    %cst_112 = arith.constant 0.636619746 : f32
    %281 = math.sqrt %cst_112 : f32
    %cst_113 = arith.constant 4.471500e-02 : f32
    %282 = vector.broadcast %cst_113 : f32 to vector<14x128xf32>
    %283 = arith.mulf %282, %278 : vector<14x128xf32>
    %284 = arith.mulf %283, %278 : vector<14x128xf32>
    %285 = arith.mulf %284, %278 : vector<14x128xf32>
    %286 = arith.addf %278, %285 : vector<14x128xf32>
    %287 = vector.broadcast %281 : f32 to vector<14x128xf32>
    %288 = arith.mulf %287, %286 : vector<14x128xf32>
    %289 = math.tanh %288 : vector<14x128xf32>
    %cst_114 = arith.constant 1.000000e+00 : f32
    %290 = vector.broadcast %cst_114 : f32 to vector<14x128xf32>
    %291 = arith.addf %290, %289 : vector<14x128xf32>
    %292 = arith.mulf %280, %291 : vector<14x128xf32>
    %c1_115 = arith.constant 1 : index
    %c0_116 = arith.constant 0 : index
    %c0_117 = arith.constant 0 : index
    %293 = vector.load %arg11[%c1_115, %c0_116, %c0_117] : memref<4x128x32xf32, #tpu.memory_space<vmem>>, vector<1x128x32xf32>
    %294 = vector.shape_cast %293 : vector<1x128x32xf32> to vector<128x32xf32>
    %cst_118 = arith.constant dense<0.000000e+00> : vector<14x32xf32>
    %295 = tpu.matmul %292, %294, %cst_118 {dimension_numbers = #tpu.dot_dimension_numbers<[1], [0], [0], [1], [0, 0, 1, 1], [], []>} : vector<14x128xf32>, vector<128x32xf32>, vector<14x32xf32> -> vector<14x32xf32>
    %296 = arith.addf %253, %295 : vector<14x32xf32>
    %c1_119 = arith.constant 1 : index
    %c0_120 = arith.constant 0 : index
    %c0_121 = arith.constant 0 : index
    %297 = vector.load %arg12[%c1_119, %c0_120, %c0_121] : memref<4x1x32xf32, #tpu.memory_space<vmem>>, vector<1x1x32xf32>
    %298 = vector.shape_cast %297 : vector<1x1x32xf32> to vector<1x32xf32>
    %299 = vector.broadcast %298 : vector<1x32xf32> to vector<14x32xf32>
    %300 = arith.addf %296, %299 : vector<14x32xf32>
    %cst_122 = arith.constant dense<0.000000e+00> : vector<14xf32>
    %301 = vector.multi_reduction <add>, %300, %cst_122 [1] : vector<14x32xf32> to vector<14xf32>
    %302 = vector.shape_cast %301 : vector<14xf32> to vector<14x1xf32>
    %cst_123 = arith.constant 3.200000e+01 : f32
    %303 = vector.broadcast %cst_123 : f32 to vector<14x1xf32>
    %304 = arith.divf %302, %303 : vector<14x1xf32>
    %305 = vector.broadcast %304 : vector<14x1xf32> to vector<14x32xf32>
    %306 = arith.subf %300, %305 : vector<14x32xf32>
    %307 = arith.mulf %306, %306 : vector<14x32xf32>
    %cst_124 = arith.constant dense<0.000000e+00> : vector<14xf32>
    %308 = vector.multi_reduction <add>, %307, %cst_124 [1] : vector<14x32xf32> to vector<14xf32>
    %309 = vector.shape_cast %308 : vector<14xf32> to vector<14x1xf32>
    %cst_125 = arith.constant 3.200000e+01 : f32
    %310 = vector.broadcast %cst_125 : f32 to vector<14x1xf32>
    %311 = arith.divf %309, %310 : vector<14x1xf32>
    %312 = vector.broadcast %304 : vector<14x1xf32> to vector<14x32xf32>
    %313 = arith.subf %300, %312 : vector<14x32xf32>
    %cst_126 = arith.constant 9.99999974E-6 : f32
    %314 = vector.broadcast %cst_126 : f32 to vector<14x1xf32>
    %315 = arith.addf %311, %314 : vector<14x1xf32>
    %316 = math.rsqrt %315 : vector<14x1xf32>
    %317 = vector.broadcast %316 : vector<14x1xf32> to vector<14x32xf32>
    %318 = arith.mulf %313, %317 : vector<14x32xf32>
    %c2 = arith.constant 2 : index
    %c0_127 = arith.constant 0 : index
    %c0_128 = arith.constant 0 : index
    %319 = vector.load %arg5[%c2, %c0_127, %c0_128] : memref<4x32x96xf32, #tpu.memory_space<vmem>>, vector<1x32x96xf32>
    %320 = vector.shape_cast %319 : vector<1x32x96xf32> to vector<32x96xf32>
    %cst_129 = arith.constant dense<0.000000e+00> : vector<14x96xf32>
    %321 = tpu.matmul %318, %320, %cst_129 {dimension_numbers = #tpu.dot_dimension_numbers<[1], [0], [0], [1], [0, 0, 1, 1], [], []>} : vector<14x32xf32>, vector<32x96xf32>, vector<14x96xf32> -> vector<14x96xf32>
    %c2_130 = arith.constant 2 : index
    %c0_131 = arith.constant 0 : index
    %c0_132 = arith.constant 0 : index
    %322 = vector.load %arg6[%c2_130, %c0_131, %c0_132] : memref<4x1x96xf32, #tpu.memory_space<vmem>>, vector<1x1x96xf32>
    %323 = vector.shape_cast %322 : vector<1x1x96xf32> to vector<1x96xf32>
    %324 = vector.broadcast %323 : vector<1x96xf32> to vector<14x96xf32>
    %325 = arith.addf %321, %324 : vector<14x96xf32>
    %326 = vector.extract_strided_slice %325 {offsets = [0, 0], sizes = [14, 8], strides = [1, 1]} : vector<14x96xf32> to vector<14x8xf32>
    %327 = vector.extract_strided_slice %325 {offsets = [0, 32], sizes = [14, 8], strides = [1, 1]} : vector<14x96xf32> to vector<14x8xf32>
    %328 = vector.extract_strided_slice %325 {offsets = [0, 64], sizes = [14, 8], strides = [1, 1]} : vector<14x96xf32> to vector<14x8xf32>
    %cst_133 = arith.constant dense<0.000000e+00> : vector<14x14xf32>
    %329 = tpu.matmul %326, %327, %cst_133 {dimension_numbers = #tpu.dot_dimension_numbers<[1], [1], [0], [0], [0, 0, 1, 0], [], []>} : vector<14x8xf32>, vector<14x8xf32>, vector<14x14xf32> -> vector<14x14xf32>
    %330 = arith.addf %329, %10 : vector<14x14xf32>
    %cst_134 = arith.constant dense<0xFF800000> : vector<14xf32>
    %331 = vector.multi_reduction <maximumf>, %330, %cst_134 [1] : vector<14x14xf32> to vector<14xf32>
    %332 = vector.shape_cast %331 : vector<14xf32> to vector<14x1xf32>
    %333 = vector.broadcast %332 : vector<14x1xf32> to vector<14x14xf32>
    %334 = arith.subf %330, %333 : vector<14x14xf32>
    %335 = math.exp %334 : vector<14x14xf32>
    %cst_135 = arith.constant dense<0.000000e+00> : vector<14xf32>
    %336 = vector.multi_reduction <add>, %335, %cst_135 [1] : vector<14x14xf32> to vector<14xf32>
    %337 = vector.shape_cast %336 : vector<14xf32> to vector<14x1xf32>
    %338 = tpu.reciprocal %337 {approx = true} : vector<14x1xf32> -> vector<14x1xf32>
    %339 = vector.broadcast %338 : vector<14x1xf32> to vector<14x14xf32>
    %340 = arith.mulf %335, %339 : vector<14x14xf32>
    %cst_136 = arith.constant dense<0.000000e+00> : vector<14x8xf32>
    %341 = tpu.matmul %340, %328, %cst_136 {dimension_numbers = #tpu.dot_dimension_numbers<[1], [0], [0], [1], [0, 0, 1, 1], [], []>} : vector<14x14xf32>, vector<14x8xf32>, vector<14x8xf32> -> vector<14x8xf32>
    %342 = vector.extract_strided_slice %325 {offsets = [0, 8], sizes = [14, 8], strides = [1, 1]} : vector<14x96xf32> to vector<14x8xf32>
    %343 = vector.extract_strided_slice %325 {offsets = [0, 40], sizes = [14, 8], strides = [1, 1]} : vector<14x96xf32> to vector<14x8xf32>
    %344 = vector.extract_strided_slice %325 {offsets = [0, 72], sizes = [14, 8], strides = [1, 1]} : vector<14x96xf32> to vector<14x8xf32>
    %cst_137 = arith.constant dense<0.000000e+00> : vector<14x14xf32>
    %345 = tpu.matmul %342, %343, %cst_137 {dimension_numbers = #tpu.dot_dimension_numbers<[1], [1], [0], [0], [0, 0, 1, 0], [], []>} : vector<14x8xf32>, vector<14x8xf32>, vector<14x14xf32> -> vector<14x14xf32>
    %346 = arith.addf %345, %10 : vector<14x14xf32>
    %cst_138 = arith.constant dense<0xFF800000> : vector<14xf32>
    %347 = vector.multi_reduction <maximumf>, %346, %cst_138 [1] : vector<14x14xf32> to vector<14xf32>
    %348 = vector.shape_cast %347 : vector<14xf32> to vector<14x1xf32>
    %349 = vector.broadcast %348 : vector<14x1xf32> to vector<14x14xf32>
    %350 = arith.subf %346, %349 : vector<14x14xf32>
    %351 = math.exp %350 : vector<14x14xf32>
    %cst_139 = arith.constant dense<0.000000e+00> : vector<14xf32>
    %352 = vector.multi_reduction <add>, %351, %cst_139 [1] : vector<14x14xf32> to vector<14xf32>
    %353 = vector.shape_cast %352 : vector<14xf32> to vector<14x1xf32>
    %354 = tpu.reciprocal %353 {approx = true} : vector<14x1xf32> -> vector<14x1xf32>
    %355 = vector.broadcast %354 : vector<14x1xf32> to vector<14x14xf32>
    %356 = arith.mulf %351, %355 : vector<14x14xf32>
    %cst_140 = arith.constant dense<0.000000e+00> : vector<14x8xf32>
    %357 = tpu.matmul %356, %344, %cst_140 {dimension_numbers = #tpu.dot_dimension_numbers<[1], [0], [0], [1], [0, 0, 1, 1], [], []>} : vector<14x14xf32>, vector<14x8xf32>, vector<14x8xf32> -> vector<14x8xf32>
    %358 = vector.extract_strided_slice %325 {offsets = [0, 16], sizes = [14, 8], strides = [1, 1]} : vector<14x96xf32> to vector<14x8xf32>
    %359 = vector.extract_strided_slice %325 {offsets = [0, 48], sizes = [14, 8], strides = [1, 1]} : vector<14x96xf32> to vector<14x8xf32>
    %360 = vector.extract_strided_slice %325 {offsets = [0, 80], sizes = [14, 8], strides = [1, 1]} : vector<14x96xf32> to vector<14x8xf32>
    %cst_141 = arith.constant dense<0.000000e+00> : vector<14x14xf32>
    %361 = tpu.matmul %358, %359, %cst_141 {dimension_numbers = #tpu.dot_dimension_numbers<[1], [1], [0], [0], [0, 0, 1, 0], [], []>} : vector<14x8xf32>, vector<14x8xf32>, vector<14x14xf32> -> vector<14x14xf32>
    %362 = arith.addf %361, %10 : vector<14x14xf32>
    %cst_142 = arith.constant dense<0xFF800000> : vector<14xf32>
    %363 = vector.multi_reduction <maximumf>, %362, %cst_142 [1] : vector<14x14xf32> to vector<14xf32>
    %364 = vector.shape_cast %363 : vector<14xf32> to vector<14x1xf32>
    %365 = vector.broadcast %364 : vector<14x1xf32> to vector<14x14xf32>
    %366 = arith.subf %362, %365 : vector<14x14xf32>
    %367 = math.exp %366 : vector<14x14xf32>
    %cst_143 = arith.constant dense<0.000000e+00> : vector<14xf32>
    %368 = vector.multi_reduction <add>, %367, %cst_143 [1] : vector<14x14xf32> to vector<14xf32>
    %369 = vector.shape_cast %368 : vector<14xf32> to vector<14x1xf32>
    %370 = tpu.reciprocal %369 {approx = true} : vector<14x1xf32> -> vector<14x1xf32>
    %371 = vector.broadcast %370 : vector<14x1xf32> to vector<14x14xf32>
    %372 = arith.mulf %367, %371 : vector<14x14xf32>
    %cst_144 = arith.constant dense<0.000000e+00> : vector<14x8xf32>
    %373 = tpu.matmul %372, %360, %cst_144 {dimension_numbers = #tpu.dot_dimension_numbers<[1], [0], [0], [1], [0, 0, 1, 1], [], []>} : vector<14x14xf32>, vector<14x8xf32>, vector<14x8xf32> -> vector<14x8xf32>
    %374 = vector.extract_strided_slice %325 {offsets = [0, 24], sizes = [14, 8], strides = [1, 1]} : vector<14x96xf32> to vector<14x8xf32>
    %375 = vector.extract_strided_slice %325 {offsets = [0, 56], sizes = [14, 8], strides = [1, 1]} : vector<14x96xf32> to vector<14x8xf32>
    %376 = vector.extract_strided_slice %325 {offsets = [0, 88], sizes = [14, 8], strides = [1, 1]} : vector<14x96xf32> to vector<14x8xf32>
    %cst_145 = arith.constant dense<0.000000e+00> : vector<14x14xf32>
    %377 = tpu.matmul %374, %375, %cst_145 {dimension_numbers = #tpu.dot_dimension_numbers<[1], [1], [0], [0], [0, 0, 1, 0], [], []>} : vector<14x8xf32>, vector<14x8xf32>, vector<14x14xf32> -> vector<14x14xf32>
    %378 = arith.addf %377, %10 : vector<14x14xf32>
    %cst_146 = arith.constant dense<0xFF800000> : vector<14xf32>
    %379 = vector.multi_reduction <maximumf>, %378, %cst_146 [1] : vector<14x14xf32> to vector<14xf32>
    %380 = vector.shape_cast %379 : vector<14xf32> to vector<14x1xf32>
    %381 = vector.broadcast %380 : vector<14x1xf32> to vector<14x14xf32>
    %382 = arith.subf %378, %381 : vector<14x14xf32>
    %383 = math.exp %382 : vector<14x14xf32>
    %cst_147 = arith.constant dense<0.000000e+00> : vector<14xf32>
    %384 = vector.multi_reduction <add>, %383, %cst_147 [1] : vector<14x14xf32> to vector<14xf32>
    %385 = vector.shape_cast %384 : vector<14xf32> to vector<14x1xf32>
    %386 = tpu.reciprocal %385 {approx = true} : vector<14x1xf32> -> vector<14x1xf32>
    %387 = vector.broadcast %386 : vector<14x1xf32> to vector<14x14xf32>
    %388 = arith.mulf %383, %387 : vector<14x14xf32>
    %cst_148 = arith.constant dense<0.000000e+00> : vector<14x8xf32>
    %389 = tpu.matmul %388, %376, %cst_148 {dimension_numbers = #tpu.dot_dimension_numbers<[1], [0], [0], [1], [0, 0, 1, 1], [], []>} : vector<14x14xf32>, vector<14x8xf32>, vector<14x8xf32> -> vector<14x8xf32>
    %390 = tpu.concatenate %341, %357, %373, %389 in 1 : vector<14x8xf32>, vector<14x8xf32>, vector<14x8xf32>, vector<14x8xf32> -> vector<14x32xf32>
    %c2_149 = arith.constant 2 : index
    %c0_150 = arith.constant 0 : index
    %c0_151 = arith.constant 0 : index
    %391 = vector.load %arg7[%c2_149, %c0_150, %c0_151] : memref<4x32x32xf32, #tpu.memory_space<vmem>>, vector<1x32x32xf32>
    %392 = vector.shape_cast %391 : vector<1x32x32xf32> to vector<32x32xf32>
    %cst_152 = arith.constant dense<0.000000e+00> : vector<14x32xf32>
    %393 = tpu.matmul %390, %392, %cst_152 {dimension_numbers = #tpu.dot_dimension_numbers<[1], [0], [0], [1], [0, 0, 1, 1], [], []>} : vector<14x32xf32>, vector<32x32xf32>, vector<14x32xf32> -> vector<14x32xf32>
    %394 = arith.addf %300, %393 : vector<14x32xf32>
    %c2_153 = arith.constant 2 : index
    %c0_154 = arith.constant 0 : index
    %c0_155 = arith.constant 0 : index
    %395 = vector.load %arg8[%c2_153, %c0_154, %c0_155] : memref<4x1x32xf32, #tpu.memory_space<vmem>>, vector<1x1x32xf32>
    %396 = vector.shape_cast %395 : vector<1x1x32xf32> to vector<1x32xf32>
    %397 = vector.broadcast %396 : vector<1x32xf32> to vector<14x32xf32>
    %398 = arith.addf %394, %397 : vector<14x32xf32>
    %cst_156 = arith.constant dense<0.000000e+00> : vector<14xf32>
    %399 = vector.multi_reduction <add>, %398, %cst_156 [1] : vector<14x32xf32> to vector<14xf32>
    %400 = vector.shape_cast %399 : vector<14xf32> to vector<14x1xf32>
    %cst_157 = arith.constant 3.200000e+01 : f32
    %401 = vector.broadcast %cst_157 : f32 to vector<14x1xf32>
    %402 = arith.divf %400, %401 : vector<14x1xf32>
    %403 = vector.broadcast %402 : vector<14x1xf32> to vector<14x32xf32>
    %404 = arith.subf %398, %403 : vector<14x32xf32>
    %405 = arith.mulf %404, %404 : vector<14x32xf32>
    %cst_158 = arith.constant dense<0.000000e+00> : vector<14xf32>
    %406 = vector.multi_reduction <add>, %405, %cst_158 [1] : vector<14x32xf32> to vector<14xf32>
    %407 = vector.shape_cast %406 : vector<14xf32> to vector<14x1xf32>
    %cst_159 = arith.constant 3.200000e+01 : f32
    %408 = vector.broadcast %cst_159 : f32 to vector<14x1xf32>
    %409 = arith.divf %407, %408 : vector<14x1xf32>
    %410 = vector.broadcast %402 : vector<14x1xf32> to vector<14x32xf32>
    %411 = arith.subf %398, %410 : vector<14x32xf32>
    %cst_160 = arith.constant 9.99999974E-6 : f32
    %412 = vector.broadcast %cst_160 : f32 to vector<14x1xf32>
    %413 = arith.addf %409, %412 : vector<14x1xf32>
    %414 = math.rsqrt %413 : vector<14x1xf32>
    %415 = vector.broadcast %414 : vector<14x1xf32> to vector<14x32xf32>
    %416 = arith.mulf %411, %415 : vector<14x32xf32>
    %c2_161 = arith.constant 2 : index
    %c0_162 = arith.constant 0 : index
    %c0_163 = arith.constant 0 : index
    %417 = vector.load %arg9[%c2_161, %c0_162, %c0_163] : memref<4x32x128xf32, #tpu.memory_space<vmem>>, vector<1x32x128xf32>
    %418 = vector.shape_cast %417 : vector<1x32x128xf32> to vector<32x128xf32>
    %cst_164 = arith.constant dense<0.000000e+00> : vector<14x128xf32>
    %419 = tpu.matmul %416, %418, %cst_164 {dimension_numbers = #tpu.dot_dimension_numbers<[1], [0], [0], [1], [0, 0, 1, 1], [], []>} : vector<14x32xf32>, vector<32x128xf32>, vector<14x128xf32> -> vector<14x128xf32>
    %c2_165 = arith.constant 2 : index
    %c0_166 = arith.constant 0 : index
    %c0_167 = arith.constant 0 : index
    %420 = vector.load %arg10[%c2_165, %c0_166, %c0_167] : memref<4x1x128xf32, #tpu.memory_space<vmem>>, vector<1x1x128xf32>
    %421 = vector.shape_cast %420 : vector<1x1x128xf32> to vector<1x128xf32>
    %422 = vector.broadcast %421 : vector<1x128xf32> to vector<14x128xf32>
    %423 = arith.addf %419, %422 : vector<14x128xf32>
    %cst_168 = arith.constant 5.000000e-01 : f32
    %424 = vector.broadcast %cst_168 : f32 to vector<14x128xf32>
    %425 = arith.mulf %424, %423 : vector<14x128xf32>
    %cst_169 = arith.constant 0.636619746 : f32
    %426 = math.sqrt %cst_169 : f32
    %cst_170 = arith.constant 4.471500e-02 : f32
    %427 = vector.broadcast %cst_170 : f32 to vector<14x128xf32>
    %428 = arith.mulf %427, %423 : vector<14x128xf32>
    %429 = arith.mulf %428, %423 : vector<14x128xf32>
    %430 = arith.mulf %429, %423 : vector<14x128xf32>
    %431 = arith.addf %423, %430 : vector<14x128xf32>
    %432 = vector.broadcast %426 : f32 to vector<14x128xf32>
    %433 = arith.mulf %432, %431 : vector<14x128xf32>
    %434 = math.tanh %433 : vector<14x128xf32>
    %cst_171 = arith.constant 1.000000e+00 : f32
    %435 = vector.broadcast %cst_171 : f32 to vector<14x128xf32>
    %436 = arith.addf %435, %434 : vector<14x128xf32>
    %437 = arith.mulf %425, %436 : vector<14x128xf32>
    %c2_172 = arith.constant 2 : index
    %c0_173 = arith.constant 0 : index
    %c0_174 = arith.constant 0 : index
    %438 = vector.load %arg11[%c2_172, %c0_173, %c0_174] : memref<4x128x32xf32, #tpu.memory_space<vmem>>, vector<1x128x32xf32>
    %439 = vector.shape_cast %438 : vector<1x128x32xf32> to vector<128x32xf32>
    %cst_175 = arith.constant dense<0.000000e+00> : vector<14x32xf32>
    %440 = tpu.matmul %437, %439, %cst_175 {dimension_numbers = #tpu.dot_dimension_numbers<[1], [0], [0], [1], [0, 0, 1, 1], [], []>} : vector<14x128xf32>, vector<128x32xf32>, vector<14x32xf32> -> vector<14x32xf32>
    %441 = arith.addf %398, %440 : vector<14x32xf32>
    %c2_176 = arith.constant 2 : index
    %c0_177 = arith.constant 0 : index
    %c0_178 = arith.constant 0 : index
    %442 = vector.load %arg12[%c2_176, %c0_177, %c0_178] : memref<4x1x32xf32, #tpu.memory_space<vmem>>, vector<1x1x32xf32>
    %443 = vector.shape_cast %442 : vector<1x1x32xf32> to vector<1x32xf32>
    %444 = vector.broadcast %443 : vector<1x32xf32> to vector<14x32xf32>
    %445 = arith.addf %441, %444 : vector<14x32xf32>
    %cst_179 = arith.constant dense<0.000000e+00> : vector<14xf32>
    %446 = vector.multi_reduction <add>, %445, %cst_179 [1] : vector<14x32xf32> to vector<14xf32>
    %447 = vector.shape_cast %446 : vector<14xf32> to vector<14x1xf32>
    %cst_180 = arith.constant 3.200000e+01 : f32
    %448 = vector.broadcast %cst_180 : f32 to vector<14x1xf32>
    %449 = arith.divf %447, %448 : vector<14x1xf32>
    %450 = vector.broadcast %449 : vector<14x1xf32> to vector<14x32xf32>
    %451 = arith.subf %445, %450 : vector<14x32xf32>
    %452 = arith.mulf %451, %451 : vector<14x32xf32>
    %cst_181 = arith.constant dense<0.000000e+00> : vector<14xf32>
    %453 = vector.multi_reduction <add>, %452, %cst_181 [1] : vector<14x32xf32> to vector<14xf32>
    %454 = vector.shape_cast %453 : vector<14xf32> to vector<14x1xf32>
    %cst_182 = arith.constant 3.200000e+01 : f32
    %455 = vector.broadcast %cst_182 : f32 to vector<14x1xf32>
    %456 = arith.divf %454, %455 : vector<14x1xf32>
    %457 = vector.broadcast %449 : vector<14x1xf32> to vector<14x32xf32>
    %458 = arith.subf %445, %457 : vector<14x32xf32>
    %cst_183 = arith.constant 9.99999974E-6 : f32
    %459 = vector.broadcast %cst_183 : f32 to vector<14x1xf32>
    %460 = arith.addf %456, %459 : vector<14x1xf32>
    %461 = math.rsqrt %460 : vector<14x1xf32>
    %462 = vector.broadcast %461 : vector<14x1xf32> to vector<14x32xf32>
    %463 = arith.mulf %458, %462 : vector<14x32xf32>
    %c3 = arith.constant 3 : index
    %c0_184 = arith.constant 0 : index
    %c0_185 = arith.constant 0 : index
    %464 = vector.load %arg5[%c3, %c0_184, %c0_185] : memref<4x32x96xf32, #tpu.memory_space<vmem>>, vector<1x32x96xf32>
    %465 = vector.shape_cast %464 : vector<1x32x96xf32> to vector<32x96xf32>
    %cst_186 = arith.constant dense<0.000000e+00> : vector<14x96xf32>
    %466 = tpu.matmul %463, %465, %cst_186 {dimension_numbers = #tpu.dot_dimension_numbers<[1], [0], [0], [1], [0, 0, 1, 1], [], []>} : vector<14x32xf32>, vector<32x96xf32>, vector<14x96xf32> -> vector<14x96xf32>
    %c3_187 = arith.constant 3 : index
    %c0_188 = arith.constant 0 : index
    %c0_189 = arith.constant 0 : index
    %467 = vector.load %arg6[%c3_187, %c0_188, %c0_189] : memref<4x1x96xf32, #tpu.memory_space<vmem>>, vector<1x1x96xf32>
    %468 = vector.shape_cast %467 : vector<1x1x96xf32> to vector<1x96xf32>
    %469 = vector.broadcast %468 : vector<1x96xf32> to vector<14x96xf32>
    %470 = arith.addf %466, %469 : vector<14x96xf32>
    %471 = vector.extract_strided_slice %470 {offsets = [0, 0], sizes = [14, 8], strides = [1, 1]} : vector<14x96xf32> to vector<14x8xf32>
    %472 = vector.extract_strided_slice %470 {offsets = [0, 32], sizes = [14, 8], strides = [1, 1]} : vector<14x96xf32> to vector<14x8xf32>
    %473 = vector.extract_strided_slice %470 {offsets = [0, 64], sizes = [14, 8], strides = [1, 1]} : vector<14x96xf32> to vector<14x8xf32>
    %cst_190 = arith.constant dense<0.000000e+00> : vector<14x14xf32>
    %474 = tpu.matmul %471, %472, %cst_190 {dimension_numbers = #tpu.dot_dimension_numbers<[1], [1], [0], [0], [0, 0, 1, 0], [], []>} : vector<14x8xf32>, vector<14x8xf32>, vector<14x14xf32> -> vector<14x14xf32>
    %475 = arith.addf %474, %10 : vector<14x14xf32>
    %cst_191 = arith.constant dense<0xFF800000> : vector<14xf32>
    %476 = vector.multi_reduction <maximumf>, %475, %cst_191 [1] : vector<14x14xf32> to vector<14xf32>
    %477 = vector.shape_cast %476 : vector<14xf32> to vector<14x1xf32>
    %478 = vector.broadcast %477 : vector<14x1xf32> to vector<14x14xf32>
    %479 = arith.subf %475, %478 : vector<14x14xf32>
    %480 = math.exp %479 : vector<14x14xf32>
    %cst_192 = arith.constant dense<0.000000e+00> : vector<14xf32>
    %481 = vector.multi_reduction <add>, %480, %cst_192 [1] : vector<14x14xf32> to vector<14xf32>
    %482 = vector.shape_cast %481 : vector<14xf32> to vector<14x1xf32>
    %483 = tpu.reciprocal %482 {approx = true} : vector<14x1xf32> -> vector<14x1xf32>
    %484 = vector.broadcast %483 : vector<14x1xf32> to vector<14x14xf32>
    %485 = arith.mulf %480, %484 : vector<14x14xf32>
    %cst_193 = arith.constant dense<0.000000e+00> : vector<14x8xf32>
    %486 = tpu.matmul %485, %473, %cst_193 {dimension_numbers = #tpu.dot_dimension_numbers<[1], [0], [0], [1], [0, 0, 1, 1], [], []>} : vector<14x14xf32>, vector<14x8xf32>, vector<14x8xf32> -> vector<14x8xf32>
    %487 = vector.extract_strided_slice %470 {offsets = [0, 8], sizes = [14, 8], strides = [1, 1]} : vector<14x96xf32> to vector<14x8xf32>
    %488 = vector.extract_strided_slice %470 {offsets = [0, 40], sizes = [14, 8], strides = [1, 1]} : vector<14x96xf32> to vector<14x8xf32>
    %489 = vector.extract_strided_slice %470 {offsets = [0, 72], sizes = [14, 8], strides = [1, 1]} : vector<14x96xf32> to vector<14x8xf32>
    %cst_194 = arith.constant dense<0.000000e+00> : vector<14x14xf32>
    %490 = tpu.matmul %487, %488, %cst_194 {dimension_numbers = #tpu.dot_dimension_numbers<[1], [1], [0], [0], [0, 0, 1, 0], [], []>} : vector<14x8xf32>, vector<14x8xf32>, vector<14x14xf32> -> vector<14x14xf32>
    %491 = arith.addf %490, %10 : vector<14x14xf32>
    %cst_195 = arith.constant dense<0xFF800000> : vector<14xf32>
    %492 = vector.multi_reduction <maximumf>, %491, %cst_195 [1] : vector<14x14xf32> to vector<14xf32>
    %493 = vector.shape_cast %492 : vector<14xf32> to vector<14x1xf32>
    %494 = vector.broadcast %493 : vector<14x1xf32> to vector<14x14xf32>
    %495 = arith.subf %491, %494 : vector<14x14xf32>
    %496 = math.exp %495 : vector<14x14xf32>
    %cst_196 = arith.constant dense<0.000000e+00> : vector<14xf32>
    %497 = vector.multi_reduction <add>, %496, %cst_196 [1] : vector<14x14xf32> to vector<14xf32>
    %498 = vector.shape_cast %497 : vector<14xf32> to vector<14x1xf32>
    %499 = tpu.reciprocal %498 {approx = true} : vector<14x1xf32> -> vector<14x1xf32>
    %500 = vector.broadcast %499 : vector<14x1xf32> to vector<14x14xf32>
    %501 = arith.mulf %496, %500 : vector<14x14xf32>
    %cst_197 = arith.constant dense<0.000000e+00> : vector<14x8xf32>
    %502 = tpu.matmul %501, %489, %cst_197 {dimension_numbers = #tpu.dot_dimension_numbers<[1], [0], [0], [1], [0, 0, 1, 1], [], []>} : vector<14x14xf32>, vector<14x8xf32>, vector<14x8xf32> -> vector<14x8xf32>
    %503 = vector.extract_strided_slice %470 {offsets = [0, 16], sizes = [14, 8], strides = [1, 1]} : vector<14x96xf32> to vector<14x8xf32>
    %504 = vector.extract_strided_slice %470 {offsets = [0, 48], sizes = [14, 8], strides = [1, 1]} : vector<14x96xf32> to vector<14x8xf32>
    %505 = vector.extract_strided_slice %470 {offsets = [0, 80], sizes = [14, 8], strides = [1, 1]} : vector<14x96xf32> to vector<14x8xf32>
    %cst_198 = arith.constant dense<0.000000e+00> : vector<14x14xf32>
    %506 = tpu.matmul %503, %504, %cst_198 {dimension_numbers = #tpu.dot_dimension_numbers<[1], [1], [0], [0], [0, 0, 1, 0], [], []>} : vector<14x8xf32>, vector<14x8xf32>, vector<14x14xf32> -> vector<14x14xf32>
    %507 = arith.addf %506, %10 : vector<14x14xf32>
    %cst_199 = arith.constant dense<0xFF800000> : vector<14xf32>
    %508 = vector.multi_reduction <maximumf>, %507, %cst_199 [1] : vector<14x14xf32> to vector<14xf32>
    %509 = vector.shape_cast %508 : vector<14xf32> to vector<14x1xf32>
    %510 = vector.broadcast %509 : vector<14x1xf32> to vector<14x14xf32>
    %511 = arith.subf %507, %510 : vector<14x14xf32>
    %512 = math.exp %511 : vector<14x14xf32>
    %cst_200 = arith.constant dense<0.000000e+00> : vector<14xf32>
    %513 = vector.multi_reduction <add>, %512, %cst_200 [1] : vector<14x14xf32> to vector<14xf32>
    %514 = vector.shape_cast %513 : vector<14xf32> to vector<14x1xf32>
    %515 = tpu.reciprocal %514 {approx = true} : vector<14x1xf32> -> vector<14x1xf32>
    %516 = vector.broadcast %515 : vector<14x1xf32> to vector<14x14xf32>
    %517 = arith.mulf %512, %516 : vector<14x14xf32>
    %cst_201 = arith.constant dense<0.000000e+00> : vector<14x8xf32>
    %518 = tpu.matmul %517, %505, %cst_201 {dimension_numbers = #tpu.dot_dimension_numbers<[1], [0], [0], [1], [0, 0, 1, 1], [], []>} : vector<14x14xf32>, vector<14x8xf32>, vector<14x8xf32> -> vector<14x8xf32>
    %519 = vector.extract_strided_slice %470 {offsets = [0, 24], sizes = [14, 8], strides = [1, 1]} : vector<14x96xf32> to vector<14x8xf32>
    %520 = vector.extract_strided_slice %470 {offsets = [0, 56], sizes = [14, 8], strides = [1, 1]} : vector<14x96xf32> to vector<14x8xf32>
    %521 = vector.extract_strided_slice %470 {offsets = [0, 88], sizes = [14, 8], strides = [1, 1]} : vector<14x96xf32> to vector<14x8xf32>
    %cst_202 = arith.constant dense<0.000000e+00> : vector<14x14xf32>
    %522 = tpu.matmul %519, %520, %cst_202 {dimension_numbers = #tpu.dot_dimension_numbers<[1], [1], [0], [0], [0, 0, 1, 0], [], []>} : vector<14x8xf32>, vector<14x8xf32>, vector<14x14xf32> -> vector<14x14xf32>
    %523 = arith.addf %522, %10 : vector<14x14xf32>
    %cst_203 = arith.constant dense<0xFF800000> : vector<14xf32>
    %524 = vector.multi_reduction <maximumf>, %523, %cst_203 [1] : vector<14x14xf32> to vector<14xf32>
    %525 = vector.shape_cast %524 : vector<14xf32> to vector<14x1xf32>
    %526 = vector.broadcast %525 : vector<14x1xf32> to vector<14x14xf32>
    %527 = arith.subf %523, %526 : vector<14x14xf32>
    %528 = math.exp %527 : vector<14x14xf32>
    %cst_204 = arith.constant dense<0.000000e+00> : vector<14xf32>
    %529 = vector.multi_reduction <add>, %528, %cst_204 [1] : vector<14x14xf32> to vector<14xf32>
    %530 = vector.shape_cast %529 : vector<14xf32> to vector<14x1xf32>
    %531 = tpu.reciprocal %530 {approx = true} : vector<14x1xf32> -> vector<14x1xf32>
    %532 = vector.broadcast %531 : vector<14x1xf32> to vector<14x14xf32>
    %533 = arith.mulf %528, %532 : vector<14x14xf32>
    %cst_205 = arith.constant dense<0.000000e+00> : vector<14x8xf32>
    %534 = tpu.matmul %533, %521, %cst_205 {dimension_numbers = #tpu.dot_dimension_numbers<[1], [0], [0], [1], [0, 0, 1, 1], [], []>} : vector<14x14xf32>, vector<14x8xf32>, vector<14x8xf32> -> vector<14x8xf32>
    %535 = tpu.concatenate %486, %502, %518, %534 in 1 : vector<14x8xf32>, vector<14x8xf32>, vector<14x8xf32>, vector<14x8xf32> -> vector<14x32xf32>
    %c3_206 = arith.constant 3 : index
    %c0_207 = arith.constant 0 : index
    %c0_208 = arith.constant 0 : index
    %536 = vector.load %arg7[%c3_206, %c0_207, %c0_208] : memref<4x32x32xf32, #tpu.memory_space<vmem>>, vector<1x32x32xf32>
    %537 = vector.shape_cast %536 : vector<1x32x32xf32> to vector<32x32xf32>
    %cst_209 = arith.constant dense<0.000000e+00> : vector<14x32xf32>
    %538 = tpu.matmul %535, %537, %cst_209 {dimension_numbers = #tpu.dot_dimension_numbers<[1], [0], [0], [1], [0, 0, 1, 1], [], []>} : vector<14x32xf32>, vector<32x32xf32>, vector<14x32xf32> -> vector<14x32xf32>
    %539 = arith.addf %445, %538 : vector<14x32xf32>
    %c3_210 = arith.constant 3 : index
    %c0_211 = arith.constant 0 : index
    %c0_212 = arith.constant 0 : index
    %540 = vector.load %arg8[%c3_210, %c0_211, %c0_212] : memref<4x1x32xf32, #tpu.memory_space<vmem>>, vector<1x1x32xf32>
    %541 = vector.shape_cast %540 : vector<1x1x32xf32> to vector<1x32xf32>
    %542 = vector.broadcast %541 : vector<1x32xf32> to vector<14x32xf32>
    %543 = arith.addf %539, %542 : vector<14x32xf32>
    %cst_213 = arith.constant dense<0.000000e+00> : vector<14xf32>
    %544 = vector.multi_reduction <add>, %543, %cst_213 [1] : vector<14x32xf32> to vector<14xf32>
    %545 = vector.shape_cast %544 : vector<14xf32> to vector<14x1xf32>
    %cst_214 = arith.constant 3.200000e+01 : f32
    %546 = vector.broadcast %cst_214 : f32 to vector<14x1xf32>
    %547 = arith.divf %545, %546 : vector<14x1xf32>
    %548 = vector.broadcast %547 : vector<14x1xf32> to vector<14x32xf32>
    %549 = arith.subf %543, %548 : vector<14x32xf32>
    %550 = arith.mulf %549, %549 : vector<14x32xf32>
    %cst_215 = arith.constant dense<0.000000e+00> : vector<14xf32>
    %551 = vector.multi_reduction <add>, %550, %cst_215 [1] : vector<14x32xf32> to vector<14xf32>
    %552 = vector.shape_cast %551 : vector<14xf32> to vector<14x1xf32>
    %cst_216 = arith.constant 3.200000e+01 : f32
    %553 = vector.broadcast %cst_216 : f32 to vector<14x1xf32>
    %554 = arith.divf %552, %553 : vector<14x1xf32>
    %555 = vector.broadcast %547 : vector<14x1xf32> to vector<14x32xf32>
    %556 = arith.subf %543, %555 : vector<14x32xf32>
    %cst_217 = arith.constant 9.99999974E-6 : f32
    %557 = vector.broadcast %cst_217 : f32 to vector<14x1xf32>
    %558 = arith.addf %554, %557 : vector<14x1xf32>
    %559 = math.rsqrt %558 : vector<14x1xf32>
    %560 = vector.broadcast %559 : vector<14x1xf32> to vector<14x32xf32>
    %561 = arith.mulf %556, %560 : vector<14x32xf32>
    %c3_218 = arith.constant 3 : index
    %c0_219 = arith.constant 0 : index
    %c0_220 = arith.constant 0 : index
    %562 = vector.load %arg9[%c3_218, %c0_219, %c0_220] : memref<4x32x128xf32, #tpu.memory_space<vmem>>, vector<1x32x128xf32>
    %563 = vector.shape_cast %562 : vector<1x32x128xf32> to vector<32x128xf32>
    %cst_221 = arith.constant dense<0.000000e+00> : vector<14x128xf32>
    %564 = tpu.matmul %561, %563, %cst_221 {dimension_numbers = #tpu.dot_dimension_numbers<[1], [0], [0], [1], [0, 0, 1, 1], [], []>} : vector<14x32xf32>, vector<32x128xf32>, vector<14x128xf32> -> vector<14x128xf32>
    %c3_222 = arith.constant 3 : index
    %c0_223 = arith.constant 0 : index
    %c0_224 = arith.constant 0 : index
    %565 = vector.load %arg10[%c3_222, %c0_223, %c0_224] : memref<4x1x128xf32, #tpu.memory_space<vmem>>, vector<1x1x128xf32>
    %566 = vector.shape_cast %565 : vector<1x1x128xf32> to vector<1x128xf32>
    %567 = vector.broadcast %566 : vector<1x128xf32> to vector<14x128xf32>
    %568 = arith.addf %564, %567 : vector<14x128xf32>
    %cst_225 = arith.constant 5.000000e-01 : f32
    %569 = vector.broadcast %cst_225 : f32 to vector<14x128xf32>
    %570 = arith.mulf %569, %568 : vector<14x128xf32>
    %cst_226 = arith.constant 0.636619746 : f32
    %571 = math.sqrt %cst_226 : f32
    %cst_227 = arith.constant 4.471500e-02 : f32
    %572 = vector.broadcast %cst_227 : f32 to vector<14x128xf32>
    %573 = arith.mulf %572, %568 : vector<14x128xf32>
    %574 = arith.mulf %573, %568 : vector<14x128xf32>
    %575 = arith.mulf %574, %568 : vector<14x128xf32>
    %576 = arith.addf %568, %575 : vector<14x128xf32>
    %577 = vector.broadcast %571 : f32 to vector<14x128xf32>
    %578 = arith.mulf %577, %576 : vector<14x128xf32>
    %579 = math.tanh %578 : vector<14x128xf32>
    %cst_228 = arith.constant 1.000000e+00 : f32
    %580 = vector.broadcast %cst_228 : f32 to vector<14x128xf32>
    %581 = arith.addf %580, %579 : vector<14x128xf32>
    %582 = arith.mulf %570, %581 : vector<14x128xf32>
    %c3_229 = arith.constant 3 : index
    %c0_230 = arith.constant 0 : index
    %c0_231 = arith.constant 0 : index
    %583 = vector.load %arg11[%c3_229, %c0_230, %c0_231] : memref<4x128x32xf32, #tpu.memory_space<vmem>>, vector<1x128x32xf32>
    %584 = vector.shape_cast %583 : vector<1x128x32xf32> to vector<128x32xf32>
    %cst_232 = arith.constant dense<0.000000e+00> : vector<14x32xf32>
    %585 = tpu.matmul %582, %584, %cst_232 {dimension_numbers = #tpu.dot_dimension_numbers<[1], [0], [0], [1], [0, 0, 1, 1], [], []>} : vector<14x128xf32>, vector<128x32xf32>, vector<14x32xf32> -> vector<14x32xf32>
    %586 = arith.addf %543, %585 : vector<14x32xf32>
    %c3_233 = arith.constant 3 : index
    %c0_234 = arith.constant 0 : index
    %c0_235 = arith.constant 0 : index
    %587 = vector.load %arg12[%c3_233, %c0_234, %c0_235] : memref<4x1x32xf32, #tpu.memory_space<vmem>>, vector<1x1x32xf32>
    %588 = vector.shape_cast %587 : vector<1x1x32xf32> to vector<1x32xf32>
    %589 = vector.broadcast %588 : vector<1x32xf32> to vector<14x32xf32>
    %590 = arith.addf %586, %589 : vector<14x32xf32>
    %c0_236 = arith.constant 0 : index
    %c0_237 = arith.constant 0 : index
    %591 = vector.load %arg4[%c0_236, %c0_237] : memref<2x14xf32, #tpu.memory_space<vmem>>, vector<2x14xf32>
    %cst_238 = arith.constant dense<0.000000e+00> : vector<2x32xf32>
    %592 = tpu.matmul %591, %590, %cst_238 {dimension_numbers = #tpu.dot_dimension_numbers<[1], [0], [0], [1], [0, 0, 1, 1], [], []>} : vector<2x14xf32>, vector<14x32xf32>, vector<2x32xf32> -> vector<2x32xf32>
    %cst_239 = arith.constant dense<0.000000e+00> : vector<2xf32>
    %593 = vector.multi_reduction <add>, %592, %cst_239 [1] : vector<2x32xf32> to vector<2xf32>
    %594 = vector.shape_cast %593 : vector<2xf32> to vector<2x1xf32>
    %cst_240 = arith.constant 3.200000e+01 : f32
    %595 = vector.broadcast %cst_240 : f32 to vector<2x1xf32>
    %596 = arith.divf %594, %595 : vector<2x1xf32>
    %597 = vector.broadcast %596 : vector<2x1xf32> to vector<2x32xf32>
    %598 = arith.subf %592, %597 : vector<2x32xf32>
    %599 = arith.mulf %598, %598 : vector<2x32xf32>
    %cst_241 = arith.constant dense<0.000000e+00> : vector<2xf32>
    %600 = vector.multi_reduction <add>, %599, %cst_241 [1] : vector<2x32xf32> to vector<2xf32>
    %601 = vector.shape_cast %600 : vector<2xf32> to vector<2x1xf32>
    %cst_242 = arith.constant 3.200000e+01 : f32
    %602 = vector.broadcast %cst_242 : f32 to vector<2x1xf32>
    %603 = arith.divf %601, %602 : vector<2x1xf32>
    %604 = vector.broadcast %596 : vector<2x1xf32> to vector<2x32xf32>
    %605 = arith.subf %592, %604 : vector<2x32xf32>
    %cst_243 = arith.constant 9.99999974E-6 : f32
    %606 = vector.broadcast %cst_243 : f32 to vector<2x1xf32>
    %607 = arith.addf %603, %606 : vector<2x1xf32>
    %608 = math.rsqrt %607 : vector<2x1xf32>
    %609 = vector.broadcast %608 : vector<2x1xf32> to vector<2x32xf32>
    %610 = arith.mulf %605, %609 : vector<2x32xf32>
    %c0_244 = arith.constant 0 : index
    %c0_245 = arith.constant 0 : index
    %611 = vector.load %arg13[%c0_244, %c0_245] : memref<32x128xf32, #tpu.memory_space<vmem>>, vector<32x128xf32>
    %cst_246 = arith.constant dense<0.000000e+00> : vector<2x128xf32>
    %612 = tpu.matmul %610, %611, %cst_246 {dimension_numbers = #tpu.dot_dimension_numbers<[1], [0], [0], [1], [0, 0, 1, 1], [], []>} : vector<2x32xf32>, vector<32x128xf32>, vector<2x128xf32> -> vector<2x128xf32>
    %c0_247 = arith.constant 0 : index
    %c0_248 = arith.constant 0 : index
    %613 = vector.load %arg14[%c0_247, %c0_248] : memref<1x128xf32, #tpu.memory_space<vmem>>, vector<1x128xf32>
    %614 = vector.broadcast %613 : vector<1x128xf32> to vector<2x128xf32>
    %615 = arith.addf %612, %614 : vector<2x128xf32>
    %c0_249 = arith.constant 0 : index
    %c0_250 = arith.constant 0 : index
    %616 = vector.load %arg15[%c0_249, %c0_250] : memref<2x128xf32, #tpu.memory_space<vmem>>, vector<2x128xf32>
    tpu.vector_store %arg15[%c0_249, %c0_250], %615 {strides = array<i32>} : memref<2x128xf32, #tpu.memory_space<vmem>>, vector<2x128xf32>,
    return
  }
}

</mosaic_0001>

<llo_original>
// kernel: gpt2_lm_forward.1
$region0: #{gpt2_lm_forward.1}
  #allocation0 [shape = 'u32[]', space=smem, size = 0x4, offset = 0x4, fixed_abs, tag = 'smem constant byte address 0x4 - core index']
  #allocation1 [shape = 'u32[72,128]{1,0:T(1,128)}', space=vmem, size = 0x9000, scoped, tag = 'internal scratch']
  %s0 = inlined_call_operand.vmem [shape: s32[14,1], index: 0, kind: input, shape index: {}]
  %s1 = inlined_call_operand.vmem [shape: f32[128,32], index: 1, kind: input, shape index: {}]
  %s2 = inlined_call_operand.vmem [shape: f32[14,32], index: 2, kind: input, shape index: {}]
  %s3 = inlined_call_operand.vmem [shape: f32[14,14], index: 3, kind: input, shape index: {}]
  %s4 = inlined_call_operand.vmem [shape: f32[2,14], index: 4, kind: input, shape index: {}]
  %s5 = inlined_call_operand.vmem [shape: f32[4,32,96], index: 5, kind: input, shape index: {}]
  %s6 = inlined_call_operand.vmem [shape: f32[4,1,96], index: 6, kind: input, shape index: {}]
  %s7 = inlined_call_operand.vmem [shape: f32[4,32,32], index: 7, kind: input, shape index: {}]
  %s8 = inlined_call_operand.vmem [shape: f32[4,1,32], index: 8, kind: input, shape index: {}]
  %s9 = inlined_call_operand.vmem [shape: f32[4,32,128], index: 9, kind: input, shape index: {}]
  %s10 = inlined_call_operand.vmem [shape: f32[4,1,128], index: 10, kind: input, shape index: {}]
  %s11 = inlined_call_operand.vmem [shape: f32[4,128,32], index: 11, kind: input, shape index: {}]
  %s12 = inlined_call_operand.vmem [shape: f32[4,1,32], index: 12, kind: input, shape index: {}]
  %s13 = inlined_call_operand.vmem [shape: f32[32,128], index: 13, kind: input, shape index: {}]
  %s14 = inlined_call_operand.vmem [shape: f32[1,128], index: 14, kind: input, shape index: {}]
  %s15 = inlined_call_operand.hbm [shape: f32[2,128], index: 15, kind: output, shape index: {}]
  %s16 = sld [smem:[#allocation0]]
  $region70: #{gpt2_lm_forward.1} parent=0
    _
  %s18 = ssub.s32 1, %s16
  %s19 = scalar_select 0, %s18, %s16
  $region1: #{gpt2_lm_forward.1} parent=0
    #allocation2 [shape = 'u8[1024]{0}', space=vmem, size = 0x400, scoped, tag = 'output window, operand 0, single buffered']
    #allocation3 [shape = 's32[1]{0}', space=sflag, size = 0x4, scoped, tag = 'scoped memory for gpt2_lm_forward.1']
    %20 = vsyncpa [#allocation3], 0
    // Predicated region
    $region2: #{gpt2_lm_forward.1} parent=1 // pred_check
      _
    $region3: #{gpt2_lm_forward.1} parent=1 // pred_check_branch
      %22 = sbr.rel (0) target = $region5
    $region4: #{gpt2_lm_forward.1} parent=1 // pred_region
      _
    $region5: #{gpt2_lm_forward.1} parent=1 // pred_fallthru
      _
    // Predicated region
    $region6: #{gpt2_lm_forward.1} parent=1 // pred_check
      _
    $region7: #{gpt2_lm_forward.1} parent=1 // pred_check_branch
      %24 = sbr.rel (0) target = $region9
    $region8: #{gpt2_lm_forward.1} parent=1 // pred_region
      _
    $region9: #{gpt2_lm_forward.1} parent=1 // pred_fallthru
      _
    // Predicated region
    $region10: #{gpt2_lm_forward.1} parent=1 // pred_check
      _
    $region11: #{gpt2_lm_forward.1} parent=1 // pred_check_branch
      %26 = sbr.rel (0) target = $region13
    $region12: #{gpt2_lm_forward.1} parent=1 // pred_region
      _
    $region13: #{gpt2_lm_forward.1} parent=1 // pred_fallthru
      _
    // Predicated region
    $region14: #{gpt2_lm_forward.1} parent=1 // pred_check
      _
    $region15: #{gpt2_lm_forward.1} parent=1 // pred_check_branch
      %28 = sbr.rel (0) target = $region17
    $region16: #{gpt2_lm_forward.1} parent=1 // pred_region
      _
    $region17: #{gpt2_lm_forward.1} parent=1 // pred_fallthru
      _
    // Predicated region
    $region18: #{gpt2_lm_forward.1} parent=1 // pred_check
      _
    $region19: #{gpt2_lm_forward.1} parent=1 // pred_check_branch
      %30 = sbr.rel (0) target = $region21
    $region20: #{gpt2_lm_forward.1} parent=1 // pred_region
      _
    $region21: #{gpt2_lm_forward.1} parent=1 // pred_fallthru
      _
    // Predicated region
    $region22: #{gpt2_lm_forward.1} parent=1 // pred_check
      _
    $region23: #{gpt2_lm_forward.1} parent=1 // pred_check_branch
      %32 = sbr.rel (0) target = $region25
    $region24: #{gpt2_lm_forward.1} parent=1 // pred_region
      _
    $region25: #{gpt2_lm_forward.1} parent=1 // pred_fallthru
      _
    // Predicated region
    $region26: #{gpt2_lm_forward.1} parent=1 // pred_check
      _
    $region27: #{gpt2_lm_forward.1} parent=1 // pred_check_branch
      %34 = sbr.rel (0) target = $region29
    $region28: #{gpt2_lm_forward.1} parent=1 // pred_region
      _
    $region29: #{gpt2_lm_forward.1} parent=1 // pred_fallthru
      _
    // Predicated region
    $region30: #{gpt2_lm_forward.1} parent=1 // pred_check
      _
    $region31: #{gpt2_lm_forward.1} parent=1 // pred_check_branch
      %36 = sbr.rel (0) target = $region33
    $region32: #{gpt2_lm_forward.1} parent=1 // pred_region
      _
    $region33: #{gpt2_lm_forward.1} parent=1 // pred_fallthru
      _
    // Predicated region
    $region34: #{gpt2_lm_forward.1} parent=1 // pred_check
      _
    $region35: #{gpt2_lm_forward.1} parent=1 // pred_check_branch
      %38 = sbr.rel (0) target = $region37
    $region36: #{gpt2_lm_forward.1} parent=1 // pred_region
      _
    $region37: #{gpt2_lm_forward.1} parent=1 // pred_fallthru
      _
    // Predicated region
    $region38: #{gpt2_lm_forward.1} parent=1 // pred_check
      _
    $region39: #{gpt2_lm_forward.1} parent=1 // pred_check_branch
      %40 = sbr.rel (0) target = $region41
    $region40: #{gpt2_lm_forward.1} parent=1 // pred_region
      _
    $region41: #{gpt2_lm_forward.1} parent=1 // pred_fallthru
      _
    // Predicated region
    $region42: #{gpt2_lm_forward.1} parent=1 // pred_check
      _
    $region43: #{gpt2_lm_forward.1} parent=1 // pred_check_branch
      %42 = sbr.rel (0) target = $region45
    $region44: #{gpt2_lm_forward.1} parent=1 // pred_region
      _
    $region45: #{gpt2_lm_forward.1} parent=1 // pred_fallthru
      _
    // Predicated region
    $region46: #{gpt2_lm_forward.1} parent=1 // pred_check
      _
    $region47: #{gpt2_lm_forward.1} parent=1 // pred_check_branch
      %44 = sbr.rel (0) target = $region49
    $region48: #{gpt2_lm_forward.1} parent=1 // pred_region
      _
    $region49: #{gpt2_lm_forward.1} parent=1 // pred_fallthru
      _
    // Predicated region
    $region50: #{gpt2_lm_forward.1} parent=1 // pred_check
      _
    $region51: #{gpt2_lm_forward.1} parent=1 // pred_check_branch
      %46 = sbr.rel (0) target = $region53
    $region52: #{gpt2_lm_forward.1} parent=1 // pred_region
      _
    $region53: #{gpt2_lm_forward.1} parent=1 // pred_fallthru
      _
    // Predicated region
    $region54: #{gpt2_lm_forward.1} parent=1 // pred_check
      _
    $region55: #{gpt2_lm_forward.1} parent=1 // pred_check_branch
      %48 = sbr.rel (0) target = $region57
    $region56: #{gpt2_lm_forward.1} parent=1 // pred_region
      _
    $region57: #{gpt2_lm_forward.1} parent=1 // pred_fallthru
      _
    // Predicated region
    $region58: #{gpt2_lm_forward.1} parent=1 // pred_check
      _
    $region59: #{gpt2_lm_forward.1} parent=1 // pred_check_branch
      %50 = sbr.rel (0) target = $region61
    $region60: #{gpt2_lm_forward.1} parent=1 // pred_region
      _
    $region61: #{gpt2_lm_forward.1} parent=1 // pred_fallthru
      _
    %v51 = vld [vmem:[%s0] sm:$0xff]
    %v52 = vld [vmem:[%s0 + $0x8] sm:$0x3f]
    %v53 = vlaneseq
    %v54 = vand.u32 %v53, 127
    %55 = vset.pattern.permute.xlu0 0
    %56 = vperm.xlu0 %55, %v51
    %v57 = vpop.permute.xlu0 %56
    %58 = vset.pattern.permute.xlu0 0
    %59 = vperm.xlu0 %58, %v52
    %v60 = vpop.permute.xlu0 %59
    %vm61 = vcmp.eq.s32.totalorder %v54, %v57
    %vm62 = vcmp.eq.s32.totalorder %v54, %v60
    %v63 = vsel %vm61, 1, 0
    %v64 = vsel %vm62, 1, 0
    %v65 = vcvt.s32.f32 %v63
    %v66 = vcvt.s32.f32 %v64
    %v67 = vld [vmem:[%s1] sm:$0xff]
    %v68 = vld [vmem:[%s1 + $0x8] sm:$0xff]
    %v69 = vld [vmem:[%s1 + $0x10] sm:$0xff]
    %v70 = vld [vmem:[%s1 + $0x18] sm:$0xff]
    %v71 = vld [vmem:[%s1 + $0x20] sm:$0xff]
    %v72 = vld [vmem:[%s1 + $0x28] sm:$0xff]
    %v73 = vld [vmem:[%s1 + $0x30] sm:$0xff]
    %v74 = vld [vmem:[%s1 + $0x38] sm:$0xff]
    %v75 = vld [vmem:[%s1 + $0x40] sm:$0xff]
    %v76 = vld [vmem:[%s1 + $0x48] sm:$0xff]
    %v77 = vld [vmem:[%s1 + $0x50] sm:$0xff]
    %v78 = vld [vmem:[%s1 + $0x58] sm:$0xff]
    %v79 = vld [vmem:[%s1 + $0x60] sm:$0xff]
    %v80 = vld [vmem:[%s1 + $0x68] sm:$0xff]
    %v81 = vld [vmem:[%s1 + $0x70] sm:$0xff]
    %v82 = vld [vmem:[%s1 + $0x78] sm:$0xff]
    %v83 = vld [vmem:[%s2] sm:$0xff]
    %v84 = vld [vmem:[%s2 + $0x8] sm:$0x3f]
    %85 = vmatpush.msra.mxu0 %v82
    %86 = vmatpush.msra.mxu0 %v81
    %87 = vmatpush.msra.mxu0 %v80
    %88 = vmatpush.msra.mxu0 %v79
    %89 = vmatpush.msra.mxu0 %v78
    %90 = vmatpush.msra.mxu0 %v77
    %91 = vmatpush.msra.mxu0 %v76
    %92 = vmatpush.msra.mxu0 %v75
    %93 = vmatpush.msra.mxu0 %v74
    %94 = vmatpush.msra.mxu0 %v73
    %95 = vmatpush.msra.mxu0 %v72
    %96 = vmatpush.msra.mxu0 %v71
    %97 = vmatpush.msra.mxu0 %v70
    %98 = vmatpush.msra.mxu0 %v69
    %99 = vmatpush.msra.mxu0 %v68
    %100 = vmatpush.msra.mxu0 %v67
    %101 = vmatmul.f32.gmra.mxu0 %v65
    %v102 = vpop.f32.mrf.mxu0
    %v103 = vadd.f32 %v83, %v102
    %104 = vmatmul.f32.gmra.mxu0 %v66
    %v105 = vpop.f32.mrf.mxu0
    %v106 = vadd.f32 %v84, %v105
    %107 = vdwg.mxu0
    %v108 = vld [vmem:[%s3] sm:$0xff]
    %v109 = vld [vmem:[%s3 + $0x8] sm:$0x3f]
    %vm110 = vcmask 261120
    %v111 = vsel %vm110, %v103, 0.0
    %112 = vadd.xlane.f32.xlu0 %v111
    %v113 = vpop.xlane.xlu0 %112
    %vm114 = vcmask 259072
    %v115 = vsel %vm114, %v106, 0.0
    %116 = vadd.xlane.f32.xlu0 %v115
    %v117 = vpop.xlane.xlu0 %116
    %v118 = vrcp.pop 32.0
    %v119 = vmul.f32 32.0, %v118
    %v120 = vsub.f32 1.0, %v119
    %v121 = vmul.f32 %v118, %v120
    %v122 = vadd.f32 %v118, %v121
    %vm123 = vweird.f32 %v118
    %v124 = vsel %vm123, %v118, %v122
    %v125 = vmul.f32 %v113, %v124
    %v126 = vmul.f32 %v117, %v124
    %v127 = vsub.f32 %v103, %v125
    %v128 = vsub.f32 %v106, %v126
    %v129 = vmul.f32 %v127, %v127
    %v130 = vmul.f32 %v128, %v128
    %v131 = vsel %vm110, %v129, 0.0
    %132 = vadd.xlane.f32.xlu0 %v131
    %v133 = vpop.xlane.xlu0 %132
    %v134 = vsel %vm114, %v130, 0.0
    %135 = vadd.xlane.f32.xlu0 %v134
    %v136 = vpop.xlane.xlu0 %135
    %v137 = vmul.f32 %v133, %v124
    %v138 = vmul.f32 %v136, %v124
    %v139 = vadd.f32 %v137, 1e-05
    %v140 = vadd.f32 %v138, 1e-05
    %v141 = vrsqrt.pop %v139
    %v142 = vmul.f32 %v141, %v139
    %v143 = vmul.f32 %v142, %v141
    %v144 = vmul.f32 0.5, %v143
    %v145 = vsub.f32 1.5, %v144
    %v146 = vmul.f32 %v141, %v145
    %vm147 = vweird.f32 %v139
    %vm148 = vweird.f32 %v141
    %vm149 = vmor %vm147, %vm148
    %v150 = vsel %vm149, %v141, %v146
    %v151 = vrsqrt.pop %v140
    %v152 = vmul.f32 %v151, %v140
    %v153 = vmul.f32 %v152, %v151
    %v154 = vmul.f32 0.5, %v153
    %v155 = vsub.f32 1.5, %v154
    %v156 = vmul.f32 %v151, %v155
    %vm157 = vweird.f32 %v140
    %vm158 = vweird.f32 %v151
    %vm159 = vmor %vm157, %vm158
    %v160 = vsel %vm159, %v151, %v156
    %v161 = vmul.f32 %v127, %v150
    %v162 = vmul.f32 %v128, %v160
    %v163 = vld [vmem:[%s5] sm:$0xff]
    %v164 = vld [vmem:[%s5 + $0x8] sm:$0xff]
    %v165 = vld [vmem:[%s5 + $0x10] sm:$0xff]
    %v166 = vld [vmem:[%s5 + $0x18] sm:$0xff]
    %v167 = vld [vmem:[%s6] sm:$0x1]
    %v169 = vperm.slane %v167, 0
    %v172 = vsel %vm110, %v161, 0
    %v175 = vsel %vm110, %v162, 0
    %177 = vmatpush.msra.mxu0 0.0
    %178 = vmatpush.msra.mxu0 0.0
    %179 = vmatpush.msra.mxu0 0.0
    %180 = vmatpush.msra.mxu0 0.0
    %181 = vmatpush.msra.mxu0 0.0
    %182 = vmatpush.msra.mxu0 0.0
    %183 = vmatpush.msra.mxu0 0.0
    %184 = vmatpush.msra.mxu0 0.0
    %185 = vmatpush.msra.mxu0 0.0
    %186 = vmatpush.msra.mxu0 0.0
    %187 = vmatpush.msra.mxu0 0.0
    %188 = vmatpush.msra.mxu0 0.0
    %189 = vmatpush.msra.mxu0 %v166
    %190 = vmatpush.msra.mxu0 %v165
    %191 = vmatpush.msra.mxu0 %v164
    %192 = vmatpush.msra.mxu0 %v163
    %193 = vmatmul.f32.gmra.mxu0 %v172
    %v194 = vpop.f32.mrf.mxu0
    %v195 = vadd.f32 %v169, %v194
    %196 = vmatmul.f32.gmra.mxu0 %v175
    %v197 = vpop.f32.mrf.mxu0
    %v198 = vadd.f32 %v169, %v197
    %199 = vdwg.mxu0
    %202 = vrot.lane.b32.xlu0 %v195, 96
    %v203 = vpop.permute.xlu0 %202
    %204 = vrot.lane.b32.xlu0 %v198, 96
    %v205 = vpop.permute.xlu0 %204
    %vm206 = vcmask 64512
    %v207 = vsel %vm206, %v195, 0
    %v209 = vsel %vm206, %v198, 0
    %v211 = vsel %vm206, %v203, 0
    %v213 = vsel %vm206, %v205, 0
    %215 = vmatpush.xpose.msra.mxu0 0.0
    %216 = vmatpush.xpose.msra.mxu0 0.0
    %217 = vmatpush.xpose.msra.mxu0 0.0
    %218 = vmatpush.xpose.msra.mxu0 0.0
    %219 = vmatpush.xpose.msra.mxu0 0.0
    %220 = vmatpush.xpose.msra.mxu0 0.0
    %221 = vmatpush.xpose.msra.mxu0 0.0
    %222 = vmatpush.xpose.msra.mxu0 0.0
    %223 = vmatpush.xpose.msra.mxu0 0.0
    %224 = vmatpush.xpose.msra.mxu0 0.0
    %225 = vmatpush.xpose.msra.mxu0 0.0
    %226 = vmatpush.xpose.msra.mxu0 0.0
    %227 = vmatpush.xpose.msra.mxu0 0.0
    %228 = vmatpush.xpose.msra.mxu0 0.0
    %229 = vmatpush.xpose.msra.mxu0 %v213
    %230 = vmatpush.xpose.msra.mxu0 %v211
    %231 = vmatmul.f32.gmra.mxu0 %v207
    %v232 = vpop.f32.mrf.mxu0
    %v233 = vadd.f32 %v108, %v232
    %234 = vmatmul.f32.gmra.mxu0 %v209
    %v235 = vpop.f32.mrf.mxu0
    %v236 = vadd.f32 %v109, %v235
    %237 = vdwg.mxu0
    %vm238 = vcmask 113664
    %v239 = vsel %vm238, %v233, -inf
    %240 = vmax.xlane.f32.xlu0 %v239
    %v241 = vpop.xlane.xlu0 %240
    %vm242 = vcmask 111616
    %v243 = vsel %vm242, %v236, -inf
    %244 = vmax.xlane.f32.xlu0 %v243
    %v245 = vpop.xlane.xlu0 %244
    %v246 = vsub.f32 %v233, %v241
    %v247 = vsub.f32 %v236, %v245
    %v248 = vmul.f32 %v246, 1.442695
    %v249 = vpow.pop %v248
    %v250 = vmul.f32 %v247, 1.442695
    %v251 = vpow.pop %v250
    %v252 = vsel %vm238, %v249, 0.0
    %253 = vadd.xlane.f32.xlu0 %v252
    %v254 = vpop.xlane.xlu0 %253
    %v255 = vsel %vm242, %v251, 0.0
    %256 = vadd.xlane.f32.xlu0 %v255
    %v257 = vpop.xlane.xlu0 %256
    %v258 = vrcp.pop %v254
    %v259 = vrcp.pop %v257
    %v260 = vmul.f32 %v249, %v258
    %v261 = vmul.f32 %v251, %v259
    %262 = vrot.lane.b32.xlu0 %v195, 64
    %v263 = vpop.permute.xlu0 %262
    %264 = vrot.lane.b32.xlu0 %v198, 64
    %v265 = vpop.permute.xlu0 %264
    %v268 = vsel %vm238, %v260, 0
    %v271 = vsel %vm238, %v261, 0
    %vm273 = vcmask 1045504
    %v274 = vsel %vm273, %v265, 0
    %276 = vmatpush.msra.mxu0 0.0
    %277 = vmatpush.msra.mxu0 0.0
    %278 = vmatpush.msra.mxu0 0.0
    %279 = vmatpush.msra.mxu0 0.0
    %280 = vmatpush.msra.mxu0 0.0
    %281 = vmatpush.msra.mxu0 0.0
    %282 = vmatpush.msra.mxu0 0.0
    %283 = vmatpush.msra.mxu0 0.0
    %284 = vmatpush.msra.mxu0 0.0
    %285 = vmatpush.msra.mxu0 0.0
    %286 = vmatpush.msra.mxu0 0.0
    %287 = vmatpush.msra.mxu0 0.0
    %288 = vmatpush.msra.mxu0 0.0
    %289 = vmatpush.msra.mxu0 0.0
    %290 = vmatpush.msra.mxu0 %v274
    %291 = vmatpush.msra.mxu0 %v263
    %292 = vmatmul.f32.gmra.mxu0 %v268
    %v293 = vpop.f32.mrf.mxu0
    %v294 = vadd.f32 0.0, %v293
    %295 = vmatmul.f32.gmra.mxu0 %v271
    %v296 = vpop.f32.mrf.mxu0
    %v297 = vadd.f32 0.0, %v296
    %298 = vdwg.mxu0
    %299 = vrot.lane.b32.xlu0 %v195, 120
    %v300 = vpop.permute.xlu0 %299
    %301 = vrot.lane.b32.xlu0 %v198, 120
    %v302 = vpop.permute.xlu0 %301
    %303 = vrot.lane.b32.xlu0 %v195, 88
    %v304 = vpop.permute.xlu0 %303
    %305 = vrot.lane.b32.xlu0 %v198, 88
    %v306 = vpop.permute.xlu0 %305
    %v307 = vsel %vm206, %v300, 0
    %v309 = vsel %vm206, %v302, 0
    %v311 = vsel %vm206, %v304, 0
    %v313 = vsel %vm206, %v306, 0
    %315 = vmatpush.xpose.msra.mxu0 0.0
    %316 = vmatpush.xpose.msra.mxu0 0.0
    %317 = vmatpush.xpose.msra.mxu0 0.0
    %318 = vmatpush.xpose.msra.mxu0 0.0
    %319 = vmatpush.xpose.msra.mxu0 0.0
    %320 = vmatpush.xpose.msra.mxu0 0.0
    %321 = vmatpush.xpose.msra.mxu0 0.0
    %322 = vmatpush.xpose.msra.mxu0 0.0
    %323 = vmatpush.xpose.msra.mxu0 0.0
    %324 = vmatpush.xpose.msra.mxu0 0.0
    %325 = vmatpush.xpose.msra.mxu0 0.0
    %326 = vmatpush.xpose.msra.mxu0 0.0
    %327 = vmatpush.xpose.msra.mxu0 0.0
    %328 = vmatpush.xpose.msra.mxu0 0.0
    %329 = vmatpush.xpose.msra.mxu0 %v313
    %330 = vmatpush.xpose.msra.mxu0 %v311
    %331 = vmatmul.f32.gmra.mxu0 %v307
    %v332 = vpop.f32.mrf.mxu0
    %v333 = vadd.f32 %v108, %v332
    %334 = vmatmul.f32.gmra.mxu0 %v309
    %v335 = vpop.f32.mrf.mxu0
    %v336 = vadd.f32 %v109, %v335
    %337 = vdwg.mxu0
    %v338 = vsel %vm238, %v333, -inf
    %339 = vmax.xlane.f32.xlu0 %v338
    %v340 = vpop.xlane.xlu0 %339
    %v341 = vsel %vm242, %v336, -inf
    %342 = vmax.xlane.f32.xlu0 %v341
    %v343 = vpop.xlane.xlu0 %342
    %v344 = vsub.f32 %v333, %v340
    %v345 = vsub.f32 %v336, %v343
    %v346 = vmul.f32 %v344, 1.442695
    %v347 = vpow.pop %v346
    %v348 = vmul.f32 %v345, 1.442695
    %v349 = vpow.pop %v348
    %v350 = vsel %vm238, %v347, 0.0
    %351 = vadd.xlane.f32.xlu0 %v350
    %v352 = vpop.xlane.xlu0 %351
    %v353 = vsel %vm242, %v349, 0.0
    %354 = vadd.xlane.f32.xlu0 %v353
    %v355 = vpop.xlane.xlu0 %354
    %v356 = vrcp.pop %v352
    %v357 = vrcp.pop %v355
    %v358 = vmul.f32 %v347, %v356
    %v359 = vmul.f32 %v349, %v357
    %360 = vrot.lane.b32.xlu0 %v195, 56
    %v361 = vpop.permute.xlu0 %360
    %362 = vrot.lane.b32.xlu0 %v198, 56
    %v363 = vpop.permute.xlu0 %362
    %v366 = vsel %vm238, %v358, 0
    %v369 = vsel %vm238, %v359, 0
    %v371 = vsel %vm273, %v363, 0
    %373 = vmatpush.msra.mxu0 0.0
    %374 = vmatpush.msra.mxu0 0.0
    %375 = vmatpush.msra.mxu0 0.0
    %376 = vmatpush.msra.mxu0 0.0
    %377 = vmatpush.msra.mxu0 0.0
    %378 = vmatpush.msra.mxu0 0.0
    %379 = vmatpush.msra.mxu0 0.0
    %380 = vmatpush.msra.mxu0 0.0
    %381 = vmatpush.msra.mxu0 0.0
    %382 = vmatpush.msra.mxu0 0.0
    %383 = vmatpush.msra.mxu0 0.0
    %384 = vmatpush.msra.mxu0 0.0
    %385 = vmatpush.msra.mxu0 0.0
    %386 = vmatpush.msra.mxu0 0.0
    %387 = vmatpush.msra.mxu0 %v371
    %388 = vmatpush.msra.mxu0 %v361
    %389 = vmatmul.f32.gmra.mxu0 %v366
    %v390 = vpop.f32.mrf.mxu0
    %v391 = vadd.f32 0.0, %v390
    %392 = vmatmul.f32.gmra.mxu0 %v369
    %v393 = vpop.f32.mrf.mxu0
    %v394 = vadd.f32 0.0, %v393
    %395 = vdwg.mxu0
    %396 = vrot.lane.b32.xlu0 %v195, 112
    %v397 = vpop.permute.xlu0 %396
    %398 = vrot.lane.b32.xlu0 %v198, 112
    %v399 = vpop.permute.xlu0 %398
    %400 = vrot.lane.b32.xlu0 %v195, 80
    %v401 = vpop.permute.xlu0 %400
    %402 = vrot.lane.b32.xlu0 %v198, 80
    %v403 = vpop.permute.xlu0 %402
    %v404 = vsel %vm206, %v397, 0
    %v406 = vsel %vm206, %v399, 0
    %v408 = vsel %vm206, %v401, 0
    %v410 = vsel %vm206, %v403, 0
    %412 = vmatpush.xpose.msra.mxu0 0.0
    %413 = vmatpush.xpose.msra.mxu0 0.0
    %414 = vmatpush.xpose.msra.mxu0 0.0
    %415 = vmatpush.xpose.msra.mxu0 0.0
    %416 = vmatpush.xpose.msra.mxu0 0.0
    %417 = vmatpush.xpose.msra.mxu0 0.0
    %418 = vmatpush.xpose.msra.mxu0 0.0
    %419 = vmatpush.xpose.msra.mxu0 0.0
    %420 = vmatpush.xpose.msra.mxu0 0.0
    %421 = vmatpush.xpose.msra.mxu0 0.0
    %422 = vmatpush.xpose.msra.mxu0 0.0
    %423 = vmatpush.xpose.msra.mxu0 0.0
    %424 = vmatpush.xpose.msra.mxu0 0.0
    %425 = vmatpush.xpose.msra.mxu0 0.0
    %426 = vmatpush.xpose.msra.mxu0 %v410
    %427 = vmatpush.xpose.msra.mxu0 %v408
    %428 = vmatmul.f32.gmra.mxu0 %v404
    %v429 = vpop.f32.mrf.mxu0
    %v430 = vadd.f32 %v108, %v429
    %431 = vmatmul.f32.gmra.mxu0 %v406
    %v432 = vpop.f32.mrf.mxu0
    %v433 = vadd.f32 %v109, %v432
    %434 = vdwg.mxu0
    %v435 = vsel %vm238, %v430, -inf
    %436 = vmax.xlane.f32.xlu0 %v435
    %v437 = vpop.xlane.xlu0 %436
    %v438 = vsel %vm242, %v433, -inf
    %439 = vmax.xlane.f32.xlu0 %v438
    %v440 = vpop.xlane.xlu0 %439
    %v441 = vsub.f32 %v430, %v437
    %v442 = vsub.f32 %v433, %v440
    %v443 = vmul.f32 %v441, 1.442695
    %v444 = vpow.pop %v443
    %v445 = vmul.f32 %v442, 1.442695
    %v446 = vpow.pop %v445
    %v447 = vsel %vm238, %v444, 0.0
    %448 = vadd.xlane.f32.xlu0 %v447
    %v449 = vpop.xlane.xlu0 %448
    %v450 = vsel %vm242, %v446, 0.0
    %451 = vadd.xlane.f32.xlu0 %v450
    %v452 = vpop.xlane.xlu0 %451
    %v453 = vrcp.pop %v449
    %v454 = vrcp.pop %v452
    %v455 = vmul.f32 %v444, %v453
    %v456 = vmul.f32 %v446, %v454
    %457 = vrot.lane.b32.xlu0 %v195, 48
    %v458 = vpop.permute.xlu0 %457
    %459 = vrot.lane.b32.xlu0 %v198, 48
    %v460 = vpop.permute.xlu0 %459
    %v463 = vsel %vm238, %v455, 0
    %v466 = vsel %vm238, %v456, 0
    %v468 = vsel %vm273, %v460, 0
    %470 = vmatpush.msra.mxu0 0.0
    %471 = vmatpush.msra.mxu0 0.0
    %472 = vmatpush.msra.mxu0 0.0
    %473 = vmatpush.msra.mxu0 0.0
    %474 = vmatpush.msra.mxu0 0.0
    %475 = vmatpush.msra.mxu0 0.0
    %476 = vmatpush.msra.mxu0 0.0
    %477 = vmatpush.msra.mxu0 0.0
    %478 = vmatpush.msra.mxu0 0.0
    %479 = vmatpush.msra.mxu0 0.0
    %480 = vmatpush.msra.mxu0 0.0
    %481 = vmatpush.msra.mxu0 0.0
    %482 = vmatpush.msra.mxu0 0.0
    %483 = vmatpush.msra.mxu0 0.0
    %484 = vmatpush.msra.mxu0 %v468
    %485 = vmatpush.msra.mxu0 %v458
    %486 = vmatmul.f32.gmra.mxu0 %v463
    %v487 = vpop.f32.mrf.mxu0
    %v488 = vadd.f32 0.0, %v487
    %489 = vmatmul.f32.gmra.mxu0 %v466
    %v490 = vpop.f32.mrf.mxu0
    %v491 = vadd.f32 0.0, %v490
    %492 = vdwg.mxu0
    %493 = vrot.lane.b32.xlu0 %v195, 104
    %v494 = vpop.permute.xlu0 %493
    %495 = vrot.lane.b32.xlu0 %v198, 104
    %v496 = vpop.permute.xlu0 %495
    %497 = vrot.lane.b32.xlu0 %v195, 72
    %v498 = vpop.permute.xlu0 %497
    %499 = vrot.lane.b32.xlu0 %v198, 72
    %v500 = vpop.permute.xlu0 %499
    %v501 = vsel %vm206, %v494, 0
    %v503 = vsel %vm206, %v496, 0
    %v505 = vsel %vm206, %v498, 0
    %v507 = vsel %vm206, %v500, 0
    %509 = vmatpush.xpose.msra.mxu0 0.0
    %510 = vmatpush.xpose.msra.mxu0 0.0
    %511 = vmatpush.xpose.msra.mxu0 0.0
    %512 = vmatpush.xpose.msra.mxu0 0.0
    %513 = vmatpush.xpose.msra.mxu0 0.0
    %514 = vmatpush.xpose.msra.mxu0 0.0
    %515 = vmatpush.xpose.msra.mxu0 0.0
    %516 = vmatpush.xpose.msra.mxu0 0.0
    %517 = vmatpush.xpose.msra.mxu0 0.0
    %518 = vmatpush.xpose.msra.mxu0 0.0
    %519 = vmatpush.xpose.msra.mxu0 0.0
    %520 = vmatpush.xpose.msra.mxu0 0.0
    %521 = vmatpush.xpose.msra.mxu0 0.0
    %522 = vmatpush.xpose.msra.mxu0 0.0
    %523 = vmatpush.xpose.msra.mxu0 %v507
    %524 = vmatpush.xpose.msra.mxu0 %v505
    %525 = vmatmul.f32.gmra.mxu0 %v501
    %v526 = vpop.f32.mrf.mxu0
    %v527 = vadd.f32 %v108, %v526
    %528 = vmatmul.f32.gmra.mxu0 %v503
    %v529 = vpop.f32.mrf.mxu0
    %v530 = vadd.f32 %v109, %v529
    %531 = vdwg.mxu0
    %v532 = vsel %vm238, %v527, -inf
    %533 = vmax.xlane.f32.xlu0 %v532
    %v534 = vpop.xlane.xlu0 %533
    %v535 = vsel %vm242, %v530, -inf
    %536 = vmax.xlane.f32.xlu0 %v535
    %v537 = vpop.xlane.xlu0 %536
    %v538 = vsub.f32 %v527, %v534
    %v539 = vsub.f32 %v530, %v537
    %v540 = vmul.f32 %v538, 1.442695
    %v541 = vpow.pop %v540
    %v542 = vmul.f32 %v539, 1.442695
    %v543 = vpow.pop %v542
    %v544 = vsel %vm238, %v541, 0.0
    %545 = vadd.xlane.f32.xlu0 %v544
    %v546 = vpop.xlane.xlu0 %545
    %v547 = vsel %vm242, %v543, 0.0
    %548 = vadd.xlane.f32.xlu0 %v547
    %v549 = vpop.xlane.xlu0 %548
    %v550 = vrcp.pop %v546
    %v551 = vrcp.pop %v549
    %v552 = vmul.f32 %v541, %v550
    %v553 = vmul.f32 %v543, %v551
    %554 = vrot.lane.b32.xlu0 %v195, 40
    %v555 = vpop.permute.xlu0 %554
    %556 = vrot.lane.b32.xlu0 %v198, 40
    %v557 = vpop.permute.xlu0 %556
    %v560 = vsel %vm238, %v552, 0
    %v563 = vsel %vm238, %v553, 0
    %v565 = vsel %vm273, %v557, 0
    %567 = vmatpush.msra.mxu0 0.0
    %568 = vmatpush.msra.mxu0 0.0
    %569 = vmatpush.msra.mxu0 0.0
    %570 = vmatpush.msra.mxu0 0.0
    %571 = vmatpush.msra.mxu0 0.0
    %572 = vmatpush.msra.mxu0 0.0
    %573 = vmatpush.msra.mxu0 0.0
    %574 = vmatpush.msra.mxu0 0.0
    %575 = vmatpush.msra.mxu0 0.0
    %576 = vmatpush.msra.mxu0 0.0
    %577 = vmatpush.msra.mxu0 0.0
    %578 = vmatpush.msra.mxu0 0.0
    %579 = vmatpush.msra.mxu0 0.0
    %580 = vmatpush.msra.mxu0 0.0
    %581 = vmatpush.msra.mxu0 %v565
    %582 = vmatpush.msra.mxu0 %v555
    %583 = vmatmul.f32.gmra.mxu0 %v560
    %v584 = vpop.f32.mrf.mxu0
    %v585 = vadd.f32 0.0, %v584
    %586 = vmatmul.f32.gmra.mxu0 %v563
    %v587 = vpop.f32.mrf.mxu0
    %v588 = vadd.f32 0.0, %v587
    %589 = vdwg.mxu0
    %592 = vrot.lane.b32.xlu0 %v391, 8
    %v593 = vpop.permute.xlu0 %592
    %594 = vrot.lane.b32.xlu0 %v394, 8
    %v595 = vpop.permute.xlu0 %594
    %600 = vrot.lane.b32.xlu0 %v488, 16
    %v601 = vpop.permute.xlu0 %600
    %602 = vrot.lane.b32.xlu0 %v491, 16
    %v603 = vpop.permute.xlu0 %602
    %608 = vrot.lane.b32.xlu0 %v585, 24
    %v609 = vpop.permute.xlu0 %608
    %610 = vrot.lane.b32.xlu0 %v588, 24
    %v611 = vpop.permute.xlu0 %610
    %v614 = vsel %vm206, %v294, %v593
    %v615 = vsel %vm206, %v297, %v595
    %vm616 = vcmask 130048
    %v617 = vsel %vm616, %v614, %v601
    %v618 = vsel %vm616, %v615, %v603
    %vm619 = vcmask 195584
    %v620 = vsel %vm619, %v617, %v609
    %v621 = vsel %vm619, %v618, %v611
    %v622 = vld [vmem:[%s7] sm:$0xff]
    %v623 = vld [vmem:[%s7 + $0x8] sm:$0xff]
    %v624 = vld [vmem:[%s7 + $0x10] sm:$0xff]
    %v625 = vld [vmem:[%s7 + $0x18] sm:$0xff]
    %v627 = vsel %vm110, %v620, 0
    %v630 = vsel %vm110, %v621, 0
    %632 = vmatpush.msra.mxu0 0.0
    %633 = vmatpush.msra.mxu0 0.0
    %634 = vmatpush.msra.mxu0 0.0
    %635 = vmatpush.msra.mxu0 0.0
    %636 = vmatpush.msra.mxu0 0.0
    %637 = vmatpush.msra.mxu0 0.0
    %638 = vmatpush.msra.mxu0 0.0
    %639 = vmatpush.msra.mxu0 0.0
    %640 = vmatpush.msra.mxu0 0.0
    %641 = vmatpush.msra.mxu0 0.0
    %642 = vmatpush.msra.mxu0 0.0
    %643 = vmatpush.msra.mxu0 0.0
    %644 = vmatpush.msra.mxu0 %v625
    %645 = vmatpush.msra.mxu0 %v624
    %646 = vmatpush.msra.mxu0 %v623
    %647 = vmatpush.msra.mxu0 %v622
    %648 = vmatmul.f32.gmra.mxu0 %v627
    %v649 = vpop.f32.mrf.mxu0
    %v650 = vadd.f32 0.0, %v649
    %651 = vmatmul.f32.gmra.mxu0 %v630
    %v652 = vpop.f32.mrf.mxu0
    %v653 = vadd.f32 0.0, %v652
    %654 = vdwg.mxu0
    %v655 = vadd.f32 %v103, %v650
    %v656 = vadd.f32 %v106, %v653
    %v657 = vld [vmem:[%s8] sm:$0x1]
    %v659 = vperm.slane %v657, 0
    %v661 = vadd.f32 %v655, %v659
    %v662 = vadd.f32 %v656, %v659
    %v663 = vsel %vm110, %v661, 0.0
    %664 = vadd.xlane.f32.xlu0 %v663
    %v665 = vpop.xlane.xlu0 %664
    %v666 = vsel %vm114, %v662, 0.0
    %667 = vadd.xlane.f32.xlu0 %v666
    %v668 = vpop.xlane.xlu0 %667
    %v669 = vmul.f32 %v665, %v124
    %v670 = vmul.f32 %v668, %v124
    %v671 = vsub.f32 %v661, %v669
    %v672 = vsub.f32 %v662, %v670
    %v673 = vmul.f32 %v671, %v671
    %v674 = vmul.f32 %v672, %v672
    %v675 = vsel %vm110, %v673, 0.0
    %676 = vadd.xlane.f32.xlu0 %v675
    %v677 = vpop.xlane.xlu0 %676
    %v678 = vsel %vm114, %v674, 0.0
    %679 = vadd.xlane.f32.xlu0 %v678
    %v680 = vpop.xlane.xlu0 %679
    %v681 = vmul.f32 %v677, %v124
    %v682 = vmul.f32 %v680, %v124
    %v683 = vadd.f32 %v681, 1e-05
    %v684 = vadd.f32 %v682, 1e-05
    %v685 = vrsqrt.pop %v683
    %v686 = vmul.f32 %v685, %v683
    %v687 = vmul.f32 %v686, %v685
    %v688 = vmul.f32 0.5, %v687
    %v689 = vsub.f32 1.5, %v688
    %v690 = vmul.f32 %v685, %v689
    %vm691 = vweird.f32 %v683
    %vm692 = vweird.f32 %v685
    %vm693 = vmor %vm691, %vm692
    %v694 = vsel %vm693, %v685, %v690
    %v695 = vrsqrt.pop %v684
    %v696 = vmul.f32 %v695, %v684
    %v697 = vmul.f32 %v696, %v695
    %v698 = vmul.f32 0.5, %v697
    %v699 = vsub.f32 1.5, %v698
    %v700 = vmul.f32 %v695, %v699
    %vm701 = vweird.f32 %v684
    %vm702 = vweird.f32 %v695
    %vm703 = vmor %vm701, %vm702
    %v704 = vsel %vm703, %v695, %v700
    %v705 = vmul.f32 %v671, %v694
    %v706 = vmul.f32 %v672, %v704
    %v707 = vld [vmem:[%s9] sm:$0xff]
    %v708 = vld [vmem:[%s9 + $0x8] sm:$0xff]
    %v709 = vld [vmem:[%s9 + $0x10] sm:$0xff]
    %v710 = vld [vmem:[%s9 + $0x18] sm:$0xff]
    %v711 = vld [vmem:[%s10] sm:$0x1]
    %v713 = vperm.slane %v711, 0
    %v716 = vsel %vm110, %v705, 0
    %v719 = vsel %vm110, %v706, 0
    %721 = vmatpush.msra.mxu0 0.0
    %722 = vmatpush.msra.mxu0 0.0
    %723 = vmatpush.msra.mxu0 0.0
    %724 = vmatpush.msra.mxu0 0.0
    %725 = vmatpush.msra.mxu0 0.0
    %726 = vmatpush.msra.mxu0 0.0
    %727 = vmatpush.msra.mxu0 0.0
    %728 = vmatpush.msra.mxu0 0.0
    %729 = vmatpush.msra.mxu0 0.0
    %730 = vmatpush.msra.mxu0 0.0
    %731 = vmatpush.msra.mxu0 0.0
    %732 = vmatpush.msra.mxu0 0.0
    %733 = vmatpush.msra.mxu0 %v710
    %734 = vmatpush.msra.mxu0 %v709
    %735 = vmatpush.msra.mxu0 %v708
    %736 = vmatpush.msra.mxu0 %v707
    %737 = vmatmul.f32.gmra.mxu0 %v716
    %v738 = vpop.f32.mrf.mxu0
    %v739 = vadd.f32 %v713, %v738
    %740 = vmatmul.f32.gmra.mxu0 %v719
    %v741 = vpop.f32.mrf.mxu0
    %v742 = vadd.f32 %v713, %v741
    %743 = vdwg.mxu0
    %v744 = vmul.f32 %v739, 0.5
    %v745 = vmul.f32 %v742, 0.5
    %v746 = vmul.f32 %v739, 0.044715
    %v747 = vmul.f32 %v742, 0.044715
    %v748 = vmul.f32 %v746, %v739
    %v749 = vmul.f32 %v747, %v742
    %v750 = vmul.f32 %v748, %v739
    %v751 = vmul.f32 %v749, %v742
    %v752 = vadd.f32 %v739, %v750
    %v753 = vadd.f32 %v742, %v751
    %v754 = vmul.f32 %v752, 0.7978845
    %v755 = vmul.f32 %v753, 0.7978845
    %v756 = vtanh.pop %v754
    %v757 = vtanh.pop %v755
    %v758 = vadd.f32 %v756, 1.0
    %v759 = vadd.f32 %v757, 1.0
    %v760 = vmul.f32 %v744, %v758
    %v761 = vmul.f32 %v745, %v759
    %v762 = vld [vmem:[%s11] sm:$0xff]
    %v763 = vld [vmem:[%s11 + $0x8] sm:$0xff]
    %v764 = vld [vmem:[%s11 + $0x10] sm:$0xff]
    %v765 = vld [vmem:[%s11 + $0x18] sm:$0xff]
    %v766 = vld [vmem:[%s11 + $0x20] sm:$0xff]
    %v767 = vld [vmem:[%s11 + $0x28] sm:$0xff]
    %v768 = vld [vmem:[%s11 + $0x30] sm:$0xff]
    %v769 = vld [vmem:[%s11 + $0x38] sm:$0xff]
    %v770 = vld [vmem:[%s11 + $0x40] sm:$0xff]
    %v771 = vld [vmem:[%s11 + $0x48] sm:$0xff]
    %v772 = vld [vmem:[%s11 + $0x50] sm:$0xff]
    %v773 = vld [vmem:[%s11 + $0x58] sm:$0xff]
    %v774 = vld [vmem:[%s11 + $0x60] sm:$0xff]
    %v775 = vld [vmem:[%s11 + $0x68] sm:$0xff]
    %v776 = vld [vmem:[%s11 + $0x70] sm:$0xff]
    %v777 = vld [vmem:[%s11 + $0x78] sm:$0xff]
    %778 = vmatpush.msra.mxu0 %v777
    %779 = vmatpush.msra.mxu0 %v776
    %780 = vmatpush.msra.mxu0 %v775
    %781 = vmatpush.msra.mxu0 %v774
    %782 = vmatpush.msra.mxu0 %v773
    %783 = vmatpush.msra.mxu0 %v772
    %784 = vmatpush.msra.mxu0 %v771
    %785 = vmatpush.msra.mxu0 %v770
    %786 = vmatpush.msra.mxu0 %v769
    %787 = vmatpush.msra.mxu0 %v768
    %788 = vmatpush.msra.mxu0 %v767
    %789 = vmatpush.msra.mxu0 %v766
    %790 = vmatpush.msra.mxu0 %v765
    %791 = vmatpush.msra.mxu0 %v764
    %792 = vmatpush.msra.mxu0 %v763
    %793 = vmatpush.msra.mxu0 %v762
    %794 = vmatmul.f32.gmra.mxu0 %v760
    %v795 = vpop.f32.mrf.mxu0
    %v796 = vadd.f32 0.0, %v795
    %797 = vmatmul.f32.gmra.mxu0 %v761
    %v798 = vpop.f32.mrf.mxu0
    %v799 = vadd.f32 0.0, %v798
    %800 = vdwg.mxu0
    %v801 = vadd.f32 %v661, %v796
    %v802 = vadd.f32 %v662, %v799
    %v803 = vld [vmem:[%s12] sm:$0x1]
    %v805 = vperm.slane %v803, 0
    %v807 = vadd.f32 %v801, %v805
    %v808 = vadd.f32 %v802, %v805
    %v809 = vsel %vm110, %v807, 0.0
    %810 = vadd.xlane.f32.xlu0 %v809
    %v811 = vpop.xlane.xlu0 %810
    %v812 = vsel %vm114, %v808, 0.0
    %813 = vadd.xlane.f32.xlu0 %v812
    %v814 = vpop.xlane.xlu0 %813
    %v815 = vmul.f32 %v811, %v124
    %v816 = vmul.f32 %v814, %v124
    %v817 = vsub.f32 %v807, %v815
    %v818 = vsub.f32 %v808, %v816
    %v819 = vmul.f32 %v817, %v817
    %v820 = vmul.f32 %v818, %v818
    %v821 = vsel %vm110, %v819, 0.0
    %822 = vadd.xlane.f32.xlu0 %v821
    %v823 = vpop.xlane.xlu0 %822
    %v824 = vsel %vm114, %v820, 0.0
    %825 = vadd.xlane.f32.xlu0 %v824
    %v826 = vpop.xlane.xlu0 %825
    %v827 = vmul.f32 %v823, %v124
    %v828 = vmul.f32 %v826, %v124
    %v829 = vadd.f32 %v827, 1e-05
    %v830 = vadd.f32 %v828, 1e-05
    %v831 = vrsqrt.pop %v829
    %v832 = vmul.f32 %v831, %v829
    %v833 = vmul.f32 %v832, %v831
    %v834 = vmul.f32 0.5, %v833
    %v835 = vsub.f32 1.5, %v834
    %v836 = vmul.f32 %v831, %v835
    %vm837 = vweird.f32 %v829
    %vm838 = vweird.f32 %v831
    %vm839 = vmor %vm837, %vm838
    %v840 = vsel %vm839, %v831, %v836
    %v841 = vrsqrt.pop %v830
    %v842 = vmul.f32 %v841, %v830
    %v843 = vmul.f32 %v842, %v841
    %v844 = vmul.f32 0.5, %v843
    %v845 = vsub.f32 1.5, %v844
    %v846 = vmul.f32 %v841, %v845
    %vm847 = vweird.f32 %v830
    %vm848 = vweird.f32 %v841
    %vm849 = vmor %vm847, %vm848
    %v850 = vsel %vm849, %v841, %v846
    %v851 = vmul.f32 %v817, %v840
    %v852 = vmul.f32 %v818, %v850
    %s853 = scalar_lea.vmem %s5, 32
    %v854 = vld [vmem:[%s853] sm:$0xff]
    %v855 = vld [vmem:[%s853 + $0x8] sm:$0xff]
    %v856 = vld [vmem:[%s853 + $0x10] sm:$0xff]
    %v857 = vld [vmem:[%s853 + $0x18] sm:$0xff]
    %s858 = scalar_lea.vmem %s6, 1
    %v859 = vld [vmem:[%s858] sm:$0x1]
    %v861 = vperm.slane %v859, 0
    %v864 = vsel %vm110, %v851, 0
    %v867 = vsel %vm110, %v852, 0
    %869 = vmatpush.msra.mxu0 0.0
    %870 = vmatpush.msra.mxu0 0.0
    %871 = vmatpush.msra.mxu0 0.0
    %872 = vmatpush.msra.mxu0 0.0
    %873 = vmatpush.msra.mxu0 0.0
    %874 = vmatpush.msra.mxu0 0.0
    %875 = vmatpush.msra.mxu0 0.0
    %876 = vmatpush.msra.mxu0 0.0
    %877 = vmatpush.msra.mxu0 0.0
    %878 = vmatpush.msra.mxu0 0.0
    %879 = vmatpush.msra.mxu0 0.0
    %880 = vmatpush.msra.mxu0 0.0
    %881 = vmatpush.msra.mxu0 %v857
    %882 = vmatpush.msra.mxu0 %v856
    %883 = vmatpush.msra.mxu0 %v855
    %884 = vmatpush.msra.mxu0 %v854
    %885 = vmatmul.f32.gmra.mxu0 %v864
    %v886 = vpop.f32.mrf.mxu0
    %v887 = vadd.f32 %v861, %v886
    %888 = vmatmul.f32.gmra.mxu0 %v867
    %v889 = vpop.f32.mrf.mxu0
    %v890 = vadd.f32 %v861, %v889
    %891 = vdwg.mxu0
    %894 = vrot.lane.b32.xlu0 %v887, 96
    %v895 = vpop.permute.xlu0 %894
    %896 = vrot.lane.b32.xlu0 %v890, 96
    %v897 = vpop.permute.xlu0 %896
    %v898 = vsel %vm206, %v887, 0
    %v900 = vsel %vm206, %v890, 0
    %v902 = vsel %vm206, %v895, 0
    %v904 = vsel %vm206, %v897, 0
    %906 = vmatpush.xpose.msra.mxu0 0.0
    %907 = vmatpush.xpose.msra.mxu0 0.0
    %908 = vmatpush.xpose.msra.mxu0 0.0
    %909 = vmatpush.xpose.msra.mxu0 0.0
    %910 = vmatpush.xpose.msra.mxu0 0.0
    %911 = vmatpush.xpose.msra.mxu0 0.0
    %912 = vmatpush.xpose.msra.mxu0 0.0
    %913 = vmatpush.xpose.msra.mxu0 0.0
    %914 = vmatpush.xpose.msra.mxu0 0.0
    %915 = vmatpush.xpose.msra.mxu0 0.0
    %916 = vmatpush.xpose.msra.mxu0 0.0
    %917 = vmatpush.xpose.msra.mxu0 0.0
    %918 = vmatpush.xpose.msra.mxu0 0.0
    %919 = vmatpush.xpose.msra.mxu0 0.0
    %920 = vmatpush.xpose.msra.mxu0 %v904
    %921 = vmatpush.xpose.msra.mxu0 %v902
    %922 = vmatmul.f32.gmra.mxu0 %v898
    %v923 = vpop.f32.mrf.mxu0
    %v924 = vadd.f32 %v108, %v923
    %925 = vmatmul.f32.gmra.mxu0 %v900
    %v926 = vpop.f32.mrf.mxu0
    %v927 = vadd.f32 %v109, %v926
    %928 = vdwg.mxu0
    %v929 = vsel %vm238, %v924, -inf
    %930 = vmax.xlane.f32.xlu0 %v929
    %v931 = vpop.xlane.xlu0 %930
    %v932 = vsel %vm242, %v927, -inf
    %933 = vmax.xlane.f32.xlu0 %v932
    %v934 = vpop.xlane.xlu0 %933
    %v935 = vsub.f32 %v924, %v931
    %v936 = vsub.f32 %v927, %v934
    %v937 = vmul.f32 %v935, 1.442695
    %v938 = vpow.pop %v937
    %v939 = vmul.f32 %v936, 1.442695
    %v940 = vpow.pop %v939
    %v941 = vsel %vm238, %v938, 0.0
    %942 = vadd.xlane.f32.xlu0 %v941
    %v943 = vpop.xlane.xlu0 %942
    %v944 = vsel %vm242, %v940, 0.0
    %945 = vadd.xlane.f32.xlu0 %v944
    %v946 = vpop.xlane.xlu0 %945
    %v947 = vrcp.pop %v943
    %v948 = vrcp.pop %v946
    %v949 = vmul.f32 %v938, %v947
    %v950 = vmul.f32 %v940, %v948
    %951 = vrot.lane.b32.xlu0 %v887, 64
    %v952 = vpop.permute.xlu0 %951
    %953 = vrot.lane.b32.xlu0 %v890, 64
    %v954 = vpop.permute.xlu0 %953
    %v957 = vsel %vm238, %v949, 0
    %v960 = vsel %vm238, %v950, 0
    %v962 = vsel %vm273, %v954, 0
    %964 = vmatpush.msra.mxu0 0.0
    %965 = vmatpush.msra.mxu0 0.0
    %966 = vmatpush.msra.mxu0 0.0
    %967 = vmatpush.msra.mxu0 0.0
    %968 = vmatpush.msra.mxu0 0.0
    %969 = vmatpush.msra.mxu0 0.0
    %970 = vmatpush.msra.mxu0 0.0
    %971 = vmatpush.msra.mxu0 0.0
    %972 = vmatpush.msra.mxu0 0.0
    %973 = vmatpush.msra.mxu0 0.0
    %974 = vmatpush.msra.mxu0 0.0
    %975 = vmatpush.msra.mxu0 0.0
    %976 = vmatpush.msra.mxu0 0.0
    %977 = vmatpush.msra.mxu0 0.0
    %978 = vmatpush.msra.mxu0 %v962
    %979 = vmatpush.msra.mxu0 %v952
    %980 = vmatmul.f32.gmra.mxu0 %v957
    %v981 = vpop.f32.mrf.mxu0
    %v982 = vadd.f32 0.0, %v981
    %983 = vmatmul.f32.gmra.mxu0 %v960
    %v984 = vpop.f32.mrf.mxu0
    %v985 = vadd.f32 0.0, %v984
    %986 = vdwg.mxu0
    %987 = vrot.lane.b32.xlu0 %v887, 120
    %v988 = vpop.permute.xlu0 %987
    %989 = vrot.lane.b32.xlu0 %v890, 120
    %v990 = vpop.permute.xlu0 %989
    %991 = vrot.lane.b32.xlu0 %v887, 88
    %v992 = vpop.permute.xlu0 %991
    %993 = vrot.lane.b32.xlu0 %v890, 88
    %v994 = vpop.permute.xlu0 %993
    %v995 = vsel %vm206, %v988, 0
    %v997 = vsel %vm206, %v990, 0
    %v999 = vsel %vm206, %v992, 0
    %v1001 = vsel %vm206, %v994, 0
    %1003 = vmatpush.xpose.msra.mxu0 0.0
    %1004 = vmatpush.xpose.msra.mxu0 0.0
    %1005 = vmatpush.xpose.msra.mxu0 0.0
    %1006 = vmatpush.xpose.msra.mxu0 0.0
    %1007 = vmatpush.xpose.msra.mxu0 0.0
    %1008 = vmatpush.xpose.msra.mxu0 0.0
    %1009 = vmatpush.xpose.msra.mxu0 0.0
    %1010 = vmatpush.xpose.msra.mxu0 0.0
    %1011 = vmatpush.xpose.msra.mxu0 0.0
    %1012 = vmatpush.xpose.msra.mxu0 0.0
    %1013 = vmatpush.xpose.msra.mxu0 0.0
    %1014 = vmatpush.xpose.msra.mxu0 0.0
    %1015 = vmatpush.xpose.msra.mxu0 0.0
    %1016 = vmatpush.xpose.msra.mxu0 0.0
    %1017 = vmatpush.xpose.msra.mxu0 %v1001
    %1018 = vmatpush.xpose.msra.mxu0 %v999
    %1019 = vmatmul.f32.gmra.mxu0 %v995
    %v1020 = vpop.f32.mrf.mxu0
    %v1021 = vadd.f32 %v108, %v1020
    %1022 = vmatmul.f32.gmra.mxu0 %v997
    %v1023 = vpop.f32.mrf.mxu0
    %v1024 = vadd.f32 %v109, %v1023
    %1025 = vdwg.mxu0
    %v1026 = vsel %vm238, %v1021, -inf
    %1027 = vmax.xlane.f32.xlu0 %v1026
    %v1028 = vpop.xlane.xlu0 %1027
    %v1029 = vsel %vm242, %v1024, -inf
    %1030 = vmax.xlane.f32.xlu0 %v1029
    %v1031 = vpop.xlane.xlu0 %1030
    %v1032 = vsub.f32 %v1021, %v1028
    %v1033 = vsub.f32 %v1024, %v1031
    %v1034 = vmul.f32 %v1032, 1.442695
    %v1035 = vpow.pop %v1034
    %v1036 = vmul.f32 %v1033, 1.442695
    %v1037 = vpow.pop %v1036
    %v1038 = vsel %vm238, %v1035, 0.0
    %1039 = vadd.xlane.f32.xlu0 %v1038
    %v1040 = vpop.xlane.xlu0 %1039
    %v1041 = vsel %vm242, %v1037, 0.0
    %1042 = vadd.xlane.f32.xlu0 %v1041
    %v1043 = vpop.xlane.xlu0 %1042
    %v1044 = vrcp.pop %v1040
    %v1045 = vrcp.pop %v1043
    %v1046 = vmul.f32 %v1035, %v1044
    %v1047 = vmul.f32 %v1037, %v1045
    %1048 = vrot.lane.b32.xlu0 %v887, 56
    %v1049 = vpop.permute.xlu0 %1048
    %1050 = vrot.lane.b32.xlu0 %v890, 56
    %v1051 = vpop.permute.xlu0 %1050
    %v1054 = vsel %vm238, %v1046, 0
    %v1057 = vsel %vm238, %v1047, 0
    %v1059 = vsel %vm273, %v1051, 0
    %1061 = vmatpush.msra.mxu0 0.0
    %1062 = vmatpush.msra.mxu0 0.0
    %1063 = vmatpush.msra.mxu0 0.0
    %1064 = vmatpush.msra.mxu0 0.0
    %1065 = vmatpush.msra.mxu0 0.0
    %1066 = vmatpush.msra.mxu0 0.0
    %1067 = vmatpush.msra.mxu0 0.0
    %1068 = vmatpush.msra.mxu0 0.0
    %1069 = vmatpush.msra.mxu0 0.0
    %1070 = vmatpush.msra.mxu0 0.0
    %1071 = vmatpush.msra.mxu0 0.0
    %1072 = vmatpush.msra.mxu0 0.0
    %1073 = vmatpush.msra.mxu0 0.0
    %1074 = vmatpush.msra.mxu0 0.0
    %1075 = vmatpush.msra.mxu0 %v1059
    %1076 = vmatpush.msra.mxu0 %v1049
    %1077 = vmatmul.f32.gmra.mxu0 %v1054
    %v1078 = vpop.f32.mrf.mxu0
    %v1079 = vadd.f32 0.0, %v1078
    %1080 = vmatmul.f32.gmra.mxu0 %v1057
    %v1081 = vpop.f32.mrf.mxu0
    %v1082 = vadd.f32 0.0, %v1081
    %1083 = vdwg.mxu0
    %1084 = vrot.lane.b32.xlu0 %v887, 112
    %v1085 = vpop.permute.xlu0 %1084
    %1086 = vrot.lane.b32.xlu0 %v890, 112
    %v1087 = vpop.permute.xlu0 %1086
    %1088 = vrot.lane.b32.xlu0 %v887, 80
    %v1089 = vpop.permute.xlu0 %1088
    %1090 = vrot.lane.b32.xlu0 %v890, 80
    %v1091 = vpop.permute.xlu0 %1090
    %v1092 = vsel %vm206, %v1085, 0
    %v1094 = vsel %vm206, %v1087, 0
    %v1096 = vsel %vm206, %v1089, 0
    %v1098 = vsel %vm206, %v1091, 0
    %1100 = vmatpush.xpose.msra.mxu0 0.0
    %1101 = vmatpush.xpose.msra.mxu0 0.0
    %1102 = vmatpush.xpose.msra.mxu0 0.0
    %1103 = vmatpush.xpose.msra.mxu0 0.0
    %1104 = vmatpush.xpose.msra.mxu0 0.0
    %1105 = vmatpush.xpose.msra.mxu0 0.0
    %1106 = vmatpush.xpose.msra.mxu0 0.0
    %1107 = vmatpush.xpose.msra.mxu0 0.0
    %1108 = vmatpush.xpose.msra.mxu0 0.0
    %1109 = vmatpush.xpose.msra.mxu0 0.0
    %1110 = vmatpush.xpose.msra.mxu0 0.0
    %1111 = vmatpush.xpose.msra.mxu0 0.0
    %1112 = vmatpush.xpose.msra.mxu0 0.0
    %1113 = vmatpush.xpose.msra.mxu0 0.0
    %1114 = vmatpush.xpose.msra.mxu0 %v1098
    %1115 = vmatpush.xpose.msra.mxu0 %v1096
    %1116 = vmatmul.f32.gmra.mxu0 %v1092
    %v1117 = vpop.f32.mrf.mxu0
    %v1118 = vadd.f32 %v108, %v1117
    %1119 = vmatmul.f32.gmra.mxu0 %v1094
    %v1120 = vpop.f32.mrf.mxu0
    %v1121 = vadd.f32 %v109, %v1120
    %1122 = vdwg.mxu0
    %v1123 = vsel %vm238, %v1118, -inf
    %1124 = vmax.xlane.f32.xlu0 %v1123
    %v1125 = vpop.xlane.xlu0 %1124
    %v1126 = vsel %vm242, %v1121, -inf
    %1127 = vmax.xlane.f32.xlu0 %v1126
    %v1128 = vpop.xlane.xlu0 %1127
    %v1129 = vsub.f32 %v1118, %v1125
    %v1130 = vsub.f32 %v1121, %v1128
    %v1131 = vmul.f32 %v1129, 1.442695
    %v1132 = vpow.pop %v1131
    %v1133 = vmul.f32 %v1130, 1.442695
    %v1134 = vpow.pop %v1133
    %v1135 = vsel %vm238, %v1132, 0.0
    %1136 = vadd.xlane.f32.xlu0 %v1135
    %v1137 = vpop.xlane.xlu0 %1136
    %v1138 = vsel %vm242, %v1134, 0.0
    %1139 = vadd.xlane.f32.xlu0 %v1138
    %v1140 = vpop.xlane.xlu0 %1139
    %v1141 = vrcp.pop %v1137
    %v1142 = vrcp.pop %v1140
    %v1143 = vmul.f32 %v1132, %v1141
    %v1144 = vmul.f32 %v1134, %v1142
    %1145 = vrot.lane.b32.xlu0 %v887, 48
    %v1146 = vpop.permute.xlu0 %1145
    %1147 = vrot.lane.b32.xlu0 %v890, 48
    %v1148 = vpop.permute.xlu0 %1147
    %v1151 = vsel %vm238, %v1143, 0
    %v1154 = vsel %vm238, %v1144, 0
    %v1156 = vsel %vm273, %v1148, 0
    %1158 = vmatpush.msra.mxu0 0.0
    %1159 = vmatpush.msra.mxu0 0.0
    %1160 = vmatpush.msra.mxu0 0.0
    %1161 = vmatpush.msra.mxu0 0.0
    %1162 = vmatpush.msra.mxu0 0.0
    %1163 = vmatpush.msra.mxu0 0.0
    %1164 = vmatpush.msra.mxu0 0.0
    %1165 = vmatpush.msra.mxu0 0.0
    %1166 = vmatpush.msra.mxu0 0.0
    %1167 = vmatpush.msra.mxu0 0.0
    %1168 = vmatpush.msra.mxu0 0.0
    %1169 = vmatpush.msra.mxu0 0.0
    %1170 = vmatpush.msra.mxu0 0.0
    %1171 = vmatpush.msra.mxu0 0.0
    %1172 = vmatpush.msra.mxu0 %v1156
    %1173 = vmatpush.msra.mxu0 %v1146
    %1174 = vmatmul.f32.gmra.mxu0 %v1151
    %v1175 = vpop.f32.mrf.mxu0
    %v1176 = vadd.f32 0.0, %v1175
    %1177 = vmatmul.f32.gmra.mxu0 %v1154
    %v1178 = vpop.f32.mrf.mxu0
    %v1179 = vadd.f32 0.0, %v1178
    %1180 = vdwg.mxu0
    %1181 = vrot.lane.b32.xlu0 %v887, 104
    %v1182 = vpop.permute.xlu0 %1181
    %1183 = vrot.lane.b32.xlu0 %v890, 104
    %v1184 = vpop.permute.xlu0 %1183
    %1185 = vrot.lane.b32.xlu0 %v887, 72
    %v1186 = vpop.permute.xlu0 %1185
    %1187 = vrot.lane.b32.xlu0 %v890, 72
    %v1188 = vpop.permute.xlu0 %1187
    %v1189 = vsel %vm206, %v1182, 0
    %v1191 = vsel %vm206, %v1184, 0
    %v1193 = vsel %vm206, %v1186, 0
    %v1195 = vsel %vm206, %v1188, 0
    %1197 = vmatpush.xpose.msra.mxu0 0.0
    %1198 = vmatpush.xpose.msra.mxu0 0.0
    %1199 = vmatpush.xpose.msra.mxu0 0.0
    %1200 = vmatpush.xpose.msra.mxu0 0.0
    %1201 = vmatpush.xpose.msra.mxu0 0.0
    %1202 = vmatpush.xpose.msra.mxu0 0.0
    %1203 = vmatpush.xpose.msra.mxu0 0.0
    %1204 = vmatpush.xpose.msra.mxu0 0.0
    %1205 = vmatpush.xpose.msra.mxu0 0.0
    %1206 = vmatpush.xpose.msra.mxu0 0.0
    %1207 = vmatpush.xpose.msra.mxu0 0.0
    %1208 = vmatpush.xpose.msra.mxu0 0.0
    %1209 = vmatpush.xpose.msra.mxu0 0.0
    %1210 = vmatpush.xpose.msra.mxu0 0.0
    %1211 = vmatpush.xpose.msra.mxu0 %v1195
    %1212 = vmatpush.xpose.msra.mxu0 %v1193
    %1213 = vmatmul.f32.gmra.mxu0 %v1189
    %v1214 = vpop.f32.mrf.mxu0
    %v1215 = vadd.f32 %v108, %v1214
    %1216 = vmatmul.f32.gmra.mxu0 %v1191
    %v1217 = vpop.f32.mrf.mxu0
    %v1218 = vadd.f32 %v109, %v1217
    %1219 = vdwg.mxu0
    %v1220 = vsel %vm238, %v1215, -inf
    %1221 = vmax.xlane.f32.xlu0 %v1220
    %v1222 = vpop.xlane.xlu0 %1221
    %v1223 = vsel %vm242, %v1218, -inf
    %1224 = vmax.xlane.f32.xlu0 %v1223
    %v1225 = vpop.xlane.xlu0 %1224
    %v1226 = vsub.f32 %v1215, %v1222
    %v1227 = vsub.f32 %v1218, %v1225
    %v1228 = vmul.f32 %v1226, 1.442695
    %v1229 = vpow.pop %v1228
    %v1230 = vmul.f32 %v1227, 1.442695
    %v1231 = vpow.pop %v1230
    %v1232 = vsel %vm238, %v1229, 0.0
    %1233 = vadd.xlane.f32.xlu0 %v1232
    %v1234 = vpop.xlane.xlu0 %1233
    %v1235 = vsel %vm242, %v1231, 0.0
    %1236 = vadd.xlane.f32.xlu0 %v1235
    %v1237 = vpop.xlane.xlu0 %1236
    %v1238 = vrcp.pop %v1234
    %v1239 = vrcp.pop %v1237
    %v1240 = vmul.f32 %v1229, %v1238
    %v1241 = vmul.f32 %v1231, %v1239
    %1242 = vrot.lane.b32.xlu0 %v887, 40
    %v1243 = vpop.permute.xlu0 %1242
    %1244 = vrot.lane.b32.xlu0 %v890, 40
    %v1245 = vpop.permute.xlu0 %1244
    %v1248 = vsel %vm238, %v1240, 0
    %v1251 = vsel %vm238, %v1241, 0
    %v1253 = vsel %vm273, %v1245, 0
    %1255 = vmatpush.msra.mxu0 0.0
    %1256 = vmatpush.msra.mxu0 0.0
    %1257 = vmatpush.msra.mxu0 0.0
    %1258 = vmatpush.msra.mxu0 0.0
    %1259 = vmatpush.msra.mxu0 0.0
    %1260 = vmatpush.msra.mxu0 0.0
    %1261 = vmatpush.msra.mxu0 0.0
    %1262 = vmatpush.msra.mxu0 0.0
    %1263 = vmatpush.msra.mxu0 0.0
    %1264 = vmatpush.msra.mxu0 0.0
    %1265 = vmatpush.msra.mxu0 0.0
    %1266 = vmatpush.msra.mxu0 0.0
    %1267 = vmatpush.msra.mxu0 0.0
    %1268 = vmatpush.msra.mxu0 0.0
    %1269 = vmatpush.msra.mxu0 %v1253
    %1270 = vmatpush.msra.mxu0 %v1243
    %1271 = vmatmul.f32.gmra.mxu0 %v1248
    %v1272 = vpop.f32.mrf.mxu0
    %v1273 = vadd.f32 0.0, %v1272
    %1274 = vmatmul.f32.gmra.mxu0 %v1251
    %v1275 = vpop.f32.mrf.mxu0
    %v1276 = vadd.f32 0.0, %v1275
    %1277 = vdwg.mxu0
    %1280 = vrot.lane.b32.xlu0 %v1079, 8
    %v1281 = vpop.permute.xlu0 %1280
    %1282 = vrot.lane.b32.xlu0 %v1082, 8
    %v1283 = vpop.permute.xlu0 %1282
    %1288 = vrot.lane.b32.xlu0 %v1176, 16
    %v1289 = vpop.permute.xlu0 %1288
    %1290 = vrot.lane.b32.xlu0 %v1179, 16
    %v1291 = vpop.permute.xlu0 %1290
    %1296 = vrot.lane.b32.xlu0 %v1273, 24
    %v1297 = vpop.permute.xlu0 %1296
    %1298 = vrot.lane.b32.xlu0 %v1276, 24
    %v1299 = vpop.permute.xlu0 %1298
    %v1302 = vsel %vm206, %v982, %v1281
    %v1303 = vsel %vm206, %v985, %v1283
    %v1304 = vsel %vm616, %v1302, %v1289
    %v1305 = vsel %vm616, %v1303, %v1291
    %v1306 = vsel %vm619, %v1304, %v1297
    %v1307 = vsel %vm619, %v1305, %v1299
    %s1308 = scalar_lea.vmem %s7, 32
    %v1309 = vld [vmem:[%s1308] sm:$0xff]
    %v1310 = vld [vmem:[%s1308 + $0x8] sm:$0xff]
    %v1311 = vld [vmem:[%s1308 + $0x10] sm:$0xff]
    %v1312 = vld [vmem:[%s1308 + $0x18] sm:$0xff]
    %v1314 = vsel %vm110, %v1306, 0
    %v1317 = vsel %vm110, %v1307, 0
    %1319 = vmatpush.msra.mxu0 0.0
    %1320 = vmatpush.msra.mxu0 0.0
    %1321 = vmatpush.msra.mxu0 0.0
    %1322 = vmatpush.msra.mxu0 0.0
    %1323 = vmatpush.msra.mxu0 0.0
    %1324 = vmatpush.msra.mxu0 0.0
    %1325 = vmatpush.msra.mxu0 0.0
    %1326 = vmatpush.msra.mxu0 0.0
    %1327 = vmatpush.msra.mxu0 0.0
    %1328 = vmatpush.msra.mxu0 0.0
    %1329 = vmatpush.msra.mxu0 0.0
    %1330 = vmatpush.msra.mxu0 0.0
    %1331 = vmatpush.msra.mxu0 %v1312
    %1332 = vmatpush.msra.mxu0 %v1311
    %1333 = vmatpush.msra.mxu0 %v1310
    %1334 = vmatpush.msra.mxu0 %v1309
    %1335 = vmatmul.f32.gmra.mxu0 %v1314
    %v1336 = vpop.f32.mrf.mxu0
    %v1337 = vadd.f32 0.0, %v1336
    %1338 = vmatmul.f32.gmra.mxu0 %v1317
    %v1339 = vpop.f32.mrf.mxu0
    %v1340 = vadd.f32 0.0, %v1339
    %1341 = vdwg.mxu0
    %v1342 = vadd.f32 %v807, %v1337
    %v1343 = vadd.f32 %v808, %v1340
    %s1344 = scalar_lea.vmem %s8, 1
    %v1345 = vld [vmem:[%s1344] sm:$0x1]
    %v1347 = vperm.slane %v1345, 0
    %v1349 = vadd.f32 %v1342, %v1347
    %v1350 = vadd.f32 %v1343, %v1347
    %v1351 = vsel %vm110, %v1349, 0.0
    %1352 = vadd.xlane.f32.xlu0 %v1351
    %v1353 = vpop.xlane.xlu0 %1352
    %v1354 = vsel %vm114, %v1350, 0.0
    %1355 = vadd.xlane.f32.xlu0 %v1354
    %v1356 = vpop.xlane.xlu0 %1355
    %v1357 = vmul.f32 %v1353, %v124
    %v1358 = vmul.f32 %v1356, %v124
    %v1359 = vsub.f32 %v1349, %v1357
    %v1360 = vsub.f32 %v1350, %v1358
    %v1361 = vmul.f32 %v1359, %v1359
    %v1362 = vmul.f32 %v1360, %v1360
    %v1363 = vsel %vm110, %v1361, 0.0
    %1364 = vadd.xlane.f32.xlu0 %v1363
    %v1365 = vpop.xlane.xlu0 %1364
    %v1366 = vsel %vm114, %v1362, 0.0
    %1367 = vadd.xlane.f32.xlu0 %v1366
    %v1368 = vpop.xlane.xlu0 %1367
    %v1369 = vmul.f32 %v1365, %v124
    %v1370 = vmul.f32 %v1368, %v124
    %v1371 = vadd.f32 %v1369, 1e-05
    %v1372 = vadd.f32 %v1370, 1e-05
    %v1373 = vrsqrt.pop %v1371
    %v1374 = vmul.f32 %v1373, %v1371
    %v1375 = vmul.f32 %v1374, %v1373
    %v1376 = vmul.f32 0.5, %v1375
    %v1377 = vsub.f32 1.5, %v1376
    %v1378 = vmul.f32 %v1373, %v1377
    %vm1379 = vweird.f32 %v1371
    %vm1380 = vweird.f32 %v1373
    %vm1381 = vmor %vm1379, %vm1380
    %v1382 = vsel %vm1381, %v1373, %v1378
    %v1383 = vrsqrt.pop %v1372
    %v1384 = vmul.f32 %v1383, %v1372
    %v1385 = vmul.f32 %v1384, %v1383
    %v1386 = vmul.f32 0.5, %v1385
    %v1387 = vsub.f32 1.5, %v1386
    %v1388 = vmul.f32 %v1383, %v1387
    %vm1389 = vweird.f32 %v1372
    %vm1390 = vweird.f32 %v1383
    %vm1391 = vmor %vm1389, %vm1390
    %v1392 = vsel %vm1391, %v1383, %v1388
    %v1393 = vmul.f32 %v1359, %v1382
    %v1394 = vmul.f32 %v1360, %v1392
    %s1395 = scalar_lea.vmem %s9, 32
    %v1396 = vld [vmem:[%s1395] sm:$0xff]
    %v1397 = vld [vmem:[%s1395 + $0x8] sm:$0xff]
    %v1398 = vld [vmem:[%s1395 + $0x10] sm:$0xff]
    %v1399 = vld [vmem:[%s1395 + $0x18] sm:$0xff]
    %s1400 = scalar_lea.vmem %s10, 1
    %v1401 = vld [vmem:[%s1400] sm:$0x1]
    %v1403 = vperm.slane %v1401, 0
    %v1406 = vsel %vm110, %v1393, 0
    %v1409 = vsel %vm110, %v1394, 0
    %1411 = vmatpush.msra.mxu0 0.0
    %1412 = vmatpush.msra.mxu0 0.0
    %1413 = vmatpush.msra.mxu0 0.0
    %1414 = vmatpush.msra.mxu0 0.0
    %1415 = vmatpush.msra.mxu0 0.0
    %1416 = vmatpush.msra.mxu0 0.0
    %1417 = vmatpush.msra.mxu0 0.0
    %1418 = vmatpush.msra.mxu0 0.0
    %1419 = vmatpush.msra.mxu0 0.0
    %1420 = vmatpush.msra.mxu0 0.0
    %1421 = vmatpush.msra.mxu0 0.0
    %1422 = vmatpush.msra.mxu0 0.0
    %1423 = vmatpush.msra.mxu0 %v1399
    %1424 = vmatpush.msra.mxu0 %v1398
    %1425 = vmatpush.msra.mxu0 %v1397
    %1426 = vmatpush.msra.mxu0 %v1396
    %1427 = vmatmul.f32.gmra.mxu0 %v1406
    %v1428 = vpop.f32.mrf.mxu0
    %v1429 = vadd.f32 %v1403, %v1428
    %1430 = vmatmul.f32.gmra.mxu0 %v1409
    %v1431 = vpop.f32.mrf.mxu0
    %v1432 = vadd.f32 %v1403, %v1431
    %1433 = vdwg.mxu0
    %v1434 = vmul.f32 %v1429, 0.5
    %v1435 = vmul.f32 %v1432, 0.5
    %v1436 = vmul.f32 %v1429, 0.044715
    %v1437 = vmul.f32 %v1432, 0.044715
    %v1438 = vmul.f32 %v1436, %v1429
    %v1439 = vmul.f32 %v1437, %v1432
    %v1440 = vmul.f32 %v1438, %v1429
    %v1441 = vmul.f32 %v1439, %v1432
    %v1442 = vadd.f32 %v1429, %v1440
    %v1443 = vadd.f32 %v1432, %v1441
    %v1444 = vmul.f32 %v1442, 0.7978845
    %v1445 = vmul.f32 %v1443, 0.7978845
    %v1446 = vtanh.pop %v1444
    %v1447 = vtanh.pop %v1445
    %v1448 = vadd.f32 %v1446, 1.0
    %v1449 = vadd.f32 %v1447, 1.0
    %v1450 = vmul.f32 %v1434, %v1448
    %v1451 = vmul.f32 %v1435, %v1449
    %s1452 = scalar_lea.vmem %s11, 128
    %v1453 = vld [vmem:[%s1452] sm:$0xff]
    %v1454 = vld [vmem:[%s1452 + $0x8] sm:$0xff]
    %v1455 = vld [vmem:[%s1452 + $0x10] sm:$0xff]
    %v1456 = vld [vmem:[%s1452 + $0x18] sm:$0xff]
    %v1457 = vld [vmem:[%s1452 + $0x20] sm:$0xff]
    %v1458 = vld [vmem:[%s1452 + $0x28] sm:$0xff]
    %v1459 = vld [vmem:[%s1452 + $0x30] sm:$0xff]
    %v1460 = vld [vmem:[%s1452 + $0x38] sm:$0xff]
    %v1461 = vld [vmem:[%s1452 + $0x40] sm:$0xff]
    %v1462 = vld [vmem:[%s1452 + $0x48] sm:$0xff]
    %v1463 = vld [vmem:[%s1452 + $0x50] sm:$0xff]
    %v1464 = vld [vmem:[%s1452 + $0x58] sm:$0xff]
    %v1465 = vld [vmem:[%s1452 + $0x60] sm:$0xff]
    %v1466 = vld [vmem:[%s1452 + $0x68] sm:$0xff]
    %v1467 = vld [vmem:[%s1452 + $0x70] sm:$0xff]
    %v1468 = vld [vmem:[%s1452 + $0x78] sm:$0xff]
    %1469 = vmatpush.msra.mxu0 %v1468
    %1470 = vmatpush.msra.mxu0 %v1467
    %1471 = vmatpush.msra.mxu0 %v1466
    %1472 = vmatpush.msra.mxu0 %v1465
    %1473 = vmatpush.msra.mxu0 %v1464
    %1474 = vmatpush.msra.mxu0 %v1463
    %1475 = vmatpush.msra.mxu0 %v1462
    %1476 = vmatpush.msra.mxu0 %v1461
    %1477 = vmatpush.msra.mxu0 %v1460
    %1478 = vmatpush.msra.mxu0 %v1459
    %1479 = vmatpush.msra.mxu0 %v1458
    %1480 = vmatpush.msra.mxu0 %v1457
    %1481 = vmatpush.msra.mxu0 %v1456
    %1482 = vmatpush.msra.mxu0 %v1455
    %1483 = vmatpush.msra.mxu0 %v1454
    %1484 = vmatpush.msra.mxu0 %v1453
    %1485 = vmatmul.f32.gmra.mxu0 %v1450
    %v1486 = vpop.f32.mrf.mxu0
    %v1487 = vadd.f32 0.0, %v1486
    %1488 = vmatmul.f32.gmra.mxu0 %v1451
    %v1489 = vpop.f32.mrf.mxu0
    %v1490 = vadd.f32 0.0, %v1489
    %1491 = vdwg.mxu0
    %v1492 = vadd.f32 %v1349, %v1487
    %v1493 = vadd.f32 %v1350, %v1490
    %s1494 = scalar_lea.vmem %s12, 1
    %v1495 = vld [vmem:[%s1494] sm:$0x1]
    %v1497 = vperm.slane %v1495, 0
    %v1499 = vadd.f32 %v1492, %v1497
    %v1500 = vadd.f32 %v1493, %v1497
    %v1501 = vsel %vm110, %v1499, 0.0
    %1502 = vadd.xlane.f32.xlu0 %v1501
    %v1503 = vpop.xlane.xlu0 %1502
    %v1504 = vsel %vm114, %v1500, 0.0
    %1505 = vadd.xlane.f32.xlu0 %v1504
    %v1506 = vpop.xlane.xlu0 %1505
    %v1507 = vmul.f32 %v1503, %v124
    %v1508 = vmul.f32 %v1506, %v124
    %v1509 = vsub.f32 %v1499, %v1507
    %v1510 = vsub.f32 %v1500, %v1508
    %v1511 = vmul.f32 %v1509, %v1509
    %v1512 = vmul.f32 %v1510, %v1510
    %v1513 = vsel %vm110, %v1511, 0.0
    %1514 = vadd.xlane.f32.xlu0 %v1513
    %v1515 = vpop.xlane.xlu0 %1514
    %v1516 = vsel %vm114, %v1512, 0.0
    %1517 = vadd.xlane.f32.xlu0 %v1516
    %v1518 = vpop.xlane.xlu0 %1517
    %v1519 = vmul.f32 %v1515, %v124
    %v1520 = vmul.f32 %v1518, %v124
    %v1521 = vadd.f32 %v1519, 1e-05
    %v1522 = vadd.f32 %v1520, 1e-05
    %v1523 = vrsqrt.pop %v1521
    %v1524 = vmul.f32 %v1523, %v1521
    %v1525 = vmul.f32 %v1524, %v1523
    %v1526 = vmul.f32 0.5, %v1525
    %v1527 = vsub.f32 1.5, %v1526
    %v1528 = vmul.f32 %v1523, %v1527
    %vm1529 = vweird.f32 %v1521
    %vm1530 = vweird.f32 %v1523
    %vm1531 = vmor %vm1529, %vm1530
    %v1532 = vsel %vm1531, %v1523, %v1528
    %v1533 = vrsqrt.pop %v1522
    %v1534 = vmul.f32 %v1533, %v1522
    %v1535 = vmul.f32 %v1534, %v1533
    %v1536 = vmul.f32 0.5, %v1535
    %v1537 = vsub.f32 1.5, %v1536
    %v1538 = vmul.f32 %v1533, %v1537
    %vm1539 = vweird.f32 %v1522
    %vm1540 = vweird.f32 %v1533
    %vm1541 = vmor %vm1539, %vm1540
    %v1542 = vsel %vm1541, %v1533, %v1538
    %v1543 = vmul.f32 %v1509, %v1532
    %v1544 = vmul.f32 %v1510, %v1542
    %s1545 = scalar_lea.vmem %s5, 64
    %v1546 = vld [vmem:[%s1545] sm:$0xff]
    %v1547 = vld [vmem:[%s1545 + $0x8] sm:$0xff]
    %v1548 = vld [vmem:[%s1545 + $0x10] sm:$0xff]
    %v1549 = vld [vmem:[%s1545 + $0x18] sm:$0xff]
    %s1550 = scalar_lea.vmem %s6, 2
    %v1551 = vld [vmem:[%s1550] sm:$0x1]
    %v1553 = vperm.slane %v1551, 0
    %v1556 = vsel %vm110, %v1543, 0
    %v1559 = vsel %vm110, %v1544, 0
    %1561 = vmatpush.msra.mxu0 0.0
    %1562 = vmatpush.msra.mxu0 0.0
    %1563 = vmatpush.msra.mxu0 0.0
    %1564 = vmatpush.msra.mxu0 0.0
    %1565 = vmatpush.msra.mxu0 0.0
    %1566 = vmatpush.msra.mxu0 0.0
    %1567 = vmatpush.msra.mxu0 0.0
    %1568 = vmatpush.msra.mxu0 0.0
    %1569 = vmatpush.msra.mxu0 0.0
    %1570 = vmatpush.msra.mxu0 0.0
    %1571 = vmatpush.msra.mxu0 0.0
    %1572 = vmatpush.msra.mxu0 0.0
    %1573 = vmatpush.msra.mxu0 %v1549
    %1574 = vmatpush.msra.mxu0 %v1548
    %1575 = vmatpush.msra.mxu0 %v1547
    %1576 = vmatpush.msra.mxu0 %v1546
    %1577 = vmatmul.f32.gmra.mxu0 %v1556
    %v1578 = vpop.f32.mrf.mxu0
    %v1579 = vadd.f32 %v1553, %v1578
    %1580 = vmatmul.f32.gmra.mxu0 %v1559
    %v1581 = vpop.f32.mrf.mxu0
    %v1582 = vadd.f32 %v1553, %v1581
    %1583 = vdwg.mxu0
    %1586 = vrot.lane.b32.xlu0 %v1579, 96
    %v1587 = vpop.permute.xlu0 %1586
    %1588 = vrot.lane.b32.xlu0 %v1582, 96
    %v1589 = vpop.permute.xlu0 %1588
    %v1590 = vsel %vm206, %v1579, 0
    %v1592 = vsel %vm206, %v1582, 0
    %v1594 = vsel %vm206, %v1587, 0
    %v1596 = vsel %vm206, %v1589, 0
    %1598 = vmatpush.xpose.msra.mxu0 0.0
    %1599 = vmatpush.xpose.msra.mxu0 0.0
    %1600 = vmatpush.xpose.msra.mxu0 0.0
    %1601 = vmatpush.xpose.msra.mxu0 0.0
    %1602 = vmatpush.xpose.msra.mxu0 0.0
    %1603 = vmatpush.xpose.msra.mxu0 0.0
    %1604 = vmatpush.xpose.msra.mxu0 0.0
    %1605 = vmatpush.xpose.msra.mxu0 0.0
    %1606 = vmatpush.xpose.msra.mxu0 0.0
    %1607 = vmatpush.xpose.msra.mxu0 0.0
    %1608 = vmatpush.xpose.msra.mxu0 0.0
    %1609 = vmatpush.xpose.msra.mxu0 0.0
    %1610 = vmatpush.xpose.msra.mxu0 0.0
    %1611 = vmatpush.xpose.msra.mxu0 0.0
    %1612 = vmatpush.xpose.msra.mxu0 %v1596
    %1613 = vmatpush.xpose.msra.mxu0 %v1594
    %1614 = vmatmul.f32.gmra.mxu0 %v1590
    %v1615 = vpop.f32.mrf.mxu0
    %v1616 = vadd.f32 %v108, %v1615
    %1617 = vmatmul.f32.gmra.mxu0 %v1592
    %v1618 = vpop.f32.mrf.mxu0
    %v1619 = vadd.f32 %v109, %v1618
    %1620 = vdwg.mxu0
    %v1621 = vsel %vm238, %v1616, -inf
    %1622 = vmax.xlane.f32.xlu0 %v1621
    %v1623 = vpop.xlane.xlu0 %1622
    %v1624 = vsel %vm242, %v1619, -inf
    %1625 = vmax.xlane.f32.xlu0 %v1624
    %v1626 = vpop.xlane.xlu0 %1625
    %v1627 = vsub.f32 %v1616, %v1623
    %v1628 = vsub.f32 %v1619, %v1626
    %v1629 = vmul.f32 %v1627, 1.442695
    %v1630 = vpow.pop %v1629
    %v1631 = vmul.f32 %v1628, 1.442695
    %v1632 = vpow.pop %v1631
    %v1633 = vsel %vm238, %v1630, 0.0
    %1634 = vadd.xlane.f32.xlu0 %v1633
    %v1635 = vpop.xlane.xlu0 %1634
    %v1636 = vsel %vm242, %v1632, 0.0
    %1637 = vadd.xlane.f32.xlu0 %v1636
    %v1638 = vpop.xlane.xlu0 %1637
    %v1639 = vrcp.pop %v1635
    %v1640 = vrcp.pop %v1638
    %v1641 = vmul.f32 %v1630, %v1639
    %v1642 = vmul.f32 %v1632, %v1640
    %1643 = vrot.lane.b32.xlu0 %v1579, 64
    %v1644 = vpop.permute.xlu0 %1643
    %1645 = vrot.lane.b32.xlu0 %v1582, 64
    %v1646 = vpop.permute.xlu0 %1645
    %v1649 = vsel %vm238, %v1641, 0
    %v1652 = vsel %vm238, %v1642, 0
    %v1654 = vsel %vm273, %v1646, 0
    %1656 = vmatpush.msra.mxu0 0.0
    %1657 = vmatpush.msra.mxu0 0.0
    %1658 = vmatpush.msra.mxu0 0.0
    %1659 = vmatpush.msra.mxu0 0.0
    %1660 = vmatpush.msra.mxu0 0.0
    %1661 = vmatpush.msra.mxu0 0.0
    %1662 = vmatpush.msra.mxu0 0.0
    %1663 = vmatpush.msra.mxu0 0.0
    %1664 = vmatpush.msra.mxu0 0.0
    %1665 = vmatpush.msra.mxu0 0.0
    %1666 = vmatpush.msra.mxu0 0.0
    %1667 = vmatpush.msra.mxu0 0.0
    %1668 = vmatpush.msra.mxu0 0.0
    %1669 = vmatpush.msra.mxu0 0.0
    %1670 = vmatpush.msra.mxu0 %v1654
    %1671 = vmatpush.msra.mxu0 %v1644
    %1672 = vmatmul.f32.gmra.mxu0 %v1649
    %v1673 = vpop.f32.mrf.mxu0
    %v1674 = vadd.f32 0.0, %v1673
    %1675 = vmatmul.f32.gmra.mxu0 %v1652
    %v1676 = vpop.f32.mrf.mxu0
    %v1677 = vadd.f32 0.0, %v1676
    %1678 = vdwg.mxu0
    %1679 = vrot.lane.b32.xlu0 %v1579, 120
    %v1680 = vpop.permute.xlu0 %1679
    %1681 = vrot.lane.b32.xlu0 %v1582, 120
    %v1682 = vpop.permute.xlu0 %1681
    %1683 = vrot.lane.b32.xlu0 %v1579, 88
    %v1684 = vpop.permute.xlu0 %1683
    %1685 = vrot.lane.b32.xlu0 %v1582, 88
    %v1686 = vpop.permute.xlu0 %1685
    %v1687 = vsel %vm206, %v1680, 0
    %v1689 = vsel %vm206, %v1682, 0
    %v1691 = vsel %vm206, %v1684, 0
    %v1693 = vsel %vm206, %v1686, 0
    %1695 = vmatpush.xpose.msra.mxu0 0.0
    %1696 = vmatpush.xpose.msra.mxu0 0.0
    %1697 = vmatpush.xpose.msra.mxu0 0.0
    %1698 = vmatpush.xpose.msra.mxu0 0.0
    %1699 = vmatpush.xpose.msra.mxu0 0.0
    %1700 = vmatpush.xpose.msra.mxu0 0.0
    %1701 = vmatpush.xpose.msra.mxu0 0.0
    %1702 = vmatpush.xpose.msra.mxu0 0.0
    %1703 = vmatpush.xpose.msra.mxu0 0.0
    %1704 = vmatpush.xpose.msra.mxu0 0.0
    %1705 = vmatpush.xpose.msra.mxu0 0.0
    %1706 = vmatpush.xpose.msra.mxu0 0.0
    %1707 = vmatpush.xpose.msra.mxu0 0.0
    %1708 = vmatpush.xpose.msra.mxu0 0.0
    %1709 = vmatpush.xpose.msra.mxu0 %v1693
    %1710 = vmatpush.xpose.msra.mxu0 %v1691
    %1711 = vmatmul.f32.gmra.mxu0 %v1687
    %v1712 = vpop.f32.mrf.mxu0
    %v1713 = vadd.f32 %v108, %v1712
    %1714 = vmatmul.f32.gmra.mxu0 %v1689
    %v1715 = vpop.f32.mrf.mxu0
    %v1716 = vadd.f32 %v109, %v1715
    %1717 = vdwg.mxu0
    %v1718 = vsel %vm238, %v1713, -inf
    %1719 = vmax.xlane.f32.xlu0 %v1718
    %v1720 = vpop.xlane.xlu0 %1719
    %v1721 = vsel %vm242, %v1716, -inf
    %1722 = vmax.xlane.f32.xlu0 %v1721
    %v1723 = vpop.xlane.xlu0 %1722
    %v1724 = vsub.f32 %v1713, %v1720
    %v1725 = vsub.f32 %v1716, %v1723
    %v1726 = vmul.f32 %v1724, 1.442695
    %v1727 = vpow.pop %v1726
    %v1728 = vmul.f32 %v1725, 1.442695
    %v1729 = vpow.pop %v1728
    %v1730 = vsel %vm238, %v1727, 0.0
    %1731 = vadd.xlane.f32.xlu0 %v1730
    %v1732 = vpop.xlane.xlu0 %1731
    %v1733 = vsel %vm242, %v1729, 0.0
    %1734 = vadd.xlane.f32.xlu0 %v1733
    %v1735 = vpop.xlane.xlu0 %1734
    %v1736 = vrcp.pop %v1732
    %v1737 = vrcp.pop %v1735
    %v1738 = vmul.f32 %v1727, %v1736
    %v1739 = vmul.f32 %v1729, %v1737
    %1740 = vrot.lane.b32.xlu0 %v1579, 56
    %v1741 = vpop.permute.xlu0 %1740
    %1742 = vrot.lane.b32.xlu0 %v1582, 56
    %v1743 = vpop.permute.xlu0 %1742
    %v1746 = vsel %vm238, %v1738, 0
    %v1749 = vsel %vm238, %v1739, 0
    %v1751 = vsel %vm273, %v1743, 0
    %1753 = vmatpush.msra.mxu0 0.0
    %1754 = vmatpush.msra.mxu0 0.0
    %1755 = vmatpush.msra.mxu0 0.0
    %1756 = vmatpush.msra.mxu0 0.0
    %1757 = vmatpush.msra.mxu0 0.0
    %1758 = vmatpush.msra.mxu0 0.0
    %1759 = vmatpush.msra.mxu0 0.0
    %1760 = vmatpush.msra.mxu0 0.0
    %1761 = vmatpush.msra.mxu0 0.0
    %1762 = vmatpush.msra.mxu0 0.0
    %1763 = vmatpush.msra.mxu0 0.0
    %1764 = vmatpush.msra.mxu0 0.0
    %1765 = vmatpush.msra.mxu0 0.0
    %1766 = vmatpush.msra.mxu0 0.0
    %1767 = vmatpush.msra.mxu0 %v1751
    %1768 = vmatpush.msra.mxu0 %v1741
    %1769 = vmatmul.f32.gmra.mxu0 %v1746
    %v1770 = vpop.f32.mrf.mxu0
    %v1771 = vadd.f32 0.0, %v1770
    %1772 = vmatmul.f32.gmra.mxu0 %v1749
    %v1773 = vpop.f32.mrf.mxu0
    %v1774 = vadd.f32 0.0, %v1773
    %1775 = vdwg.mxu0
    %1776 = vrot.lane.b32.xlu0 %v1579, 112
    %v1777 = vpop.permute.xlu0 %1776
    %1778 = vrot.lane.b32.xlu0 %v1582, 112
    %v1779 = vpop.permute.xlu0 %1778
    %1780 = vrot.lane.b32.xlu0 %v1579, 80
    %v1781 = vpop.permute.xlu0 %1780
    %1782 = vrot.lane.b32.xlu0 %v1582, 80
    %v1783 = vpop.permute.xlu0 %1782
    %v1784 = vsel %vm206, %v1777, 0
    %v1786 = vsel %vm206, %v1779, 0
    %v1788 = vsel %vm206, %v1781, 0
    %v1790 = vsel %vm206, %v1783, 0
    %1792 = vmatpush.xpose.msra.mxu0 0.0
    %1793 = vmatpush.xpose.msra.mxu0 0.0
    %1794 = vmatpush.xpose.msra.mxu0 0.0
    %1795 = vmatpush.xpose.msra.mxu0 0.0
    %1796 = vmatpush.xpose.msra.mxu0 0.0
    %1797 = vmatpush.xpose.msra.mxu0 0.0
    %1798 = vmatpush.xpose.msra.mxu0 0.0
    %1799 = vmatpush.xpose.msra.mxu0 0.0
    %1800 = vmatpush.xpose.msra.mxu0 0.0
    %1801 = vmatpush.xpose.msra.mxu0 0.0
    %1802 = vmatpush.xpose.msra.mxu0 0.0
    %1803 = vmatpush.xpose.msra.mxu0 0.0
    %1804 = vmatpush.xpose.msra.mxu0 0.0
    %1805 = vmatpush.xpose.msra.mxu0 0.0
    %1806 = vmatpush.xpose.msra.mxu0 %v1790
    %1807 = vmatpush.xpose.msra.mxu0 %v1788
    %1808 = vmatmul.f32.gmra.mxu0 %v1784
    %v1809 = vpop.f32.mrf.mxu0
    %v1810 = vadd.f32 %v108, %v1809
    %1811 = vmatmul.f32.gmra.mxu0 %v1786
    %v1812 = vpop.f32.mrf.mxu0
    %v1813 = vadd.f32 %v109, %v1812
    %1814 = vdwg.mxu0
    %v1815 = vsel %vm238, %v1810, -inf
    %1816 = vmax.xlane.f32.xlu0 %v1815
    %v1817 = vpop.xlane.xlu0 %1816
    %v1818 = vsel %vm242, %v1813, -inf
    %1819 = vmax.xlane.f32.xlu0 %v1818
    %v1820 = vpop.xlane.xlu0 %1819
    %v1821 = vsub.f32 %v1810, %v1817
    %v1822 = vsub.f32 %v1813, %v1820
    %v1823 = vmul.f32 %v1821, 1.442695
    %v1824 = vpow.pop %v1823
    %v1825 = vmul.f32 %v1822, 1.442695
    %v1826 = vpow.pop %v1825
    %v1827 = vsel %vm238, %v1824, 0.0
    %1828 = vadd.xlane.f32.xlu0 %v1827
    %v1829 = vpop.xlane.xlu0 %1828
    %v1830 = vsel %vm242, %v1826, 0.0
    %1831 = vadd.xlane.f32.xlu0 %v1830
    %v1832 = vpop.xlane.xlu0 %1831
    %v1833 = vrcp.pop %v1829
    %v1834 = vrcp.pop %v1832
    %v1835 = vmul.f32 %v1824, %v1833
    %v1836 = vmul.f32 %v1826, %v1834
    %1837 = vrot.lane.b32.xlu0 %v1579, 48
    %v1838 = vpop.permute.xlu0 %1837
    %1839 = vrot.lane.b32.xlu0 %v1582, 48
    %v1840 = vpop.permute.xlu0 %1839
    %v1843 = vsel %vm238, %v1835, 0
    %v1846 = vsel %vm238, %v1836, 0
    %v1848 = vsel %vm273, %v1840, 0
    %1850 = vmatpush.msra.mxu0 0.0
    %1851 = vmatpush.msra.mxu0 0.0
    %1852 = vmatpush.msra.mxu0 0.0
    %1853 = vmatpush.msra.mxu0 0.0
    %1854 = vmatpush.msra.mxu0 0.0
    %1855 = vmatpush.msra.mxu0 0.0
    %1856 = vmatpush.msra.mxu0 0.0
    %1857 = vmatpush.msra.mxu0 0.0
    %1858 = vmatpush.msra.mxu0 0.0
    %1859 = vmatpush.msra.mxu0 0.0
    %1860 = vmatpush.msra.mxu0 0.0
    %1861 = vmatpush.msra.mxu0 0.0
    %1862 = vmatpush.msra.mxu0 0.0
    %1863 = vmatpush.msra.mxu0 0.0
    %1864 = vmatpush.msra.mxu0 %v1848
    %1865 = vmatpush.msra.mxu0 %v1838
    %1866 = vmatmul.f32.gmra.mxu0 %v1843
    %v1867 = vpop.f32.mrf.mxu0
    %v1868 = vadd.f32 0.0, %v1867
    %1869 = vmatmul.f32.gmra.mxu0 %v1846
    %v1870 = vpop.f32.mrf.mxu0
    %v1871 = vadd.f32 0.0, %v1870
    %1872 = vdwg.mxu0
    %1873 = vrot.lane.b32.xlu0 %v1579, 104
    %v1874 = vpop.permute.xlu0 %1873
    %1875 = vrot.lane.b32.xlu0 %v1582, 104
    %v1876 = vpop.permute.xlu0 %1875
    %1877 = vrot.lane.b32.xlu0 %v1579, 72
    %v1878 = vpop.permute.xlu0 %1877
    %1879 = vrot.lane.b32.xlu0 %v1582, 72
    %v1880 = vpop.permute.xlu0 %1879
    %v1881 = vsel %vm206, %v1874, 0
    %v1883 = vsel %vm206, %v1876, 0
    %v1885 = vsel %vm206, %v1878, 0
    %v1887 = vsel %vm206, %v1880, 0
    %1889 = vmatpush.xpose.msra.mxu0 0.0
    %1890 = vmatpush.xpose.msra.mxu0 0.0
    %1891 = vmatpush.xpose.msra.mxu0 0.0
    %1892 = vmatpush.xpose.msra.mxu0 0.0
    %1893 = vmatpush.xpose.msra.mxu0 0.0
    %1894 = vmatpush.xpose.msra.mxu0 0.0
    %1895 = vmatpush.xpose.msra.mxu0 0.0
    %1896 = vmatpush.xpose.msra.mxu0 0.0
    %1897 = vmatpush.xpose.msra.mxu0 0.0
    %1898 = vmatpush.xpose.msra.mxu0 0.0
    %1899 = vmatpush.xpose.msra.mxu0 0.0
    %1900 = vmatpush.xpose.msra.mxu0 0.0
    %1901 = vmatpush.xpose.msra.mxu0 0.0
    %1902 = vmatpush.xpose.msra.mxu0 0.0
    %1903 = vmatpush.xpose.msra.mxu0 %v1887
    %1904 = vmatpush.xpose.msra.mxu0 %v1885
    %1905 = vmatmul.f32.gmra.mxu0 %v1881
    %v1906 = vpop.f32.mrf.mxu0
    %v1907 = vadd.f32 %v108, %v1906
    %1908 = vmatmul.f32.gmra.mxu0 %v1883
    %v1909 = vpop.f32.mrf.mxu0
    %v1910 = vadd.f32 %v109, %v1909
    %1911 = vdwg.mxu0
    %v1912 = vsel %vm238, %v1907, -inf
    %1913 = vmax.xlane.f32.xlu0 %v1912
    %v1914 = vpop.xlane.xlu0 %1913
    %v1915 = vsel %vm242, %v1910, -inf
    %1916 = vmax.xlane.f32.xlu0 %v1915
    %v1917 = vpop.xlane.xlu0 %1916
    %v1918 = vsub.f32 %v1907, %v1914
    %v1919 = vsub.f32 %v1910, %v1917
    %v1920 = vmul.f32 %v1918, 1.442695
    %v1921 = vpow.pop %v1920
    %v1922 = vmul.f32 %v1919, 1.442695
    %v1923 = vpow.pop %v1922
    %v1924 = vsel %vm238, %v1921, 0.0
    %1925 = vadd.xlane.f32.xlu0 %v1924
    %v1926 = vpop.xlane.xlu0 %1925
    %v1927 = vsel %vm242, %v1923, 0.0
    %1928 = vadd.xlane.f32.xlu0 %v1927
    %v1929 = vpop.xlane.xlu0 %1928
    %v1930 = vrcp.pop %v1926
    %v1931 = vrcp.pop %v1929
    %v1932 = vmul.f32 %v1921, %v1930
    %v1933 = vmul.f32 %v1923, %v1931
    %1934 = vrot.lane.b32.xlu0 %v1579, 40
    %v1935 = vpop.permute.xlu0 %1934
    %1936 = vrot.lane.b32.xlu0 %v1582, 40
    %v1937 = vpop.permute.xlu0 %1936
    %v1940 = vsel %vm238, %v1932, 0
    %v1943 = vsel %vm238, %v1933, 0
    %v1945 = vsel %vm273, %v1937, 0
    %1947 = vmatpush.msra.mxu0 0.0
    %1948 = vmatpush.msra.mxu0 0.0
    %1949 = vmatpush.msra.mxu0 0.0
    %1950 = vmatpush.msra.mxu0 0.0
    %1951 = vmatpush.msra.mxu0 0.0
    %1952 = vmatpush.msra.mxu0 0.0
    %1953 = vmatpush.msra.mxu0 0.0
    %1954 = vmatpush.msra.mxu0 0.0
    %1955 = vmatpush.msra.mxu0 0.0
    %1956 = vmatpush.msra.mxu0 0.0
    %1957 = vmatpush.msra.mxu0 0.0
    %1958 = vmatpush.msra.mxu0 0.0
    %1959 = vmatpush.msra.mxu0 0.0
    %1960 = vmatpush.msra.mxu0 0.0
    %1961 = vmatpush.msra.mxu0 %v1945
    %1962 = vmatpush.msra.mxu0 %v1935
    %1963 = vmatmul.f32.gmra.mxu0 %v1940
    %v1964 = vpop.f32.mrf.mxu0
    %v1965 = vadd.f32 0.0, %v1964
    %1966 = vmatmul.f32.gmra.mxu0 %v1943
    %v1967 = vpop.f32.mrf.mxu0
    %v1968 = vadd.f32 0.0, %v1967
    %1969 = vdwg.mxu0
    %1972 = vrot.lane.b32.xlu0 %v1771, 8
    %v1973 = vpop.permute.xlu0 %1972
    %1974 = vrot.lane.b32.xlu0 %v1774, 8
    %v1975 = vpop.permute.xlu0 %1974
    %1980 = vrot.lane.b32.xlu0 %v1868, 16
    %v1981 = vpop.permute.xlu0 %1980
    %1982 = vrot.lane.b32.xlu0 %v1871, 16
    %v1983 = vpop.permute.xlu0 %1982
    %1988 = vrot.lane.b32.xlu0 %v1965, 24
    %v1989 = vpop.permute.xlu0 %1988
    %1990 = vrot.lane.b32.xlu0 %v1968, 24
    %v1991 = vpop.permute.xlu0 %1990
    %v1994 = vsel %vm206, %v1674, %v1973
    %v1995 = vsel %vm206, %v1677, %v1975
    %v1996 = vsel %vm616, %v1994, %v1981
    %v1997 = vsel %vm616, %v1995, %v1983
    %v1998 = vsel %vm619, %v1996, %v1989
    %v1999 = vsel %vm619, %v1997, %v1991
    %s2000 = scalar_lea.vmem %s7, 64
    %v2001 = vld [vmem:[%s2000] sm:$0xff]
    %v2002 = vld [vmem:[%s2000 + $0x8] sm:$0xff]
    %v2003 = vld [vmem:[%s2000 + $0x10] sm:$0xff]
    %v2004 = vld [vmem:[%s2000 + $0x18] sm:$0xff]
    %v2006 = vsel %vm110, %v1998, 0
    %v2009 = vsel %vm110, %v1999, 0
    %2011 = vmatpush.msra.mxu0 0.0
    %2012 = vmatpush.msra.mxu0 0.0
    %2013 = vmatpush.msra.mxu0 0.0
    %2014 = vmatpush.msra.mxu0 0.0
    %2015 = vmatpush.msra.mxu0 0.0
    %2016 = vmatpush.msra.mxu0 0.0
    %2017 = vmatpush.msra.mxu0 0.0
    %2018 = vmatpush.msra.mxu0 0.0
    %2019 = vmatpush.msra.mxu0 0.0
    %2020 = vmatpush.msra.mxu0 0.0
    %2021 = vmatpush.msra.mxu0 0.0
    %2022 = vmatpush.msra.mxu0 0.0
    %2023 = vmatpush.msra.mxu0 %v2004
    %2024 = vmatpush.msra.mxu0 %v2003
    %2025 = vmatpush.msra.mxu0 %v2002
    %2026 = vmatpush.msra.mxu0 %v2001
    %2027 = vmatmul.f32.gmra.mxu0 %v2006
    %v2028 = vpop.f32.mrf.mxu0
    %v2029 = vadd.f32 0.0, %v2028
    %2030 = vmatmul.f32.gmra.mxu0 %v2009
    %v2031 = vpop.f32.mrf.mxu0
    %v2032 = vadd.f32 0.0, %v2031
    %2033 = vdwg.mxu0
    %v2034 = vadd.f32 %v1499, %v2029
    %v2035 = vadd.f32 %v1500, %v2032
    %s2036 = scalar_lea.vmem %s8, 2
    %v2037 = vld [vmem:[%s2036] sm:$0x1]
    %v2039 = vperm.slane %v2037, 0
    %v2041 = vadd.f32 %v2034, %v2039
    %v2042 = vadd.f32 %v2035, %v2039
    %v2043 = vsel %vm110, %v2041, 0.0
    %2044 = vadd.xlane.f32.xlu0 %v2043
    %v2045 = vpop.xlane.xlu0 %2044
    %v2046 = vsel %vm114, %v2042, 0.0
    %2047 = vadd.xlane.f32.xlu0 %v2046
    %v2048 = vpop.xlane.xlu0 %2047
    %v2049 = vmul.f32 %v2045, %v124
    %v2050 = vmul.f32 %v2048, %v124
    %v2051 = vsub.f32 %v2041, %v2049
    %v2052 = vsub.f32 %v2042, %v2050
    %v2053 = vmul.f32 %v2051, %v2051
    %v2054 = vmul.f32 %v2052, %v2052
    %v2055 = vsel %vm110, %v2053, 0.0
    %2056 = vadd.xlane.f32.xlu0 %v2055
    %v2057 = vpop.xlane.xlu0 %2056
    %v2058 = vsel %vm114, %v2054, 0.0
    %2059 = vadd.xlane.f32.xlu0 %v2058
    %v2060 = vpop.xlane.xlu0 %2059
    %v2061 = vmul.f32 %v2057, %v124
    %v2062 = vmul.f32 %v2060, %v124
    %v2063 = vadd.f32 %v2061, 1e-05
    %v2064 = vadd.f32 %v2062, 1e-05
    %v2065 = vrsqrt.pop %v2063
    %v2066 = vmul.f32 %v2065, %v2063
    %v2067 = vmul.f32 %v2066, %v2065
    %v2068 = vmul.f32 0.5, %v2067
    %v2069 = vsub.f32 1.5, %v2068
    %v2070 = vmul.f32 %v2065, %v2069
    %vm2071 = vweird.f32 %v2063
    %vm2072 = vweird.f32 %v2065
    %vm2073 = vmor %vm2071, %vm2072
    %v2074 = vsel %vm2073, %v2065, %v2070
    %v2075 = vrsqrt.pop %v2064
    %v2076 = vmul.f32 %v2075, %v2064
    %v2077 = vmul.f32 %v2076, %v2075
    %v2078 = vmul.f32 0.5, %v2077
    %v2079 = vsub.f32 1.5, %v2078
    %v2080 = vmul.f32 %v2075, %v2079
    %vm2081 = vweird.f32 %v2064
    %vm2082 = vweird.f32 %v2075
    %vm2083 = vmor %vm2081, %vm2082
    %v2084 = vsel %vm2083, %v2075, %v2080
    %v2085 = vmul.f32 %v2051, %v2074
    %v2086 = vmul.f32 %v2052, %v2084
    %s2087 = scalar_lea.vmem %s9, 64
    %v2088 = vld [vmem:[%s2087] sm:$0xff]
    %v2089 = vld [vmem:[%s2087 + $0x8] sm:$0xff]
    %v2090 = vld [vmem:[%s2087 + $0x10] sm:$0xff]
    %v2091 = vld [vmem:[%s2087 + $0x18] sm:$0xff]
    %s2092 = scalar_lea.vmem %s10, 2
    %v2093 = vld [vmem:[%s2092] sm:$0x1]
    %v2095 = vperm.slane %v2093, 0
    %v2098 = vsel %vm110, %v2085, 0
    %v2101 = vsel %vm110, %v2086, 0
    %2103 = vmatpush.msra.mxu0 0.0
    %2104 = vmatpush.msra.mxu0 0.0
    %2105 = vmatpush.msra.mxu0 0.0
    %2106 = vmatpush.msra.mxu0 0.0
    %2107 = vmatpush.msra.mxu0 0.0
    %2108 = vmatpush.msra.mxu0 0.0
    %2109 = vmatpush.msra.mxu0 0.0
    %2110 = vmatpush.msra.mxu0 0.0
    %2111 = vmatpush.msra.mxu0 0.0
    %2112 = vmatpush.msra.mxu0 0.0
    %2113 = vmatpush.msra.mxu0 0.0
    %2114 = vmatpush.msra.mxu0 0.0
    %2115 = vmatpush.msra.mxu0 %v2091
    %2116 = vmatpush.msra.mxu0 %v2090
    %2117 = vmatpush.msra.mxu0 %v2089
    %2118 = vmatpush.msra.mxu0 %v2088
    %2119 = vmatmul.f32.gmra.mxu0 %v2098
    %v2120 = vpop.f32.mrf.mxu0
    %v2121 = vadd.f32 %v2095, %v2120
    %2122 = vmatmul.f32.gmra.mxu0 %v2101
    %v2123 = vpop.f32.mrf.mxu0
    %v2124 = vadd.f32 %v2095, %v2123
    %2125 = vdwg.mxu0
    %v2126 = vmul.f32 %v2121, 0.5
    %v2127 = vmul.f32 %v2124, 0.5
    %v2128 = vmul.f32 %v2121, 0.044715
    %v2129 = vmul.f32 %v2124, 0.044715
    %v2130 = vmul.f32 %v2128, %v2121
    %v2131 = vmul.f32 %v2129, %v2124
    %v2132 = vmul.f32 %v2130, %v2121
    %v2133 = vmul.f32 %v2131, %v2124
    %v2134 = vadd.f32 %v2121, %v2132
    %v2135 = vadd.f32 %v2124, %v2133
    %v2136 = vmul.f32 %v2134, 0.7978845
    %v2137 = vmul.f32 %v2135, 0.7978845
    %v2138 = vtanh.pop %v2136
    %v2139 = vtanh.pop %v2137
    %v2140 = vadd.f32 %v2138, 1.0
    %v2141 = vadd.f32 %v2139, 1.0
    %v2142 = vmul.f32 %v2126, %v2140
    %v2143 = vmul.f32 %v2127, %v2141
    %s2144 = scalar_lea.vmem %s11, 256
    %v2145 = vld [vmem:[%s2144] sm:$0xff]
    %v2146 = vld [vmem:[%s2144 + $0x8] sm:$0xff]
    %v2147 = vld [vmem:[%s2144 + $0x10] sm:$0xff]
    %v2148 = vld [vmem:[%s2144 + $0x18] sm:$0xff]
    %v2149 = vld [vmem:[%s2144 + $0x20] sm:$0xff]
    %v2150 = vld [vmem:[%s2144 + $0x28] sm:$0xff]
    %v2151 = vld [vmem:[%s2144 + $0x30] sm:$0xff]
    %v2152 = vld [vmem:[%s2144 + $0x38] sm:$0xff]
    %v2153 = vld [vmem:[%s2144 + $0x40] sm:$0xff]
    %v2154 = vld [vmem:[%s2144 + $0x48] sm:$0xff]
    %v2155 = vld [vmem:[%s2144 + $0x50] sm:$0xff]
    %v2156 = vld [vmem:[%s2144 + $0x58] sm:$0xff]
    %v2157 = vld [vmem:[%s2144 + $0x60] sm:$0xff]
    %v2158 = vld [vmem:[%s2144 + $0x68] sm:$0xff]
    %v2159 = vld [vmem:[%s2144 + $0x70] sm:$0xff]
    %v2160 = vld [vmem:[%s2144 + $0x78] sm:$0xff]
    %2161 = vmatpush.msra.mxu0 %v2160
    %2162 = vmatpush.msra.mxu0 %v2159
    %2163 = vmatpush.msra.mxu0 %v2158
    %2164 = vmatpush.msra.mxu0 %v2157
    %2165 = vmatpush.msra.mxu0 %v2156
    %2166 = vmatpush.msra.mxu0 %v2155
    %2167 = vmatpush.msra.mxu0 %v2154
    %2168 = vmatpush.msra.mxu0 %v2153
    %2169 = vmatpush.msra.mxu0 %v2152
    %2170 = vmatpush.msra.mxu0 %v2151
    %2171 = vmatpush.msra.mxu0 %v2150
    %2172 = vmatpush.msra.mxu0 %v2149
    %2173 = vmatpush.msra.mxu0 %v2148
    %2174 = vmatpush.msra.mxu0 %v2147
    %2175 = vmatpush.msra.mxu0 %v2146
    %2176 = vmatpush.msra.mxu0 %v2145
    %2177 = vmatmul.f32.gmra.mxu0 %v2142
    %v2178 = vpop.f32.mrf.mxu0
    %v2179 = vadd.f32 0.0, %v2178
    %2180 = vmatmul.f32.gmra.mxu0 %v2143
    %v2181 = vpop.f32.mrf.mxu0
    %v2182 = vadd.f32 0.0, %v2181
    %2183 = vdwg.mxu0
    %v2184 = vadd.f32 %v2041, %v2179
    %v2185 = vadd.f32 %v2042, %v2182
    %s2186 = scalar_lea.vmem %s12, 2
    %v2187 = vld [vmem:[%s2186] sm:$0x1]
    %v2189 = vperm.slane %v2187, 0
    %v2191 = vadd.f32 %v2184, %v2189
    %v2192 = vadd.f32 %v2185, %v2189
    %v2193 = vsel %vm110, %v2191, 0.0
    %2194 = vadd.xlane.f32.xlu0 %v2193
    %v2195 = vpop.xlane.xlu0 %2194
    %v2196 = vsel %vm114, %v2192, 0.0
    %2197 = vadd.xlane.f32.xlu0 %v2196
    %v2198 = vpop.xlane.xlu0 %2197
    %v2199 = vmul.f32 %v2195, %v124
    %v2200 = vmul.f32 %v2198, %v124
    %v2201 = vsub.f32 %v2191, %v2199
    %v2202 = vsub.f32 %v2192, %v2200
    %v2203 = vmul.f32 %v2201, %v2201
    %v2204 = vmul.f32 %v2202, %v2202
    %v2205 = vsel %vm110, %v2203, 0.0
    %2206 = vadd.xlane.f32.xlu0 %v2205
    %v2207 = vpop.xlane.xlu0 %2206
    %v2208 = vsel %vm114, %v2204, 0.0
    %2209 = vadd.xlane.f32.xlu0 %v2208
    %v2210 = vpop.xlane.xlu0 %2209
    %v2211 = vmul.f32 %v2207, %v124
    %v2212 = vmul.f32 %v2210, %v124
    %v2213 = vadd.f32 %v2211, 1e-05
    %v2214 = vadd.f32 %v2212, 1e-05
    %v2215 = vrsqrt.pop %v2213
    %v2216 = vmul.f32 %v2215, %v2213
    %v2217 = vmul.f32 %v2216, %v2215
    %v2218 = vmul.f32 0.5, %v2217
    %v2219 = vsub.f32 1.5, %v2218
    %v2220 = vmul.f32 %v2215, %v2219
    %vm2221 = vweird.f32 %v2213
    %vm2222 = vweird.f32 %v2215
    %vm2223 = vmor %vm2221, %vm2222
    %v2224 = vsel %vm2223, %v2215, %v2220
    %v2225 = vrsqrt.pop %v2214
    %v2226 = vmul.f32 %v2225, %v2214
    %v2227 = vmul.f32 %v2226, %v2225
    %v2228 = vmul.f32 0.5, %v2227
    %v2229 = vsub.f32 1.5, %v2228
    %v2230 = vmul.f32 %v2225, %v2229
    %vm2231 = vweird.f32 %v2214
    %vm2232 = vweird.f32 %v2225
    %vm2233 = vmor %vm2231, %vm2232
    %v2234 = vsel %vm2233, %v2225, %v2230
    %v2235 = vmul.f32 %v2201, %v2224
    %v2236 = vmul.f32 %v2202, %v2234
    %s2237 = scalar_lea.vmem %s5, 96
    %v2238 = vld [vmem:[%s2237] sm:$0xff]
    %v2239 = vld [vmem:[%s2237 + $0x8] sm:$0xff]
    %v2240 = vld [vmem:[%s2237 + $0x10] sm:$0xff]
    %v2241 = vld [vmem:[%s2237 + $0x18] sm:$0xff]
    %s2242 = scalar_lea.vmem %s6, 3
    %v2243 = vld [vmem:[%s2242] sm:$0x1]
    %v2245 = vperm.slane %v2243, 0
    %v2248 = vsel %vm110, %v2235, 0
    %v2251 = vsel %vm110, %v2236, 0
    %2253 = vmatpush.msra.mxu0 0.0
    %2254 = vmatpush.msra.mxu0 0.0
    %2255 = vmatpush.msra.mxu0 0.0
    %2256 = vmatpush.msra.mxu0 0.0
    %2257 = vmatpush.msra.mxu0 0.0
    %2258 = vmatpush.msra.mxu0 0.0
    %2259 = vmatpush.msra.mxu0 0.0
    %2260 = vmatpush.msra.mxu0 0.0
    %2261 = vmatpush.msra.mxu0 0.0
    %2262 = vmatpush.msra.mxu0 0.0
    %2263 = vmatpush.msra.mxu0 0.0
    %2264 = vmatpush.msra.mxu0 0.0
    %2265 = vmatpush.msra.mxu0 %v2241
    %2266 = vmatpush.msra.mxu0 %v2240
    %2267 = vmatpush.msra.mxu0 %v2239
    %2268 = vmatpush.msra.mxu0 %v2238
    %2269 = vmatmul.f32.gmra.mxu0 %v2248
    %v2270 = vpop.f32.mrf.mxu0
    %v2271 = vadd.f32 %v2245, %v2270
    %2272 = vmatmul.f32.gmra.mxu0 %v2251
    %v2273 = vpop.f32.mrf.mxu0
    %v2274 = vadd.f32 %v2245, %v2273
    %2275 = vdwg.mxu0
    %2278 = vrot.lane.b32.xlu0 %v2271, 96
    %v2279 = vpop.permute.xlu0 %2278
    %2280 = vrot.lane.b32.xlu0 %v2274, 96
    %v2281 = vpop.permute.xlu0 %2280
    %v2282 = vsel %vm206, %v2271, 0
    %v2284 = vsel %vm206, %v2274, 0
    %v2286 = vsel %vm206, %v2279, 0
    %v2288 = vsel %vm206, %v2281, 0
    %2290 = vmatpush.xpose.msra.mxu0 0.0
    %2291 = vmatpush.xpose.msra.mxu0 0.0
    %2292 = vmatpush.xpose.msra.mxu0 0.0
    %2293 = vmatpush.xpose.msra.mxu0 0.0
    %2294 = vmatpush.xpose.msra.mxu0 0.0
    %2295 = vmatpush.xpose.msra.mxu0 0.0
    %2296 = vmatpush.xpose.msra.mxu0 0.0
    %2297 = vmatpush.xpose.msra.mxu0 0.0
    %2298 = vmatpush.xpose.msra.mxu0 0.0
    %2299 = vmatpush.xpose.msra.mxu0 0.0
    %2300 = vmatpush.xpose.msra.mxu0 0.0
    %2301 = vmatpush.xpose.msra.mxu0 0.0
    %2302 = vmatpush.xpose.msra.mxu0 0.0
    %2303 = vmatpush.xpose.msra.mxu0 0.0
    %2304 = vmatpush.xpose.msra.mxu0 %v2288
    %2305 = vmatpush.xpose.msra.mxu0 %v2286
    %2306 = vmatmul.f32.gmra.mxu0 %v2282
    %v2307 = vpop.f32.mrf.mxu0
    %v2308 = vadd.f32 %v108, %v2307
    %2309 = vmatmul.f32.gmra.mxu0 %v2284
    %v2310 = vpop.f32.mrf.mxu0
    %v2311 = vadd.f32 %v109, %v2310
    %2312 = vdwg.mxu0
    %v2313 = vsel %vm238, %v2308, -inf
    %2314 = vmax.xlane.f32.xlu0 %v2313
    %v2315 = vpop.xlane.xlu0 %2314
    %v2316 = vsel %vm242, %v2311, -inf
    %2317 = vmax.xlane.f32.xlu0 %v2316
    %v2318 = vpop.xlane.xlu0 %2317
    %v2319 = vsub.f32 %v2308, %v2315
    %v2320 = vsub.f32 %v2311, %v2318
    %v2321 = vmul.f32 %v2319, 1.442695
    %v2322 = vpow.pop %v2321
    %v2323 = vmul.f32 %v2320, 1.442695
    %v2324 = vpow.pop %v2323
    %v2325 = vsel %vm238, %v2322, 0.0
    %2326 = vadd.xlane.f32.xlu0 %v2325
    %v2327 = vpop.xlane.xlu0 %2326
    %v2328 = vsel %vm242, %v2324, 0.0
    %2329 = vadd.xlane.f32.xlu0 %v2328
    %v2330 = vpop.xlane.xlu0 %2329
    %v2331 = vrcp.pop %v2327
    %v2332 = vrcp.pop %v2330
    %v2333 = vmul.f32 %v2322, %v2331
    %v2334 = vmul.f32 %v2324, %v2332
    %2335 = vrot.lane.b32.xlu0 %v2271, 64
    %v2336 = vpop.permute.xlu0 %2335
    %2337 = vrot.lane.b32.xlu0 %v2274, 64
    %v2338 = vpop.permute.xlu0 %2337
    %v2341 = vsel %vm238, %v2333, 0
    %v2344 = vsel %vm238, %v2334, 0
    %v2346 = vsel %vm273, %v2338, 0
    %2348 = vmatpush.msra.mxu0 0.0
    %2349 = vmatpush.msra.mxu0 0.0
    %2350 = vmatpush.msra.mxu0 0.0
    %2351 = vmatpush.msra.mxu0 0.0
    %2352 = vmatpush.msra.mxu0 0.0
    %2353 = vmatpush.msra.mxu0 0.0
    %2354 = vmatpush.msra.mxu0 0.0
    %2355 = vmatpush.msra.mxu0 0.0
    %2356 = vmatpush.msra.mxu0 0.0
    %2357 = vmatpush.msra.mxu0 0.0
    %2358 = vmatpush.msra.mxu0 0.0
    %2359 = vmatpush.msra.mxu0 0.0
    %2360 = vmatpush.msra.mxu0 0.0
    %2361 = vmatpush.msra.mxu0 0.0
    %2362 = vmatpush.msra.mxu0 %v2346
    %2363 = vmatpush.msra.mxu0 %v2336
    %2364 = vmatmul.f32.gmra.mxu0 %v2341
    %v2365 = vpop.f32.mrf.mxu0
    %v2366 = vadd.f32 0.0, %v2365
    %2367 = vmatmul.f32.gmra.mxu0 %v2344
    %v2368 = vpop.f32.mrf.mxu0
    %v2369 = vadd.f32 0.0, %v2368
    %2370 = vdwg.mxu0
    %2371 = vrot.lane.b32.xlu0 %v2271, 120
    %v2372 = vpop.permute.xlu0 %2371
    %2373 = vrot.lane.b32.xlu0 %v2274, 120
    %v2374 = vpop.permute.xlu0 %2373
    %2375 = vrot.lane.b32.xlu0 %v2271, 88
    %v2376 = vpop.permute.xlu0 %2375
    %2377 = vrot.lane.b32.xlu0 %v2274, 88
    %v2378 = vpop.permute.xlu0 %2377
    %v2379 = vsel %vm206, %v2372, 0
    %v2381 = vsel %vm206, %v2374, 0
    %v2383 = vsel %vm206, %v2376, 0
    %v2385 = vsel %vm206, %v2378, 0
    %2387 = vmatpush.xpose.msra.mxu0 0.0
    %2388 = vmatpush.xpose.msra.mxu0 0.0
    %2389 = vmatpush.xpose.msra.mxu0 0.0
    %2390 = vmatpush.xpose.msra.mxu0 0.0
    %2391 = vmatpush.xpose.msra.mxu0 0.0
    %2392 = vmatpush.xpose.msra.mxu0 0.0
    %2393 = vmatpush.xpose.msra.mxu0 0.0
    %2394 = vmatpush.xpose.msra.mxu0 0.0
    %2395 = vmatpush.xpose.msra.mxu0 0.0
    %2396 = vmatpush.xpose.msra.mxu0 0.0
    %2397 = vmatpush.xpose.msra.mxu0 0.0
    %2398 = vmatpush.xpose.msra.mxu0 0.0
    %2399 = vmatpush.xpose.msra.mxu0 0.0
    %2400 = vmatpush.xpose.msra.mxu0 0.0
    %2401 = vmatpush.xpose.msra.mxu0 %v2385
    %2402 = vmatpush.xpose.msra.mxu0 %v2383
    %2403 = vmatmul.f32.gmra.mxu0 %v2379
    %v2404 = vpop.f32.mrf.mxu0
    %v2405 = vadd.f32 %v108, %v2404
    %2406 = vmatmul.f32.gmra.mxu0 %v2381
    %v2407 = vpop.f32.mrf.mxu0
    %v2408 = vadd.f32 %v109, %v2407
    %2409 = vdwg.mxu0
    %v2410 = vsel %vm238, %v2405, -inf
    %2411 = vmax.xlane.f32.xlu0 %v2410
    %v2412 = vpop.xlane.xlu0 %2411
    %v2413 = vsel %vm242, %v2408, -inf
    %2414 = vmax.xlane.f32.xlu0 %v2413
    %v2415 = vpop.xlane.xlu0 %2414
    %v2416 = vsub.f32 %v2405, %v2412
    %v2417 = vsub.f32 %v2408, %v2415
    %v2418 = vmul.f32 %v2416, 1.442695
    %v2419 = vpow.pop %v2418
    %v2420 = vmul.f32 %v2417, 1.442695
    %v2421 = vpow.pop %v2420
    %v2422 = vsel %vm238, %v2419, 0.0
    %2423 = vadd.xlane.f32.xlu0 %v2422
    %v2424 = vpop.xlane.xlu0 %2423
    %v2425 = vsel %vm242, %v2421, 0.0
    %2426 = vadd.xlane.f32.xlu0 %v2425
    %v2427 = vpop.xlane.xlu0 %2426
    %v2428 = vrcp.pop %v2424
    %v2429 = vrcp.pop %v2427
    %v2430 = vmul.f32 %v2419, %v2428
    %v2431 = vmul.f32 %v2421, %v2429
    %2432 = vrot.lane.b32.xlu0 %v2271, 56
    %v2433 = vpop.permute.xlu0 %2432
    %2434 = vrot.lane.b32.xlu0 %v2274, 56
    %v2435 = vpop.permute.xlu0 %2434
    %v2438 = vsel %vm238, %v2430, 0
    %v2441 = vsel %vm238, %v2431, 0
    %v2443 = vsel %vm273, %v2435, 0
    %2445 = vmatpush.msra.mxu0 0.0
    %2446 = vmatpush.msra.mxu0 0.0
    %2447 = vmatpush.msra.mxu0 0.0
    %2448 = vmatpush.msra.mxu0 0.0
    %2449 = vmatpush.msra.mxu0 0.0
    %2450 = vmatpush.msra.mxu0 0.0
    %2451 = vmatpush.msra.mxu0 0.0
    %2452 = vmatpush.msra.mxu0 0.0
    %2453 = vmatpush.msra.mxu0 0.0
    %2454 = vmatpush.msra.mxu0 0.0
    %2455 = vmatpush.msra.mxu0 0.0
    %2456 = vmatpush.msra.mxu0 0.0
    %2457 = vmatpush.msra.mxu0 0.0
    %2458 = vmatpush.msra.mxu0 0.0
    %2459 = vmatpush.msra.mxu0 %v2443
    %2460 = vmatpush.msra.mxu0 %v2433
    %2461 = vmatmul.f32.gmra.mxu0 %v2438
    %v2462 = vpop.f32.mrf.mxu0
    %v2463 = vadd.f32 0.0, %v2462
    %2464 = vmatmul.f32.gmra.mxu0 %v2441
    %v2465 = vpop.f32.mrf.mxu0
    %v2466 = vadd.f32 0.0, %v2465
    %2467 = vdwg.mxu0
    %2468 = vrot.lane.b32.xlu0 %v2271, 112
    %v2469 = vpop.permute.xlu0 %2468
    %2470 = vrot.lane.b32.xlu0 %v2274, 112
    %v2471 = vpop.permute.xlu0 %2470
    %2472 = vrot.lane.b32.xlu0 %v2271, 80
    %v2473 = vpop.permute.xlu0 %2472
    %2474 = vrot.lane.b32.xlu0 %v2274, 80
    %v2475 = vpop.permute.xlu0 %2474
    %v2476 = vsel %vm206, %v2469, 0
    %v2478 = vsel %vm206, %v2471, 0
    %v2480 = vsel %vm206, %v2473, 0
    %v2482 = vsel %vm206, %v2475, 0
    %2484 = vmatpush.xpose.msra.mxu0 0.0
    %2485 = vmatpush.xpose.msra.mxu0 0.0
    %2486 = vmatpush.xpose.msra.mxu0 0.0
    %2487 = vmatpush.xpose.msra.mxu0 0.0
    %2488 = vmatpush.xpose.msra.mxu0 0.0
    %2489 = vmatpush.xpose.msra.mxu0 0.0
    %2490 = vmatpush.xpose.msra.mxu0 0.0
    %2491 = vmatpush.xpose.msra.mxu0 0.0
    %2492 = vmatpush.xpose.msra.mxu0 0.0
    %2493 = vmatpush.xpose.msra.mxu0 0.0
    %2494 = vmatpush.xpose.msra.mxu0 0.0
    %2495 = vmatpush.xpose.msra.mxu0 0.0
    %2496 = vmatpush.xpose.msra.mxu0 0.0
    %2497 = vmatpush.xpose.msra.mxu0 0.0
    %2498 = vmatpush.xpose.msra.mxu0 %v2482
    %2499 = vmatpush.xpose.msra.mxu0 %v2480
    %2500 = vmatmul.f32.gmra.mxu0 %v2476
    %v2501 = vpop.f32.mrf.mxu0
    %v2502 = vadd.f32 %v108, %v2501
    %2503 = vmatmul.f32.gmra.mxu0 %v2478
    %v2504 = vpop.f32.mrf.mxu0
    %v2505 = vadd.f32 %v109, %v2504
    %2506 = vdwg.mxu0
    %v2507 = vsel %vm238, %v2502, -inf
    %2508 = vmax.xlane.f32.xlu0 %v2507
    %v2509 = vpop.xlane.xlu0 %2508
    %v2510 = vsel %vm242, %v2505, -inf
    %2511 = vmax.xlane.f32.xlu0 %v2510
    %v2512 = vpop.xlane.xlu0 %2511
    %v2513 = vsub.f32 %v2502, %v2509
    %v2514 = vsub.f32 %v2505, %v2512
    %v2515 = vmul.f32 %v2513, 1.442695
    %v2516 = vpow.pop %v2515
    %v2517 = vmul.f32 %v2514, 1.442695
    %v2518 = vpow.pop %v2517
    %v2519 = vsel %vm238, %v2516, 0.0
    %2520 = vadd.xlane.f32.xlu0 %v2519
    %v2521 = vpop.xlane.xlu0 %2520
    %v2522 = vsel %vm242, %v2518, 0.0
    %2523 = vadd.xlane.f32.xlu0 %v2522
    %v2524 = vpop.xlane.xlu0 %2523
    %v2525 = vrcp.pop %v2521
    %v2526 = vrcp.pop %v2524
    %v2527 = vmul.f32 %v2516, %v2525
    %v2528 = vmul.f32 %v2518, %v2526
    %2529 = vrot.lane.b32.xlu0 %v2271, 48
    %v2530 = vpop.permute.xlu0 %2529
    %2531 = vrot.lane.b32.xlu0 %v2274, 48
    %v2532 = vpop.permute.xlu0 %2531
    %v2535 = vsel %vm238, %v2527, 0
    %v2538 = vsel %vm238, %v2528, 0
    %v2540 = vsel %vm273, %v2532, 0
    %2542 = vmatpush.msra.mxu0 0.0
    %2543 = vmatpush.msra.mxu0 0.0
    %2544 = vmatpush.msra.mxu0 0.0
    %2545 = vmatpush.msra.mxu0 0.0
    %2546 = vmatpush.msra.mxu0 0.0
    %2547 = vmatpush.msra.mxu0 0.0
    %2548 = vmatpush.msra.mxu0 0.0
    %2549 = vmatpush.msra.mxu0 0.0
    %2550 = vmatpush.msra.mxu0 0.0
    %2551 = vmatpush.msra.mxu0 0.0
    %2552 = vmatpush.msra.mxu0 0.0
    %2553 = vmatpush.msra.mxu0 0.0
    %2554 = vmatpush.msra.mxu0 0.0
    %2555 = vmatpush.msra.mxu0 0.0
    %2556 = vmatpush.msra.mxu0 %v2540
    %2557 = vmatpush.msra.mxu0 %v2530
    %2558 = vmatmul.f32.gmra.mxu0 %v2535
    %v2559 = vpop.f32.mrf.mxu0
    %v2560 = vadd.f32 0.0, %v2559
    %2561 = vmatmul.f32.gmra.mxu0 %v2538
    %v2562 = vpop.f32.mrf.mxu0
    %v2563 = vadd.f32 0.0, %v2562
    %2564 = vdwg.mxu0
    %2565 = vrot.lane.b32.xlu0 %v2271, 104
    %v2566 = vpop.permute.xlu0 %2565
    %2567 = vrot.lane.b32.xlu0 %v2274, 104
    %v2568 = vpop.permute.xlu0 %2567
    %2569 = vrot.lane.b32.xlu0 %v2271, 72
    %v2570 = vpop.permute.xlu0 %2569
    %2571 = vrot.lane.b32.xlu0 %v2274, 72
    %v2572 = vpop.permute.xlu0 %2571
    %v2573 = vsel %vm206, %v2566, 0
    %v2575 = vsel %vm206, %v2568, 0
    %v2577 = vsel %vm206, %v2570, 0
    %v2579 = vsel %vm206, %v2572, 0
    %2581 = vmatpush.xpose.msra.mxu0 0.0
    %2582 = vmatpush.xpose.msra.mxu0 0.0
    %2583 = vmatpush.xpose.msra.mxu0 0.0
    %2584 = vmatpush.xpose.msra.mxu0 0.0
    %2585 = vmatpush.xpose.msra.mxu0 0.0
    %2586 = vmatpush.xpose.msra.mxu0 0.0
    %2587 = vmatpush.xpose.msra.mxu0 0.0
    %2588 = vmatpush.xpose.msra.mxu0 0.0
    %2589 = vmatpush.xpose.msra.mxu0 0.0
    %2590 = vmatpush.xpose.msra.mxu0 0.0
    %2591 = vmatpush.xpose.msra.mxu0 0.0
    %2592 = vmatpush.xpose.msra.mxu0 0.0
    %2593 = vmatpush.xpose.msra.mxu0 0.0
    %2594 = vmatpush.xpose.msra.mxu0 0.0
    %2595 = vmatpush.xpose.msra.mxu0 %v2579
    %2596 = vmatpush.xpose.msra.mxu0 %v2577
    %2597 = vmatmul.f32.gmra.mxu0 %v2573
    %v2598 = vpop.f32.mrf.mxu0
    %v2599 = vadd.f32 %v108, %v2598
    %2600 = vmatmul.f32.gmra.mxu0 %v2575
    %v2601 = vpop.f32.mrf.mxu0
    %v2602 = vadd.f32 %v109, %v2601
    %2603 = vdwg.mxu0
    %v2604 = vsel %vm238, %v2599, -inf
    %2605 = vmax.xlane.f32.xlu0 %v2604
    %v2606 = vpop.xlane.xlu0 %2605
    %v2607 = vsel %vm242, %v2602, -inf
    %2608 = vmax.xlane.f32.xlu0 %v2607
    %v2609 = vpop.xlane.xlu0 %2608
    %v2610 = vsub.f32 %v2599, %v2606
    %v2611 = vsub.f32 %v2602, %v2609
    %v2612 = vmul.f32 %v2610, 1.442695
    %v2613 = vpow.pop %v2612
    %v2614 = vmul.f32 %v2611, 1.442695
    %v2615 = vpow.pop %v2614
    %v2616 = vsel %vm238, %v2613, 0.0
    %2617 = vadd.xlane.f32.xlu0 %v2616
    %v2618 = vpop.xlane.xlu0 %2617
    %v2619 = vsel %vm242, %v2615, 0.0
    %2620 = vadd.xlane.f32.xlu0 %v2619
    %v2621 = vpop.xlane.xlu0 %2620
    %v2622 = vrcp.pop %v2618
    %v2623 = vrcp.pop %v2621
    %v2624 = vmul.f32 %v2613, %v2622
    %v2625 = vmul.f32 %v2615, %v2623
    %2626 = vrot.lane.b32.xlu0 %v2271, 40
    %v2627 = vpop.permute.xlu0 %2626
    %2628 = vrot.lane.b32.xlu0 %v2274, 40
    %v2629 = vpop.permute.xlu0 %2628
    %v2632 = vsel %vm238, %v2624, 0
    %v2635 = vsel %vm238, %v2625, 0
    %v2637 = vsel %vm273, %v2629, 0
    %2639 = vmatpush.msra.mxu0 0.0
    %2640 = vmatpush.msra.mxu0 0.0
    %2641 = vmatpush.msra.mxu0 0.0
    %2642 = vmatpush.msra.mxu0 0.0
    %2643 = vmatpush.msra.mxu0 0.0
    %2644 = vmatpush.msra.mxu0 0.0
    %2645 = vmatpush.msra.mxu0 0.0
    %2646 = vmatpush.msra.mxu0 0.0
    %2647 = vmatpush.msra.mxu0 0.0
    %2648 = vmatpush.msra.mxu0 0.0
    %2649 = vmatpush.msra.mxu0 0.0
    %2650 = vmatpush.msra.mxu0 0.0
    %2651 = vmatpush.msra.mxu0 0.0
    %2652 = vmatpush.msra.mxu0 0.0
    %2653 = vmatpush.msra.mxu0 %v2637
    %2654 = vmatpush.msra.mxu0 %v2627
    %2655 = vmatmul.f32.gmra.mxu0 %v2632
    %v2656 = vpop.f32.mrf.mxu0
    %v2657 = vadd.f32 0.0, %v2656
    %2658 = vmatmul.f32.gmra.mxu0 %v2635
    %v2659 = vpop.f32.mrf.mxu0
    %v2660 = vadd.f32 0.0, %v2659
    %2661 = vdwg.mxu0
    %2664 = vrot.lane.b32.xlu0 %v2463, 8
    %v2665 = vpop.permute.xlu0 %2664
    %2666 = vrot.lane.b32.xlu0 %v2466, 8
    %v2667 = vpop.permute.xlu0 %2666
    %2672 = vrot.lane.b32.xlu0 %v2560, 16
    %v2673 = vpop.permute.xlu0 %2672
    %2674 = vrot.lane.b32.xlu0 %v2563, 16
    %v2675 = vpop.permute.xlu0 %2674
    %2680 = vrot.lane.b32.xlu0 %v2657, 24
    %v2681 = vpop.permute.xlu0 %2680
    %2682 = vrot.lane.b32.xlu0 %v2660, 24
    %v2683 = vpop.permute.xlu0 %2682
    %v2686 = vsel %vm206, %v2366, %v2665
    %v2687 = vsel %vm206, %v2369, %v2667
    %v2688 = vsel %vm616, %v2686, %v2673
    %v2689 = vsel %vm616, %v2687, %v2675
    %v2690 = vsel %vm619, %v2688, %v2681
    %v2691 = vsel %vm619, %v2689, %v2683
    %s2692 = scalar_lea.vmem %s7, 96
    %v2693 = vld [vmem:[%s2692] sm:$0xff]
    %v2694 = vld [vmem:[%s2692 + $0x8] sm:$0xff]
    %v2695 = vld [vmem:[%s2692 + $0x10] sm:$0xff]
    %v2696 = vld [vmem:[%s2692 + $0x18] sm:$0xff]
    %v2698 = vsel %vm110, %v2690, 0
    %v2701 = vsel %vm110, %v2691, 0
    %2703 = vmatpush.msra.mxu0 0.0
    %2704 = vmatpush.msra.mxu0 0.0
    %2705 = vmatpush.msra.mxu0 0.0
    %2706 = vmatpush.msra.mxu0 0.0
    %2707 = vmatpush.msra.mxu0 0.0
    %2708 = vmatpush.msra.mxu0 0.0
    %2709 = vmatpush.msra.mxu0 0.0
    %2710 = vmatpush.msra.mxu0 0.0
    %2711 = vmatpush.msra.mxu0 0.0
    %2712 = vmatpush.msra.mxu0 0.0
    %2713 = vmatpush.msra.mxu0 0.0
    %2714 = vmatpush.msra.mxu0 0.0
    %2715 = vmatpush.msra.mxu0 %v2696
    %2716 = vmatpush.msra.mxu0 %v2695
    %2717 = vmatpush.msra.mxu0 %v2694
    %2718 = vmatpush.msra.mxu0 %v2693
    %2719 = vmatmul.f32.gmra.mxu0 %v2698
    %v2720 = vpop.f32.mrf.mxu0
    %v2721 = vadd.f32 0.0, %v2720
    %2722 = vmatmul.f32.gmra.mxu0 %v2701
    %v2723 = vpop.f32.mrf.mxu0
    %v2724 = vadd.f32 0.0, %v2723
    %2725 = vdwg.mxu0
    %v2726 = vadd.f32 %v2191, %v2721
    %v2727 = vadd.f32 %v2192, %v2724
    %s2728 = scalar_lea.vmem %s8, 3
    %v2729 = vld [vmem:[%s2728] sm:$0x1]
    %v2731 = vperm.slane %v2729, 0
    %v2733 = vadd.f32 %v2726, %v2731
    %v2734 = vadd.f32 %v2727, %v2731
    %v2735 = vsel %vm110, %v2733, 0.0
    %2736 = vadd.xlane.f32.xlu0 %v2735
    %v2737 = vpop.xlane.xlu0 %2736
    %v2738 = vsel %vm114, %v2734, 0.0
    %2739 = vadd.xlane.f32.xlu0 %v2738
    %v2740 = vpop.xlane.xlu0 %2739
    %v2741 = vmul.f32 %v2737, %v124
    %v2742 = vmul.f32 %v2740, %v124
    %v2743 = vsub.f32 %v2733, %v2741
    %v2744 = vsub.f32 %v2734, %v2742
    %v2745 = vmul.f32 %v2743, %v2743
    %v2746 = vmul.f32 %v2744, %v2744
    %v2747 = vsel %vm110, %v2745, 0.0
    %2748 = vadd.xlane.f32.xlu0 %v2747
    %v2749 = vpop.xlane.xlu0 %2748
    %v2750 = vsel %vm114, %v2746, 0.0
    %2751 = vadd.xlane.f32.xlu0 %v2750
    %v2752 = vpop.xlane.xlu0 %2751
    %v2753 = vmul.f32 %v2749, %v124
    %v2754 = vmul.f32 %v2752, %v124
    %v2755 = vadd.f32 %v2753, 1e-05
    %v2756 = vadd.f32 %v2754, 1e-05
    %v2757 = vrsqrt.pop %v2755
    %v2758 = vmul.f32 %v2757, %v2755
    %v2759 = vmul.f32 %v2758, %v2757
    %v2760 = vmul.f32 0.5, %v2759
    %v2761 = vsub.f32 1.5, %v2760
    %v2762 = vmul.f32 %v2757, %v2761
    %vm2763 = vweird.f32 %v2755
    %vm2764 = vweird.f32 %v2757
    %vm2765 = vmor %vm2763, %vm2764
    %v2766 = vsel %vm2765, %v2757, %v2762
    %v2767 = vrsqrt.pop %v2756
    %v2768 = vmul.f32 %v2767, %v2756
    %v2769 = vmul.f32 %v2768, %v2767
    %v2770 = vmul.f32 0.5, %v2769
    %v2771 = vsub.f32 1.5, %v2770
    %v2772 = vmul.f32 %v2767, %v2771
    %vm2773 = vweird.f32 %v2756
    %vm2774 = vweird.f32 %v2767
    %vm2775 = vmor %vm2773, %vm2774
    %v2776 = vsel %vm2775, %v2767, %v2772
    %v2777 = vmul.f32 %v2743, %v2766
    %v2778 = vmul.f32 %v2744, %v2776
    %s2779 = scalar_lea.vmem %s9, 96
    %v2780 = vld [vmem:[%s2779] sm:$0xff]
    %v2781 = vld [vmem:[%s2779 + $0x8] sm:$0xff]
    %v2782 = vld [vmem:[%s2779 + $0x10] sm:$0xff]
    %v2783 = vld [vmem:[%s2779 + $0x18] sm:$0xff]
    %s2784 = scalar_lea.vmem %s10, 3
    %v2785 = vld [vmem:[%s2784] sm:$0x1]
    %v2787 = vperm.slane %v2785, 0
    %v2790 = vsel %vm110, %v2777, 0
    %v2793 = vsel %vm110, %v2778, 0
    %2795 = vmatpush.msra.mxu0 0.0
    %2796 = vmatpush.msra.mxu0 0.0
    %2797 = vmatpush.msra.mxu0 0.0
    %2798 = vmatpush.msra.mxu0 0.0
    %2799 = vmatpush.msra.mxu0 0.0
    %2800 = vmatpush.msra.mxu0 0.0
    %2801 = vmatpush.msra.mxu0 0.0
    %2802 = vmatpush.msra.mxu0 0.0
    %2803 = vmatpush.msra.mxu0 0.0
    %2804 = vmatpush.msra.mxu0 0.0
    %2805 = vmatpush.msra.mxu0 0.0
    %2806 = vmatpush.msra.mxu0 0.0
    %2807 = vmatpush.msra.mxu0 %v2783
    %2808 = vmatpush.msra.mxu0 %v2782
    %2809 = vmatpush.msra.mxu0 %v2781
    %2810 = vmatpush.msra.mxu0 %v2780
    %2811 = vmatmul.f32.gmra.mxu0 %v2790
    %v2812 = vpop.f32.mrf.mxu0
    %v2813 = vadd.f32 %v2787, %v2812
    %2814 = vmatmul.f32.gmra.mxu0 %v2793
    %v2815 = vpop.f32.mrf.mxu0
    %v2816 = vadd.f32 %v2787, %v2815
    %2817 = vdwg.mxu0
    %v2818 = vmul.f32 %v2813, 0.5
    %v2819 = vmul.f32 %v2816, 0.5
    %v2820 = vmul.f32 %v2813, 0.044715
    %v2821 = vmul.f32 %v2816, 0.044715
    %v2822 = vmul.f32 %v2820, %v2813
    %v2823 = vmul.f32 %v2821, %v2816
    %v2824 = vmul.f32 %v2822, %v2813
    %v2825 = vmul.f32 %v2823, %v2816
    %v2826 = vadd.f32 %v2813, %v2824
    %v2827 = vadd.f32 %v2816, %v2825
    %v2828 = vmul.f32 %v2826, 0.7978845
    %v2829 = vmul.f32 %v2827, 0.7978845
    %v2830 = vtanh.pop %v2828
    %v2831 = vtanh.pop %v2829
    %v2832 = vadd.f32 %v2830, 1.0
    %v2833 = vadd.f32 %v2831, 1.0
    %v2834 = vmul.f32 %v2818, %v2832
    %v2835 = vmul.f32 %v2819, %v2833
    %s2836 = scalar_lea.vmem %s11, 384
    %v2837 = vld [vmem:[%s2836] sm:$0xff]
    %v2838 = vld [vmem:[%s2836 + $0x8] sm:$0xff]
    %v2839 = vld [vmem:[%s2836 + $0x10] sm:$0xff]
    %v2840 = vld [vmem:[%s2836 + $0x18] sm:$0xff]
    %v2841 = vld [vmem:[%s2836 + $0x20] sm:$0xff]
    %v2842 = vld [vmem:[%s2836 + $0x28] sm:$0xff]
    %v2843 = vld [vmem:[%s2836 + $0x30] sm:$0xff]
    %v2844 = vld [vmem:[%s2836 + $0x38] sm:$0xff]
    %v2845 = vld [vmem:[%s2836 + $0x40] sm:$0xff]
    %v2846 = vld [vmem:[%s2836 + $0x48] sm:$0xff]
    %v2847 = vld [vmem:[%s2836 + $0x50] sm:$0xff]
    %v2848 = vld [vmem:[%s2836 + $0x58] sm:$0xff]
    %v2849 = vld [vmem:[%s2836 + $0x60] sm:$0xff]
    %v2850 = vld [vmem:[%s2836 + $0x68] sm:$0xff]
    %v2851 = vld [vmem:[%s2836 + $0x70] sm:$0xff]
    %v2852 = vld [vmem:[%s2836 + $0x78] sm:$0xff]
    %2853 = vmatpush.msra.mxu0 %v2852
    %2854 = vmatpush.msra.mxu0 %v2851
    %2855 = vmatpush.msra.mxu0 %v2850
    %2856 = vmatpush.msra.mxu0 %v2849
    %2857 = vmatpush.msra.mxu0 %v2848
    %2858 = vmatpush.msra.mxu0 %v2847
    %2859 = vmatpush.msra.mxu0 %v2846
    %2860 = vmatpush.msra.mxu0 %v2845
    %2861 = vmatpush.msra.mxu0 %v2844
    %2862 = vmatpush.msra.mxu0 %v2843
    %2863 = vmatpush.msra.mxu0 %v2842
    %2864 = vmatpush.msra.mxu0 %v2841
    %2865 = vmatpush.msra.mxu0 %v2840
    %2866 = vmatpush.msra.mxu0 %v2839
    %2867 = vmatpush.msra.mxu0 %v2838
    %2868 = vmatpush.msra.mxu0 %v2837
    %2869 = vmatmul.f32.gmra.mxu0 %v2834
    %v2870 = vpop.f32.mrf.mxu0
    %v2871 = vadd.f32 0.0, %v2870
    %2872 = vmatmul.f32.gmra.mxu0 %v2835
    %v2873 = vpop.f32.mrf.mxu0
    %v2874 = vadd.f32 0.0, %v2873
    %2875 = vdwg.mxu0
    %v2876 = vadd.f32 %v2733, %v2871
    %v2877 = vadd.f32 %v2734, %v2874
    %s2878 = scalar_lea.vmem %s12, 3
    %v2879 = vld [vmem:[%s2878] sm:$0x1]
    %v2881 = vperm.slane %v2879, 0
    %v2883 = vadd.f32 %v2876, %v2881
    %v2884 = vadd.f32 %v2877, %v2881
    %v2885 = vld [vmem:[%s4] sm:$0x3]
    %v2887 = vsel %vm238, %v2885, 0
    %v2890 = vsel %vm273, %v2884, 0
    %2892 = vmatpush.msra.mxu0 0.0
    %2893 = vmatpush.msra.mxu0 0.0
    %2894 = vmatpush.msra.mxu0 0.0
    %2895 = vmatpush.msra.mxu0 0.0
    %2896 = vmatpush.msra.mxu0 0.0
    %2897 = vmatpush.msra.mxu0 0.0
    %2898 = vmatpush.msra.mxu0 0.0
    %2899 = vmatpush.msra.mxu0 0.0
    %2900 = vmatpush.msra.mxu0 0.0
    %2901 = vmatpush.msra.mxu0 0.0
    %2902 = vmatpush.msra.mxu0 0.0
    %2903 = vmatpush.msra.mxu0 0.0
    %2904 = vmatpush.msra.mxu0 0.0
    %2905 = vmatpush.msra.mxu0 0.0
    %2906 = vmatpush.msra.mxu0 %v2890
    %2907 = vmatpush.msra.mxu0 %v2883
    %2908 = vmatmul.f32.gmra.mxu0 %v2887
    %v2909 = vpop.f32.mrf.mxu0
    %v2910 = vadd.f32 0.0, %v2909
    %2911 = vdwg.mxu0
    %vm2912 = vcmask 254976
    %v2913 = vsel %vm2912, %v2910, 0.0
    %2914 = vadd.xlane.f32.xlu0 %v2913
    %v2915 = vpop.xlane.xlu0 %2914
    %v2916 = vmul.f32 %v2915, %v124
    %v2917 = vsub.f32 %v2910, %v2916
    %v2918 = vmul.f32 %v2917, %v2917
    %v2919 = vsel %vm2912, %v2918, 0.0
    %2920 = vadd.xlane.f32.xlu0 %v2919
    %v2921 = vpop.xlane.xlu0 %2920
    %v2922 = vmul.f32 %v2921, %v124
    %v2923 = vadd.f32 %v2922, 1e-05
    %v2924 = vrsqrt.pop %v2923
    %v2925 = vmul.f32 %v2924, %v2923
    %v2926 = vmul.f32 %v2925, %v2924
    %v2927 = vmul.f32 0.5, %v2926
    %v2928 = vsub.f32 1.5, %v2927
    %v2929 = vmul.f32 %v2924, %v2928
    %vm2930 = vweird.f32 %v2923
    %vm2931 = vweird.f32 %v2924
    %vm2932 = vmor %vm2930, %vm2931
    %v2933 = vsel %vm2932, %v2924, %v2929
    %v2934 = vmul.f32 %v2917, %v2933
    %v2935 = vld [vmem:[%s13] sm:$0xff]
    %v2936 = vld [vmem:[%s13 + $0x8] sm:$0xff]
    %v2937 = vld [vmem:[%s13 + $0x10] sm:$0xff]
    %v2938 = vld [vmem:[%s13 + $0x18] sm:$0xff]
    %v2939 = vld [vmem:[%s14] sm:$0x1]
    %v2941 = vperm.slane %v2939, 0
    %v2944 = vsel %vm110, %v2934, 0
    %2946 = vmatpush.msra.mxu0 0.0
    %2947 = vmatpush.msra.mxu0 0.0
    %2948 = vmatpush.msra.mxu0 0.0
    %2949 = vmatpush.msra.mxu0 0.0
    %2950 = vmatpush.msra.mxu0 0.0
    %2951 = vmatpush.msra.mxu0 0.0
    %2952 = vmatpush.msra.mxu0 0.0
    %2953 = vmatpush.msra.mxu0 0.0
    %2954 = vmatpush.msra.mxu0 0.0
    %2955 = vmatpush.msra.mxu0 0.0
    %2956 = vmatpush.msra.mxu0 0.0
    %2957 = vmatpush.msra.mxu0 0.0
    %2958 = vmatpush.msra.mxu0 %v2938
    %2959 = vmatpush.msra.mxu0 %v2937
    %2960 = vmatpush.msra.mxu0 %v2936
    %2961 = vmatpush.msra.mxu0 %v2935
    %2962 = vmatmul.f32.gmra.mxu0 %v2944
    %v2963 = vpop.f32.mrf.mxu0
    %v2964 = vadd.f32 %v2941, %v2963
    %2965 = vdwg.mxu0
    %2966 = vst [vmem:[#allocation2] sm:$0x3] %v2964
    // Predicated region
    $region62: #{gpt2_lm_forward.1} parent=1 // pred_check
      _
    $region63: #{gpt2_lm_forward.1} parent=1 // pred_check_branch
      %2968 = sbr.rel (0) target = $region65
    $region64: #{gpt2_lm_forward.1} parent=1 // pred_region
      %2970 = vsyncadd [#allocation3], 0
      %s2972 = sshll.u32 [#allocation2], 4
      %s2973 = int_to_ptr.vmem [resolvable:$true] %s2972
      %s2974 = sshll.u32 %s15, 4
      %s2975 = int_to_ptr.hbm [resolvable:$true] %s2974
      %2977 = dma.vmem_to_hbm [thread:$0]  %s2973, 32, %s2975, [#allocation3]
    $region65: #{gpt2_lm_forward.1} parent=1 // pred_fallthru
      _
    // Predicated region
    $region66: #{gpt2_lm_forward.1} parent=1 // pred_check
      _
    $region67: #{gpt2_lm_forward.1} parent=1 // pred_check_branch
      %2979 = sbr.rel (0) target = $region69
    $region68: #{gpt2_lm_forward.1} parent=1 // pred_region
      %2981 = dma.done [#allocation3], 32
    $region69: #{gpt2_lm_forward.1} parent=1 // pred_fallthru
      _
    %2982 = vsyncpa [#allocation3], 1

</llo_original>
